<compile_context>
chip_gen: v5e
topology: v5e:2x2
jax: 0.10.0
libtpu: 0.0.40
codegen_flags: <defaults>
</compile_context>

<pallas_src>
import jax
import jax.numpy as jnp
from jax import lax
from jax.experimental import pallas as pl
from jax.experimental.pallas import tpu as pltpu

EMB = 32           # config['emb_dim']
NODE_DIM = 4       # config['node_dim']
NUM_GAT_LAYERS = 5
NEG_SLOPE = 0.2    # GATConv leaky_relu negative slope
NORM_AGG = True    # config['norm_agg'] -> scatter_mean branch
NODE_BLOCK = 128   # node rows per grid step; keep 128 on v5e/v6e/v7x (VPU/EUP-bound kernel)

_BF = jnp.bfloat16
_DN_RHS_T = (((1,), (1,)), ((), ()))   # contract lhs dim 1 with rhs dim 1 ("rhs transposed")


def pick_elementwise_dtype():
    """bf16 VPU/EUP exist on v6e (Trillium) and later; keep f32 on v5e and older/unknown."""
    try:
        kind = jax.devices()[0].device_kind.lower()
    except Exception:
        return jnp.float32
    if any(tag in kind for tag in ("v6", "v7", "trillium", "ironwood")):
        return jnp.bfloat16
    return jnp.float32


def _make_kernel(ew_dtype):
    def qnet_gat_kernel(x_ref, adjb_ref, pool_ref,
                        wfull_ref, asrc_ref, bias_ref,
                        t6w_ref, t6b_ref, t7w_ref, t7b_ref,
                        t5w_ref, t5b_ref, out_ref):
        h = x_ref[...]                               # (Nb, EMB+1) f32, last column == 1 (constant)
        adj_bias = adjb_ref[0].astype(ew_dtype)      # (Nb, Nb) additive mask: 0 on edges, -1e9 off
        W_full = wfull_ref[...]                      # (L, EMB+1, EMB+2) bf16: [W | e_const | W@adst]
        asrc = asrc_ref[...]                         # (L, EMB+1) bf16 (constant slot = 0)
        bias = bias_ref[...]                         # (L, EMB+1) f32  (constant slot = 0)

        # ---- 5-layer GAT (heads=1, concat=True, self loops, ReLU between layers) ----
        for l in range(NUM_GAT_LAYERS):
            # One MXU pass yields [z | 1 | a_dst]; the extra columns ride for free at EMB=32.
            z_aug = jnp.dot(h.astype(_BF), W_full[l],
                            preferred_element_type=jnp.float32)               # (Nb, EMB+2)
            rhs = z_aug[:, :EMB + 1].astype(_BF)                              # [z | 1]  (Nb, EMB+1)
            a_dst = z_aug[:, EMB + 1:EMB + 2].astype(ew_dtype)                # (Nb, 1)
            a_src = lax.dot_general(asrc[l:l + 1, :], rhs, _DN_RHS_T,
                                    preferred_element_type=jnp.float32)       # (1, Nb) lane-dense
            e = a_dst + a_src.astype(ew_dtype)                                # (Nb, Nb)
            e = jnp.maximum(e, NEG_SLOPE * e)                                 # leaky_relu
            e = e + adj_bias                                                  # mask (after leaky, as in PyG)
            m = jnp.max(e, axis=-1, keepdims=True)
            p = jnp.exp(e - m)
            # Numerator and softmax denominator in a single MXU pass (last rhs column is ones).
            pz = jnp.dot(p.astype(_BF), rhs, preferred_element_type=jnp.float32)   # (Nb, EMB+1)
            h = pz * pl.reciprocal(pz[:, EMB:EMB + 1], approx=True) + bias[l:l + 1, :]
            if l < NUM_GAT_LAYERS - 1:
                h = jnp.maximum(h, 0.0)                                       # constant column stays ~1

        mu = h.astype(_BF)                                                    # (Nb, EMB+1)
        # scatter_mean + repeat_interleave == row-normalized block-diagonal pooling matmul
        pooled = jnp.dot(pool_ref[0], mu, preferred_element_type=jnp.float32)             # (Nb, EMB+1)
        gs = jnp.dot(pooled.astype(_BF), t6w_ref[...],
                     preferred_element_type=jnp.float32) + t6b_ref[...]                   # theta6
        la = jnp.dot(mu, t7w_ref[...],
                     preferred_element_type=jnp.float32) + t7b_ref[...]                   # theta7
        rg = jnp.maximum(gs, 0.0).astype(_BF)
        rl = jnp.maximum(la, 0.0).astype(_BF)
        # theta5 on concat([gs, la]) == split weight applied per half; lane-dense (1, Nb) output row
        w5 = t5w_ref[...]                                                                 # (2, EMB) bf16
        out_row = (lax.dot_general(w5[0:1, :], rg, _DN_RHS_T, preferred_element_type=jnp.float32)
                   + lax.dot_general(w5[1:2, :], rl, _DN_RHS_T, preferred_element_type=jnp.float32)
                   + t5b_ref[...])                                                        # (1, Nb)
        out_ref[0] = out_row

    return qnet_gat_kernel


def pack_params(p):
    """Pack original QNet_GAT parameters into the augmented kernel layout."""
    L = NUM_GAT_LAYERS
    W, asrc, adst = p['W'], p['asrc'], p['adst']                      # (L,EMB,EMB), (L,EMB), (L,EMB)
    wdst = jnp.einsum('ljk,lk->lj', W, adst)                          # W[l] @ adst[l]  -> (L, EMB)
    W_full = jnp.zeros((L, EMB + 1, EMB + 2), jnp.float32)
    W_full = W_full.at[:, :EMB, :EMB].set(W)                          # feature projection
    W_full = W_full.at[:, EMB, EMB].set(1.0)                          # constant ("ones") passthrough
    W_full = W_full.at[:, :EMB, EMB + 1].set(wdst)                    # fused a_dst column
    asrc_aug = jnp.zeros((L, EMB + 1), jnp.float32).at[:, :EMB].set(asrc)
    bias_aug = jnp.zeros((L, EMB + 1), jnp.float32).at[:, :EMB].set(p['bias'])
    t6w_aug = jnp.zeros((EMB + 1, EMB), jnp.float32).at[:EMB, :].set(p['t6w'])
    t7w_aug = jnp.zeros((EMB + 1, EMB), jnp.float32).at[:EMB, :].set(p['t7w'])
    return dict(
        W_full=W_full.astype(_BF),
        asrc=asrc_aug.astype(_BF),
        bias=bias_aug,
        t6w=t6w_aug.astype(_BF), t6b=p['t6b'],
        t7w=t7w_aug.astype(_BF), t7b=p['t7b'],
        t5w=p['t5w'].astype(_BF), t5b=p['t5b'],
    )


def qnet_gat_forward(x_aug, adj_bias_blocks, pool_blocks, kparams,
                     node_block=NODE_BLOCK, ew_dtype=jnp.float32):
    n = x_aug.shape[0]
    nb = node_block
    assert n % nb == 0
    num_blocks = n // nb
    assert adj_bias_blocks.shape == (num_blocks, nb, nb)
    assert pool_blocks.shape == (num_blocks, nb, nb)

    # v7x has two TensorCores: keep the block count even so ("parallel",) load-balances them.
    if num_blocks % 2 == 1:
        pad_x = jnp.zeros((nb, EMB + 1), x_aug.dtype).at[:, EMB].set(1.0)
        eye = jnp.eye(nb, dtype=jnp.float32)
        pad_adj = jnp.where(eye > 0, 0.0, -1e9).astype(adj_bias_blocks.dtype)[None]
        pad_pool = eye.astype(pool_blocks.dtype)[None]
        x_aug = jnp.concatenate([x_aug, pad_x], axis=0)
        adj_bias_blocks = jnp.concatenate([adj_bias_blocks, pad_adj], axis=0)
        pool_blocks = jnp.concatenate([pool_blocks, pad_pool], axis=0)
        num_blocks += 1

    in_specs = [
        pl.BlockSpec((nb, EMB + 1), lambda i: (i, 0)),                           # x_aug node block
        pl.BlockSpec((1, nb, nb), lambda i: (i, 0, 0)),                          # additive edge-mask tile
        pl.BlockSpec((1, nb, nb), lambda i: (i, 0, 0)),                          # pooling tile
        pl.BlockSpec((NUM_GAT_LAYERS, EMB + 1, EMB + 2), lambda i: (0, 0, 0)),   # W_full
        pl.BlockSpec((NUM_GAT_LAYERS, EMB + 1), lambda i: (0, 0)),               # asrc
        pl.BlockSpec((NUM_GAT_LAYERS, EMB + 1), lambda i: (0, 0)),               # bias
        pl.BlockSpec((EMB + 1, EMB), lambda i: (0, 0)),                          # theta6 W
        pl.BlockSpec((1, EMB), lambda i: (0, 0)),                                # theta6 b
        pl.BlockSpec((EMB + 1, EMB), lambda i: (0, 0)),                          # theta7 W
        pl.BlockSpec((1, EMB), lambda i: (0, 0)),                                # theta7 b
        pl.BlockSpec((2, EMB), lambda i: (0, 0)),                                # theta5 W (gs/la halves)
        pl.BlockSpec((1, 1), lambda i: (0, 0)),                                  # theta5 b
    ]
    out_specs = pl.BlockSpec((1, 1, nb), lambda i: (i, 0, 0))                    # lane-dense output rows

    # advisory cost estimate for XLA's scheduler
    l_flops = (2 * nb * (EMB + 1) * (EMB + 2) + 2 * nb * (EMB + 1)
               + 2 * nb * nb * (EMB + 1) + 6 * nb * nb)
    head_flops = 2 * nb * nb * (EMB + 1) + 4 * nb * (EMB + 1) * EMB + 4 * nb * EMB
    param_bytes = sum(int(v.size) * v.dtype.itemsize for v in kparams.values())
    cost = pl.CostEstimate(
        flops=num_blocks * (NUM_GAT_LAYERS * l_flops + head_flops),
        transcendentals=num_blocks * NUM_GAT_LAYERS * (nb * nb + nb),
        bytes_accessed=num_blocks * (nb * (EMB + 1) * 4 + 2 * nb * nb * 2 + nb * 4) + param_bytes,
    )

    out = pl.pallas_call(
        _make_kernel(ew_dtype),
        out_shape=jax.ShapeDtypeStruct((num_blocks, 1, nb), jnp.float32),
        grid=(num_blocks,),
        in_specs=in_specs,
        out_specs=out_specs,
        compiler_params=pltpu.CompilerParams(dimension_semantics=("parallel",)),
        cost_estimate=cost,
    )(x_aug, adj_bias_blocks, pool_blocks,
      kparams['W_full'], kparams['asrc'], kparams['bias'],
      kparams['t6w'], kparams['t6b'], kparams['t7w'], kparams['t7b'],
      kparams['t5w'], kparams['t5b'])
    return out.reshape(num_blocks * nb)[:n]   # .squeeze()


def reference_forward(x_pad, adj_full, pool_full, p):
    """Pure-JAX reference of the same math (bf16 matmul operands mirrored, exact softmax)."""
    h = x_pad
    for l in range(NUM_GAT_LAYERS):
        z = jnp.dot(h.astype(_BF), p['W'][l].astype(_BF), preferred_element_type=jnp.float32)
        a_dst = jnp.sum(z * p['adst'][l][None, :], axis=-1, keepdims=True)
        a_src = jnp.dot(z.astype(_BF), p['asrc'][l].astype(_BF), preferred_element_type=jnp.float32)
        e = a_dst + a_src[None, :]
        e = jnp.where(e > 0, e, NEG_SLOPE * e)
        e = jnp.where(adj_full > 0, e, -1e9)
        alpha = jax.nn.softmax(e, axis=-1)
        h_new = jnp.dot(alpha.astype(_BF), z.astype(_BF),
                        preferred_element_type=jnp.float32) + p['bias'][l][None, :]
        h = jnp.maximum(h_new, 0.0) if l < NUM_GAT_LAYERS - 1 else h_new
    mu = h.astype(_BF)
    pooled = jnp.dot(pool_full.astype(_BF), mu, preferred_element_type=jnp.float32)
    gs = jnp.dot(pooled.astype(_BF), p['t6w'].astype(_BF),
                 preferred_element_type=jnp.float32) + p['t6b']
    la = jnp.dot(mu, p['t7w'].astype(_BF), preferred_element_type=jnp.float32) + p['t7b']
    rg = jnp.maximum(gs, 0.0).astype(_BF)
    rl = jnp.maximum(la, 0.0).astype(_BF)
    out = (jnp.dot(rg, p['t5w'][0].astype(_BF), preferred_element_type=jnp.float32)
           + jnp.dot(rl, p['t5w'][1].astype(_BF), preferred_element_type=jnp.float32)
           + p['t5b'][0, 0])
    return out


if __name__ == "__main__":
    key = jax.random.PRNGKey(0)
    n_graphs, nodes_per_graph = 32, 8        # 256 nodes -> 2 node blocks of 128 rows (even -> v7x friendly)
    N = n_graphs * nodes_per_graph
    assert NODE_BLOCK % nodes_per_graph == 0 and N % NODE_BLOCK == 0

    # pyg_data.x
    key, kx = jax.random.split(key)
    x = jax.random.normal(kx, (N, NODE_DIM), jnp.float32)

    # pyg_data.edge_index: bidirectional ring within each graph
    src, dst = [], []
    for g in range(n_graphs):
        off = g * nodes_per_graph
        for i in range(nodes_per_graph):
            j = (i + 1) % nodes_per_graph
            src += [off + i, off + j]
            dst += [off + j, off + i]
    edge_index = jnp.array([src, dst], dtype=jnp.int32)
    batch = jnp.repeat(jnp.arange(n_graphs, dtype=jnp.int32), nodes_per_graph)   # pyg_data.batch

    # dense adjacency (target-major) with self loops
    adj_full = jnp.zeros((N, N), jnp.float32).at[edge_index[1], edge_index[0]].set(1.0)
    adj_full = jnp.maximum(adj_full, jnp.eye(N, dtype=jnp.float32))
    # self loops guarantee every softmax row has >= 1 edge -> denom >= exp(0) (approx recip is safe)
    assert bool(jnp.all(jnp.sum(adj_full, axis=1) >= 1.0))

    # scatter_mean(+repeat_interleave) as a row-normalized pooling matrix
    same = (batch[:, None] == batch[None, :]).astype(jnp.float32)
    pool_full = same / jnp.sum(same, axis=1, keepdims=True) if NORM_AGG else same

    # graphs never straddle a node block, so per-block diagonal tiles capture all structure
    assert bool(jnp.all(edge_index[0] // NODE_BLOCK == edge_index[1] // NODE_BLOCK))
    num_blocks = N // NODE_BLOCK
    adj_bias_full = jnp.where(adj_full > 0, 0.0, -1e9)
    adj_bias_blocks = jnp.stack(
        [adj_bias_full[b * NODE_BLOCK:(b + 1) * NODE_BLOCK,
                       b * NODE_BLOCK:(b + 1) * NODE_BLOCK] for b in range(num_blocks)]).astype(_BF)
    pool_blocks = jnp.stack(
        [pool_full[b * NODE_BLOCK:(b + 1) * NODE_BLOCK,
                   b * NODE_BLOCK:(b + 1) * NODE_BLOCK] for b in range(num_blocks)]).astype(_BF)

    # deterministic parameter init (synthetic; shapes follow QNet_GAT.__init__)
    def uinit(k, shape, fan_in):
        b = 1.0 / float(fan_in) ** 0.5
        return jax.random.uniform(k, shape, jnp.float32, -b, b)

    keys = jax.random.split(key, 32)
    ws, asrcs, adsts, biases = [], [], [], []
    for l in range(NUM_GAT_LAYERS):
        fan_in = NODE_DIM if l == 0 else EMB
        w = uinit(keys[4 * l + 0], (fan_in, EMB), fan_in)
        if l == 0:   # zero-pad first-layer weight so all layer weights stack to (L, EMB, EMB)
            w = jnp.zeros((EMB, EMB), jnp.float32).at[:NODE_DIM, :].set(w)
        ws.append(w)
        asrcs.append(uinit(keys[4 * l + 1], (EMB,), EMB))
        adsts.append(uinit(keys[4 * l + 2], (EMB,), EMB))
        biases.append(uinit(keys[4 * l + 3], (EMB,), EMB))

    t5w_full = uinit(keys[24], (2 * EMB, 1), 2 * EMB)            # torch theta5 weight, stored (in, out)
    ref_params = dict(
        W=jnp.stack(ws),
        asrc=jnp.stack(asrcs), adst=jnp.stack(adsts), bias=jnp.stack(biases),
        t6w=uinit(keys[20], (EMB, EMB), EMB),                    # stored (in, out) == torch W.T
        t6b=uinit(keys[21], (1, EMB), EMB),
        t7w=uinit(keys[22], (EMB, EMB), EMB),
        t7b=uinit(keys[23], (1, EMB), EMB),
        t5w=jnp.stack([t5w_full[:EMB, 0], t5w_full[EMB:, 0]]),   # split gs/la halves
        t5b=uinit(keys[25], (1, 1), 2 * EMB),
    )
    kparams = pack_params(ref_params)

    # zero-pad node features NODE_DIM -> EMB, then append the constant "ones" column
    x_pad = jnp.zeros((N, EMB), jnp.float32).at[:, :NODE_DIM].set(x)
    x_aug = jnp.concatenate([x_pad, jnp.ones((N, 1), jnp.float32)], axis=1)

    ew = pick_elementwise_dtype()    # bf16 attention elementwise on v6e/v7x, f32 on v5e/older
    try:
        out = jax.block_until_ready(
            qnet_gat_forward(x_aug, adj_bias_blocks, pool_blocks, kparams, ew_dtype=ew))
    except Exception:
        if ew == jnp.float32:
            raise
        # fall back to the always-supported f32 elementwise path
        out = jax.block_until_ready(
            qnet_gat_forward(x_aug, adj_bias_blocks, pool_blocks, kparams, ew_dtype=jnp.float32))

    ref = reference_forward(x_pad, adj_full, pool_full, ref_params)
    assert out.shape == (N,)
    # bf16 MXU/elementwise operands + approx reciprocal -> modest tolerance vs. the f32 softmax reference
    assert jnp.allclose(out, ref, rtol=5e-2, atol=1e-2), float(jnp.max(jnp.abs(out - ref)))
    print("KERNEL_OK")
</pallas_src>

<mosaic_0001>
module attributes {stable_mosaic.version = 11 : i64} {
  func.func @qnet_gat_kernel(%arg0: i32, %arg1: memref<128x33xf32, #tpu.memory_space<vmem>>, %arg2: memref<1x128x128xbf16, #tpu.memory_space<vmem>>, %arg3: memref<1x128x128xbf16, #tpu.memory_space<vmem>>, %arg4: memref<5x33x34xbf16, #tpu.memory_space<vmem>>, %arg5: memref<5x33xbf16, #tpu.memory_space<vmem>>, %arg6: memref<5x33xf32, #tpu.memory_space<vmem>>, %arg7: memref<33x32xbf16, #tpu.memory_space<vmem>>, %arg8: memref<1x32xf32, #tpu.memory_space<vmem>>, %arg9: memref<33x32xbf16, #tpu.memory_space<vmem>>, %arg10: memref<1x32xf32, #tpu.memory_space<vmem>>, %arg11: memref<2x32xbf16, #tpu.memory_space<vmem>>, %arg12: memref<1x1xf32, #tpu.memory_space<vmem>>, %arg13: memref<1x1x128xf32, #tpu.memory_space<vmem>>) attributes {dimension_semantics = [#tpu.dimension_semantics<parallel>], iteration_bounds = array<i64: 2>, scalar_prefetch = 0 : i64, scratch_operands = 0 : i64, tpu.core_type = #tpu.core_type<tc>, window_params = [{transform_indices = @transform_0, window_bounds = array<i64: 128, 33>}, {transform_indices = @transform_1, window_bounds = array<i64: 1, 128, 128>}, {transform_indices = @transform_2, window_bounds = array<i64: 1, 128, 128>}, {pipeline_mode = #tpu.pipeline_mode<synchronous>, transform_indices = @transform_3, window_bounds = array<i64: 5, 33, 34>}, {pipeline_mode = #tpu.pipeline_mode<synchronous>, transform_indices = @transform_4, window_bounds = array<i64: 5, 33>}, {pipeline_mode = #tpu.pipeline_mode<synchronous>, transform_indices = @transform_5, window_bounds = array<i64: 5, 33>}, {pipeline_mode = #tpu.pipeline_mode<synchronous>, transform_indices = @transform_6, window_bounds = array<i64: 33, 32>}, {pipeline_mode = #tpu.pipeline_mode<synchronous>, transform_indices = @transform_7, window_bounds = array<i64: 1, 32>}, {pipeline_mode = #tpu.pipeline_mode<synchronous>, transform_indices = @transform_8, window_bounds = array<i64: 33, 32>}, {pipeline_mode = #tpu.pipeline_mode<synchronous>, transform_indices = @transform_9, window_bounds = array<i64: 1, 32>}, {pipeline_mode = #tpu.pipeline_mode<synchronous>, transform_indices = @transform_10, window_bounds = array<i64: 2, 32>}, {pipeline_mode = #tpu.pipeline_mode<synchronous>, transform_indices = @transform_11, window_bounds = array<i64: 1, 1>}, {transform_indices = @transform_12, window_bounds = array<i64: 1, 1, 128>}]} {
    %c0 = arith.constant 0 : index
    %c0_0 = arith.constant 0 : index
    %0 = vector.load %arg1[%c0, %c0_0] : memref<128x33xf32, #tpu.memory_space<vmem>>, vector<128x33xf32>
    %c0_1 = arith.constant 0 : index
    %c0_2 = arith.constant 0 : index
    %c0_3 = arith.constant 0 : index
    %1 = vector.load %arg2[%c0_1, %c0_2, %c0_3] : memref<1x128x128xbf16, #tpu.memory_space<vmem>>, vector<1x128x128xbf16>
    %2 = vector.shape_cast %1 : vector<1x128x128xbf16> to vector<128x128xbf16>
    %3 = arith.extf %2 : vector<128x128xbf16> to vector<128x128xf32>
    %c0_4 = arith.constant 0 : index
    %c0_5 = arith.constant 0 : index
    %c0_6 = arith.constant 0 : index
    %4 = vector.load %arg4[%c0_4, %c0_5, %c0_6] : memref<5x33x34xbf16, #tpu.memory_space<vmem>>, vector<5x33x34xbf16>
    %c0_7 = arith.constant 0 : index
    %c0_8 = arith.constant 0 : index
    %5 = vector.load %arg5[%c0_7, %c0_8] : memref<5x33xbf16, #tpu.memory_space<vmem>>, vector<5x33xbf16>
    %c0_9 = arith.constant 0 : index
    %c0_10 = arith.constant 0 : index
    %6 = vector.load %arg6[%c0_9, %c0_10] : memref<5x33xf32, #tpu.memory_space<vmem>>, vector<5x33xf32>
    %7 = arith.truncf %0 : vector<128x33xf32> to vector<128x33xbf16>
    %8 = vector.extract_strided_slice %4 {offsets = [0, 0, 0], sizes = [1, 33, 34], strides = [1, 1, 1]} : vector<5x33x34xbf16> to vector<1x33x34xbf16>
    %9 = vector.shape_cast %8 : vector<1x33x34xbf16> to vector<33x34xbf16>
    %cst = arith.constant dense<0.000000e+00> : vector<128x34xf32>
    %10 = tpu.matmul %7, %9, %cst {dimension_numbers = #tpu.dot_dimension_numbers<[1], [0], [0], [1], [0, 0, 1, 1], [], []>} : vector<128x33xbf16>, vector<33x34xbf16>, vector<128x34xf32> -> vector<128x34xf32>
    %11 = vector.extract_strided_slice %10 {offsets = [0, 0], sizes = [128, 33], strides = [1, 1]} : vector<128x34xf32> to vector<128x33xf32>
    %12 = arith.truncf %11 : vector<128x33xf32> to vector<128x33xbf16>
    %13 = vector.extract_strided_slice %10 {offsets = [0, 33], sizes = [128, 1], strides = [1, 1]} : vector<128x34xf32> to vector<128x1xf32>
    %14 = vector.extract_strided_slice %5 {offsets = [0, 0], sizes = [1, 33], strides = [1, 1]} : vector<5x33xbf16> to vector<1x33xbf16>
    %cst_11 = arith.constant dense<0.000000e+00> : vector<1x128xf32>
    %15 = tpu.matmul %14, %12, %cst_11 {dimension_numbers = #tpu.dot_dimension_numbers<[1], [1], [0], [0], [0, 0, 1, 0], [], []>} : vector<1x33xbf16>, vector<128x33xbf16>, vector<1x128xf32> -> vector<1x128xf32>
    %16 = vector.broadcast %13 : vector<128x1xf32> to vector<128x128xf32>
    %17 = vector.broadcast %15 : vector<1x128xf32> to vector<128x128xf32>
    %18 = arith.addf %16, %17 : vector<128x128xf32>
    %cst_12 = arith.constant 2.000000e-01 : f32
    %19 = vector.broadcast %cst_12 : f32 to vector<128x128xf32>
    %20 = arith.mulf %19, %18 : vector<128x128xf32>
    %21 = arith.maximumf %18, %20 : vector<128x128xf32>
    %22 = arith.addf %21, %3 : vector<128x128xf32>
    %cst_13 = arith.constant dense<0xFF800000> : vector<128xf32>
    %23 = vector.multi_reduction <maximumf>, %22, %cst_13 [1] : vector<128x128xf32> to vector<128xf32>
    %24 = vector.shape_cast %23 : vector<128xf32> to vector<128x1xf32>
    %25 = vector.broadcast %24 : vector<128x1xf32> to vector<128x128xf32>
    %26 = arith.subf %22, %25 : vector<128x128xf32>
    %27 = math.exp %26 : vector<128x128xf32>
    %28 = arith.truncf %27 : vector<128x128xf32> to vector<128x128xbf16>
    %cst_14 = arith.constant dense<0.000000e+00> : vector<128x33xf32>
    %29 = tpu.matmul %28, %12, %cst_14 {dimension_numbers = #tpu.dot_dimension_numbers<[1], [0], [0], [1], [0, 0, 1, 1], [], []>} : vector<128x128xbf16>, vector<128x33xbf16>, vector<128x33xf32> -> vector<128x33xf32>
    %30 = vector.extract_strided_slice %29 {offsets = [0, 32], sizes = [128, 1], strides = [1, 1]} : vector<128x33xf32> to vector<128x1xf32>
    %31 = tpu.reciprocal %30 {approx = true} : vector<128x1xf32> -> vector<128x1xf32>
    %32 = vector.broadcast %31 : vector<128x1xf32> to vector<128x33xf32>
    %33 = arith.mulf %29, %32 : vector<128x33xf32>
    %34 = vector.extract_strided_slice %6 {offsets = [0, 0], sizes = [1, 33], strides = [1, 1]} : vector<5x33xf32> to vector<1x33xf32>
    %35 = vector.broadcast %34 : vector<1x33xf32> to vector<128x33xf32>
    %36 = arith.addf %33, %35 : vector<128x33xf32>
    %cst_15 = arith.constant 0.000000e+00 : f32
    %37 = vector.broadcast %cst_15 : f32 to vector<128x33xf32>
    %38 = arith.maximumf %36, %37 : vector<128x33xf32>
    %39 = arith.truncf %38 : vector<128x33xf32> to vector<128x33xbf16>
    %40 = vector.extract_strided_slice %4 {offsets = [1, 0, 0], sizes = [1, 33, 34], strides = [1, 1, 1]} : vector<5x33x34xbf16> to vector<1x33x34xbf16>
    %41 = vector.shape_cast %40 : vector<1x33x34xbf16> to vector<33x34xbf16>
    %cst_16 = arith.constant dense<0.000000e+00> : vector<128x34xf32>
    %42 = tpu.matmul %39, %41, %cst_16 {dimension_numbers = #tpu.dot_dimension_numbers<[1], [0], [0], [1], [0, 0, 1, 1], [], []>} : vector<128x33xbf16>, vector<33x34xbf16>, vector<128x34xf32> -> vector<128x34xf32>
    %43 = vector.extract_strided_slice %42 {offsets = [0, 0], sizes = [128, 33], strides = [1, 1]} : vector<128x34xf32> to vector<128x33xf32>
    %44 = arith.truncf %43 : vector<128x33xf32> to vector<128x33xbf16>
    %45 = vector.extract_strided_slice %42 {offsets = [0, 33], sizes = [128, 1], strides = [1, 1]} : vector<128x34xf32> to vector<128x1xf32>
    %46 = vector.extract_strided_slice %5 {offsets = [1, 0], sizes = [1, 33], strides = [1, 1]} : vector<5x33xbf16> to vector<1x33xbf16>
    %cst_17 = arith.constant dense<0.000000e+00> : vector<1x128xf32>
    %47 = tpu.matmul %46, %44, %cst_17 {dimension_numbers = #tpu.dot_dimension_numbers<[1], [1], [0], [0], [0, 0, 1, 0], [], []>} : vector<1x33xbf16>, vector<128x33xbf16>, vector<1x128xf32> -> vector<1x128xf32>
    %48 = vector.broadcast %45 : vector<128x1xf32> to vector<128x128xf32>
    %49 = vector.broadcast %47 : vector<1x128xf32> to vector<128x128xf32>
    %50 = arith.addf %48, %49 : vector<128x128xf32>
    %cst_18 = arith.constant 2.000000e-01 : f32
    %51 = vector.broadcast %cst_18 : f32 to vector<128x128xf32>
    %52 = arith.mulf %51, %50 : vector<128x128xf32>
    %53 = arith.maximumf %50, %52 : vector<128x128xf32>
    %54 = arith.addf %53, %3 : vector<128x128xf32>
    %cst_19 = arith.constant dense<0xFF800000> : vector<128xf32>
    %55 = vector.multi_reduction <maximumf>, %54, %cst_19 [1] : vector<128x128xf32> to vector<128xf32>
    %56 = vector.shape_cast %55 : vector<128xf32> to vector<128x1xf32>
    %57 = vector.broadcast %56 : vector<128x1xf32> to vector<128x128xf32>
    %58 = arith.subf %54, %57 : vector<128x128xf32>
    %59 = math.exp %58 : vector<128x128xf32>
    %60 = arith.truncf %59 : vector<128x128xf32> to vector<128x128xbf16>
    %cst_20 = arith.constant dense<0.000000e+00> : vector<128x33xf32>
    %61 = tpu.matmul %60, %44, %cst_20 {dimension_numbers = #tpu.dot_dimension_numbers<[1], [0], [0], [1], [0, 0, 1, 1], [], []>} : vector<128x128xbf16>, vector<128x33xbf16>, vector<128x33xf32> -> vector<128x33xf32>
    %62 = vector.extract_strided_slice %61 {offsets = [0, 32], sizes = [128, 1], strides = [1, 1]} : vector<128x33xf32> to vector<128x1xf32>
    %63 = tpu.reciprocal %62 {approx = true} : vector<128x1xf32> -> vector<128x1xf32>
    %64 = vector.broadcast %63 : vector<128x1xf32> to vector<128x33xf32>
    %65 = arith.mulf %61, %64 : vector<128x33xf32>
    %66 = vector.extract_strided_slice %6 {offsets = [1, 0], sizes = [1, 33], strides = [1, 1]} : vector<5x33xf32> to vector<1x33xf32>
    %67 = vector.broadcast %66 : vector<1x33xf32> to vector<128x33xf32>
    %68 = arith.addf %65, %67 : vector<128x33xf32>
    %cst_21 = arith.constant 0.000000e+00 : f32
    %69 = vector.broadcast %cst_21 : f32 to vector<128x33xf32>
    %70 = arith.maximumf %68, %69 : vector<128x33xf32>
    %71 = arith.truncf %70 : vector<128x33xf32> to vector<128x33xbf16>
    %72 = vector.extract_strided_slice %4 {offsets = [2, 0, 0], sizes = [1, 33, 34], strides = [1, 1, 1]} : vector<5x33x34xbf16> to vector<1x33x34xbf16>
    %73 = vector.shape_cast %72 : vector<1x33x34xbf16> to vector<33x34xbf16>
    %cst_22 = arith.constant dense<0.000000e+00> : vector<128x34xf32>
    %74 = tpu.matmul %71, %73, %cst_22 {dimension_numbers = #tpu.dot_dimension_numbers<[1], [0], [0], [1], [0, 0, 1, 1], [], []>} : vector<128x33xbf16>, vector<33x34xbf16>, vector<128x34xf32> -> vector<128x34xf32>
    %75 = vector.extract_strided_slice %74 {offsets = [0, 0], sizes = [128, 33], strides = [1, 1]} : vector<128x34xf32> to vector<128x33xf32>
    %76 = arith.truncf %75 : vector<128x33xf32> to vector<128x33xbf16>
    %77 = vector.extract_strided_slice %74 {offsets = [0, 33], sizes = [128, 1], strides = [1, 1]} : vector<128x34xf32> to vector<128x1xf32>
    %78 = vector.extract_strided_slice %5 {offsets = [2, 0], sizes = [1, 33], strides = [1, 1]} : vector<5x33xbf16> to vector<1x33xbf16>
    %cst_23 = arith.constant dense<0.000000e+00> : vector<1x128xf32>
    %79 = tpu.matmul %78, %76, %cst_23 {dimension_numbers = #tpu.dot_dimension_numbers<[1], [1], [0], [0], [0, 0, 1, 0], [], []>} : vector<1x33xbf16>, vector<128x33xbf16>, vector<1x128xf32> -> vector<1x128xf32>
    %80 = vector.broadcast %77 : vector<128x1xf32> to vector<128x128xf32>
    %81 = vector.broadcast %79 : vector<1x128xf32> to vector<128x128xf32>
    %82 = arith.addf %80, %81 : vector<128x128xf32>
    %cst_24 = arith.constant 2.000000e-01 : f32
    %83 = vector.broadcast %cst_24 : f32 to vector<128x128xf32>
    %84 = arith.mulf %83, %82 : vector<128x128xf32>
    %85 = arith.maximumf %82, %84 : vector<128x128xf32>
    %86 = arith.addf %85, %3 : vector<128x128xf32>
    %cst_25 = arith.constant dense<0xFF800000> : vector<128xf32>
    %87 = vector.multi_reduction <maximumf>, %86, %cst_25 [1] : vector<128x128xf32> to vector<128xf32>
    %88 = vector.shape_cast %87 : vector<128xf32> to vector<128x1xf32>
    %89 = vector.broadcast %88 : vector<128x1xf32> to vector<128x128xf32>
    %90 = arith.subf %86, %89 : vector<128x128xf32>
    %91 = math.exp %90 : vector<128x128xf32>
    %92 = arith.truncf %91 : vector<128x128xf32> to vector<128x128xbf16>
    %cst_26 = arith.constant dense<0.000000e+00> : vector<128x33xf32>
    %93 = tpu.matmul %92, %76, %cst_26 {dimension_numbers = #tpu.dot_dimension_numbers<[1], [0], [0], [1], [0, 0, 1, 1], [], []>} : vector<128x128xbf16>, vector<128x33xbf16>, vector<128x33xf32> -> vector<128x33xf32>
    %94 = vector.extract_strided_slice %93 {offsets = [0, 32], sizes = [128, 1], strides = [1, 1]} : vector<128x33xf32> to vector<128x1xf32>
    %95 = tpu.reciprocal %94 {approx = true} : vector<128x1xf32> -> vector<128x1xf32>
    %96 = vector.broadcast %95 : vector<128x1xf32> to vector<128x33xf32>
    %97 = arith.mulf %93, %96 : vector<128x33xf32>
    %98 = vector.extract_strided_slice %6 {offsets = [2, 0], sizes = [1, 33], strides = [1, 1]} : vector<5x33xf32> to vector<1x33xf32>
    %99 = vector.broadcast %98 : vector<1x33xf32> to vector<128x33xf32>
    %100 = arith.addf %97, %99 : vector<128x33xf32>
    %cst_27 = arith.constant 0.000000e+00 : f32
    %101 = vector.broadcast %cst_27 : f32 to vector<128x33xf32>
    %102 = arith.maximumf %100, %101 : vector<128x33xf32>
    %103 = arith.truncf %102 : vector<128x33xf32> to vector<128x33xbf16>
    %104 = vector.extract_strided_slice %4 {offsets = [3, 0, 0], sizes = [1, 33, 34], strides = [1, 1, 1]} : vector<5x33x34xbf16> to vector<1x33x34xbf16>
    %105 = vector.shape_cast %104 : vector<1x33x34xbf16> to vector<33x34xbf16>
    %cst_28 = arith.constant dense<0.000000e+00> : vector<128x34xf32>
    %106 = tpu.matmul %103, %105, %cst_28 {dimension_numbers = #tpu.dot_dimension_numbers<[1], [0], [0], [1], [0, 0, 1, 1], [], []>} : vector<128x33xbf16>, vector<33x34xbf16>, vector<128x34xf32> -> vector<128x34xf32>
    %107 = vector.extract_strided_slice %106 {offsets = [0, 0], sizes = [128, 33], strides = [1, 1]} : vector<128x34xf32> to vector<128x33xf32>
    %108 = arith.truncf %107 : vector<128x33xf32> to vector<128x33xbf16>
    %109 = vector.extract_strided_slice %106 {offsets = [0, 33], sizes = [128, 1], strides = [1, 1]} : vector<128x34xf32> to vector<128x1xf32>
    %110 = vector.extract_strided_slice %5 {offsets = [3, 0], sizes = [1, 33], strides = [1, 1]} : vector<5x33xbf16> to vector<1x33xbf16>
    %cst_29 = arith.constant dense<0.000000e+00> : vector<1x128xf32>
    %111 = tpu.matmul %110, %108, %cst_29 {dimension_numbers = #tpu.dot_dimension_numbers<[1], [1], [0], [0], [0, 0, 1, 0], [], []>} : vector<1x33xbf16>, vector<128x33xbf16>, vector<1x128xf32> -> vector<1x128xf32>
    %112 = vector.broadcast %109 : vector<128x1xf32> to vector<128x128xf32>
    %113 = vector.broadcast %111 : vector<1x128xf32> to vector<128x128xf32>
    %114 = arith.addf %112, %113 : vector<128x128xf32>
    %cst_30 = arith.constant 2.000000e-01 : f32
    %115 = vector.broadcast %cst_30 : f32 to vector<128x128xf32>
    %116 = arith.mulf %115, %114 : vector<128x128xf32>
    %117 = arith.maximumf %114, %116 : vector<128x128xf32>
    %118 = arith.addf %117, %3 : vector<128x128xf32>
    %cst_31 = arith.constant dense<0xFF800000> : vector<128xf32>
    %119 = vector.multi_reduction <maximumf>, %118, %cst_31 [1] : vector<128x128xf32> to vector<128xf32>
    %120 = vector.shape_cast %119 : vector<128xf32> to vector<128x1xf32>
    %121 = vector.broadcast %120 : vector<128x1xf32> to vector<128x128xf32>
    %122 = arith.subf %118, %121 : vector<128x128xf32>
    %123 = math.exp %122 : vector<128x128xf32>
    %124 = arith.truncf %123 : vector<128x128xf32> to vector<128x128xbf16>
    %cst_32 = arith.constant dense<0.000000e+00> : vector<128x33xf32>
    %125 = tpu.matmul %124, %108, %cst_32 {dimension_numbers = #tpu.dot_dimension_numbers<[1], [0], [0], [1], [0, 0, 1, 1], [], []>} : vector<128x128xbf16>, vector<128x33xbf16>, vector<128x33xf32> -> vector<128x33xf32>
    %126 = vector.extract_strided_slice %125 {offsets = [0, 32], sizes = [128, 1], strides = [1, 1]} : vector<128x33xf32> to vector<128x1xf32>
    %127 = tpu.reciprocal %126 {approx = true} : vector<128x1xf32> -> vector<128x1xf32>
    %128 = vector.broadcast %127 : vector<128x1xf32> to vector<128x33xf32>
    %129 = arith.mulf %125, %128 : vector<128x33xf32>
    %130 = vector.extract_strided_slice %6 {offsets = [3, 0], sizes = [1, 33], strides = [1, 1]} : vector<5x33xf32> to vector<1x33xf32>
    %131 = vector.broadcast %130 : vector<1x33xf32> to vector<128x33xf32>
    %132 = arith.addf %129, %131 : vector<128x33xf32>
    %cst_33 = arith.constant 0.000000e+00 : f32
    %133 = vector.broadcast %cst_33 : f32 to vector<128x33xf32>
    %134 = arith.maximumf %132, %133 : vector<128x33xf32>
    %135 = arith.truncf %134 : vector<128x33xf32> to vector<128x33xbf16>
    %136 = vector.extract_strided_slice %4 {offsets = [4, 0, 0], sizes = [1, 33, 34], strides = [1, 1, 1]} : vector<5x33x34xbf16> to vector<1x33x34xbf16>
    %137 = vector.shape_cast %136 : vector<1x33x34xbf16> to vector<33x34xbf16>
    %cst_34 = arith.constant dense<0.000000e+00> : vector<128x34xf32>
    %138 = tpu.matmul %135, %137, %cst_34 {dimension_numbers = #tpu.dot_dimension_numbers<[1], [0], [0], [1], [0, 0, 1, 1], [], []>} : vector<128x33xbf16>, vector<33x34xbf16>, vector<128x34xf32> -> vector<128x34xf32>
    %139 = vector.extract_strided_slice %138 {offsets = [0, 0], sizes = [128, 33], strides = [1, 1]} : vector<128x34xf32> to vector<128x33xf32>
    %140 = arith.truncf %139 : vector<128x33xf32> to vector<128x33xbf16>
    %141 = vector.extract_strided_slice %138 {offsets = [0, 33], sizes = [128, 1], strides = [1, 1]} : vector<128x34xf32> to vector<128x1xf32>
    %142 = vector.extract_strided_slice %5 {offsets = [4, 0], sizes = [1, 33], strides = [1, 1]} : vector<5x33xbf16> to vector<1x33xbf16>
    %cst_35 = arith.constant dense<0.000000e+00> : vector<1x128xf32>
    %143 = tpu.matmul %142, %140, %cst_35 {dimension_numbers = #tpu.dot_dimension_numbers<[1], [1], [0], [0], [0, 0, 1, 0], [], []>} : vector<1x33xbf16>, vector<128x33xbf16>, vector<1x128xf32> -> vector<1x128xf32>
    %144 = vector.broadcast %141 : vector<128x1xf32> to vector<128x128xf32>
    %145 = vector.broadcast %143 : vector<1x128xf32> to vector<128x128xf32>
    %146 = arith.addf %144, %145 : vector<128x128xf32>
    %cst_36 = arith.constant 2.000000e-01 : f32
    %147 = vector.broadcast %cst_36 : f32 to vector<128x128xf32>
    %148 = arith.mulf %147, %146 : vector<128x128xf32>
    %149 = arith.maximumf %146, %148 : vector<128x128xf32>
    %150 = arith.addf %149, %3 : vector<128x128xf32>
    %cst_37 = arith.constant dense<0xFF800000> : vector<128xf32>
    %151 = vector.multi_reduction <maximumf>, %150, %cst_37 [1] : vector<128x128xf32> to vector<128xf32>
    %152 = vector.shape_cast %151 : vector<128xf32> to vector<128x1xf32>
    %153 = vector.broadcast %152 : vector<128x1xf32> to vector<128x128xf32>
    %154 = arith.subf %150, %153 : vector<128x128xf32>
    %155 = math.exp %154 : vector<128x128xf32>
    %156 = arith.truncf %155 : vector<128x128xf32> to vector<128x128xbf16>
    %cst_38 = arith.constant dense<0.000000e+00> : vector<128x33xf32>
    %157 = tpu.matmul %156, %140, %cst_38 {dimension_numbers = #tpu.dot_dimension_numbers<[1], [0], [0], [1], [0, 0, 1, 1], [], []>} : vector<128x128xbf16>, vector<128x33xbf16>, vector<128x33xf32> -> vector<128x33xf32>
    %158 = vector.extract_strided_slice %157 {offsets = [0, 32], sizes = [128, 1], strides = [1, 1]} : vector<128x33xf32> to vector<128x1xf32>
    %159 = tpu.reciprocal %158 {approx = true} : vector<128x1xf32> -> vector<128x1xf32>
    %160 = vector.broadcast %159 : vector<128x1xf32> to vector<128x33xf32>
    %161 = arith.mulf %157, %160 : vector<128x33xf32>
    %162 = vector.extract_strided_slice %6 {offsets = [4, 0], sizes = [1, 33], strides = [1, 1]} : vector<5x33xf32> to vector<1x33xf32>
    %163 = vector.broadcast %162 : vector<1x33xf32> to vector<128x33xf32>
    %164 = arith.addf %161, %163 : vector<128x33xf32>
    %165 = arith.truncf %164 : vector<128x33xf32> to vector<128x33xbf16>
    %c0_39 = arith.constant 0 : index
    %c0_40 = arith.constant 0 : index
    %c0_41 = arith.constant 0 : index
    %166 = vector.load %arg3[%c0_39, %c0_40, %c0_41] : memref<1x128x128xbf16, #tpu.memory_space<vmem>>, vector<1x128x128xbf16>
    %167 = vector.shape_cast %166 : vector<1x128x128xbf16> to vector<128x128xbf16>
    %cst_42 = arith.constant dense<0.000000e+00> : vector<128x33xf32>
    %168 = tpu.matmul %167, %165, %cst_42 {dimension_numbers = #tpu.dot_dimension_numbers<[1], [0], [0], [1], [0, 0, 1, 1], [], []>} : vector<128x128xbf16>, vector<128x33xbf16>, vector<128x33xf32> -> vector<128x33xf32>
    %169 = arith.truncf %168 : vector<128x33xf32> to vector<128x33xbf16>
    %c0_43 = arith.constant 0 : index
    %c0_44 = arith.constant 0 : index
    %170 = vector.load %arg7[%c0_43, %c0_44] : memref<33x32xbf16, #tpu.memory_space<vmem>>, vector<33x32xbf16>
    %cst_45 = arith.constant dense<0.000000e+00> : vector<128x32xf32>
    %171 = tpu.matmul %169, %170, %cst_45 {dimension_numbers = #tpu.dot_dimension_numbers<[1], [0], [0], [1], [0, 0, 1, 1], [], []>} : vector<128x33xbf16>, vector<33x32xbf16>, vector<128x32xf32> -> vector<128x32xf32>
    %c0_46 = arith.constant 0 : index
    %c0_47 = arith.constant 0 : index
    %172 = vector.load %arg8[%c0_46, %c0_47] : memref<1x32xf32, #tpu.memory_space<vmem>>, vector<1x32xf32>
    %173 = vector.broadcast %172 : vector<1x32xf32> to vector<128x32xf32>
    %174 = arith.addf %171, %173 : vector<128x32xf32>
    %c0_48 = arith.constant 0 : index
    %c0_49 = arith.constant 0 : index
    %175 = vector.load %arg9[%c0_48, %c0_49] : memref<33x32xbf16, #tpu.memory_space<vmem>>, vector<33x32xbf16>
    %cst_50 = arith.constant dense<0.000000e+00> : vector<128x32xf32>
    %176 = tpu.matmul %165, %175, %cst_50 {dimension_numbers = #tpu.dot_dimension_numbers<[1], [0], [0], [1], [0, 0, 1, 1], [], []>} : vector<128x33xbf16>, vector<33x32xbf16>, vector<128x32xf32> -> vector<128x32xf32>
    %c0_51 = arith.constant 0 : index
    %c0_52 = arith.constant 0 : index
    %177 = vector.load %arg10[%c0_51, %c0_52] : memref<1x32xf32, #tpu.memory_space<vmem>>, vector<1x32xf32>
    %178 = vector.broadcast %177 : vector<1x32xf32> to vector<128x32xf32>
    %179 = arith.addf %176, %178 : vector<128x32xf32>
    %cst_53 = arith.constant 0.000000e+00 : f32
    %180 = vector.broadcast %cst_53 : f32 to vector<128x32xf32>
    %181 = arith.maximumf %174, %180 : vector<128x32xf32>
    %182 = arith.truncf %181 : vector<128x32xf32> to vector<128x32xbf16>
    %cst_54 = arith.constant 0.000000e+00 : f32
    %183 = vector.broadcast %cst_54 : f32 to vector<128x32xf32>
    %184 = arith.maximumf %179, %183 : vector<128x32xf32>
    %185 = arith.truncf %184 : vector<128x32xf32> to vector<128x32xbf16>
    %c0_55 = arith.constant 0 : index
    %c0_56 = arith.constant 0 : index
    %186 = vector.load %arg11[%c0_55, %c0_56] : memref<2x32xbf16, #tpu.memory_space<vmem>>, vector<2x32xbf16>
    %187 = vector.extract_strided_slice %186 {offsets = [0, 0], sizes = [1, 32], strides = [1, 1]} : vector<2x32xbf16> to vector<1x32xbf16>
    %cst_57 = arith.constant dense<0.000000e+00> : vector<1x128xf32>
    %188 = tpu.matmul %187, %182, %cst_57 {dimension_numbers = #tpu.dot_dimension_numbers<[1], [1], [0], [0], [0, 0, 1, 0], [], []>} : vector<1x32xbf16>, vector<128x32xbf16>, vector<1x128xf32> -> vector<1x128xf32>
    %189 = vector.extract_strided_slice %186 {offsets = [1, 0], sizes = [1, 32], strides = [1, 1]} : vector<2x32xbf16> to vector<1x32xbf16>
    %cst_58 = arith.constant dense<0.000000e+00> : vector<1x128xf32>
    %190 = tpu.matmul %189, %185, %cst_58 {dimension_numbers = #tpu.dot_dimension_numbers<[1], [1], [0], [0], [0, 0, 1, 0], [], []>} : vector<1x32xbf16>, vector<128x32xbf16>, vector<1x128xf32> -> vector<1x128xf32>
    %191 = arith.addf %188, %190 : vector<1x128xf32>
    %c0_59 = arith.constant 0 : index
    %c0_60 = arith.constant 0 : index
    %192 = vector.load %arg12[%c0_59, %c0_60] : memref<1x1xf32, #tpu.memory_space<vmem>>, vector<1x1xf32>
    %193 = vector.broadcast %192 : vector<1x1xf32> to vector<1x128xf32>
    %194 = arith.addf %191, %193 : vector<1x128xf32>
    %c0_61 = arith.constant 0 : index
    %c0_62 = arith.constant 0 : index
    %c0_63 = arith.constant 0 : index
    %195 = vector.load %arg13[%c0_61, %c0_62, %c0_63] : memref<1x1x128xf32, #tpu.memory_space<vmem>>, vector<1x1x128xf32>
    %196 = vector.shape_cast %195 : vector<1x1x128xf32> to vector<1x128xf32>
    %197 = vector.shape_cast %194 : vector<1x128xf32> to vector<1x1x128xf32>
    tpu.vector_store %arg13[%c0_61, %c0_62, %c0_63], %197 {strides = array<i32>} : memref<1x1x128xf32, #tpu.memory_space<vmem>>, vector<1x1x128xf32>,
    return
  }
  func.func @transform_0(%arg0: i32) -> (i32, i32) {
    %c0_i32 = arith.constant 0 : i32
    %c0_i32_0 = arith.constant 0 : i32
    return %arg0, %c0_i32 : i32, i32
  }
  func.func @transform_1(%arg0: i32) -> (i32, i32, i32) {
    %c0_i32 = arith.constant 0 : i32
    %c0_i32_0 = arith.constant 0 : i32
    %c0_i32_1 = arith.constant 0 : i32
    return %arg0, %c0_i32, %c0_i32_0 : i32, i32, i32
  }
  func.func @transform_2(%arg0: i32) -> (i32, i32, i32) {
    %c0_i32 = arith.constant 0 : i32
    %c0_i32_0 = arith.constant 0 : i32
    %c0_i32_1 = arith.constant 0 : i32
    return %arg0, %c0_i32, %c0_i32_0 : i32, i32, i32
  }
  func.func @transform_3(%arg0: i32) -> (i32, i32, i32) {
    %c0_i32 = arith.constant 0 : i32
    %c0_i32_0 = arith.constant 0 : i32
    %c0_i32_1 = arith.constant 0 : i32
    %c0_i32_2 = arith.constant 0 : i32
    return %c0_i32, %c0_i32_0, %c0_i32_1 : i32, i32, i32
  }
  func.func @transform_4(%arg0: i32) -> (i32, i32) {
    %c0_i32 = arith.constant 0 : i32
    %c0_i32_0 = arith.constant 0 : i32
    %c0_i32_1 = arith.constant 0 : i32
    return %c0_i32, %c0_i32_0 : i32, i32
  }
  func.func @transform_5(%arg0: i32) -> (i32, i32) {
    %c0_i32 = arith.constant 0 : i32
    %c0_i32_0 = arith.constant 0 : i32
    %c0_i32_1 = arith.constant 0 : i32
    return %c0_i32, %c0_i32_0 : i32, i32
  }
  func.func @transform_6(%arg0: i32) -> (i32, i32) {
    %c0_i32 = arith.constant 0 : i32
    %c0_i32_0 = arith.constant 0 : i32
    %c0_i32_1 = arith.constant 0 : i32
    return %c0_i32, %c0_i32_0 : i32, i32
  }
  func.func @transform_7(%arg0: i32) -> (i32, i32) {
    %c0_i32 = arith.constant 0 : i32
    %c0_i32_0 = arith.constant 0 : i32
    %c0_i32_1 = arith.constant 0 : i32
    return %c0_i32, %c0_i32_0 : i32, i32
  }
  func.func @transform_8(%arg0: i32) -> (i32, i32) {
    %c0_i32 = arith.constant 0 : i32
    %c0_i32_0 = arith.constant 0 : i32
    %c0_i32_1 = arith.constant 0 : i32
    return %c0_i32, %c0_i32_0 : i32, i32
  }
  func.func @transform_9(%arg0: i32) -> (i32, i32) {
    %c0_i32 = arith.constant 0 : i32
    %c0_i32_0 = arith.constant 0 : i32
    %c0_i32_1 = arith.constant 0 : i32
    return %c0_i32, %c0_i32_0 : i32, i32
  }
  func.func @transform_10(%arg0: i32) -> (i32, i32) {
    %c0_i32 = arith.constant 0 : i32
    %c0_i32_0 = arith.constant 0 : i32
    %c0_i32_1 = arith.constant 0 : i32
    return %c0_i32, %c0_i32_0 : i32, i32
  }
  func.func @transform_11(%arg0: i32) -> (i32, i32) {
    %c0_i32 = arith.constant 0 : i32
    %c0_i32_0 = arith.constant 0 : i32
    %c0_i32_1 = arith.constant 0 : i32
    return %c0_i32, %c0_i32_0 : i32, i32
  }
  func.func @transform_12(%arg0: i32) -> (i32, i32, i32) {
    %c0_i32 = arith.constant 0 : i32
    %c0_i32_0 = arith.constant 0 : i32
    %c0_i32_1 = arith.constant 0 : i32
    return %arg0, %c0_i32, %c0_i32_0 : i32, i32, i32
  }
}

</mosaic_0001>

<llo_original>
// kernel: tpu_custom_call.1
$region0: #{tpu_custom_call.1}
  #allocation0 [shape = 'u32[]', space=smem, size = 0x4, offset = 0x4, fixed_abs, tag = 'smem constant byte address 0x4 - core index']
  #allocation1 [shape = 'u32[72,128]{1,0:T(1,128)}', space=vmem, size = 0x9000, scoped, tag = 'internal scratch']
  #allocation2 [shape = 'f32[1,1]{1,0:T(1,128)S(1)}', space=vmem, size = 0x200, scoped, tag = 'scoped memory for tpu_custom_call.1']
  %s0 = inlined_call_operand.vmem [shape: f32[256,33], index: 0, kind: input, shape index: {}]
  %s1 = inlined_call_operand.vmem [shape: bf16[2,128,128], index: 1, kind: input, shape index: {}]
  %s2 = inlined_call_operand.vmem [shape: bf16[2,128,128], index: 2, kind: input, shape index: {}]
  %s3 = inlined_call_operand.vmem [shape: bf16[5,33,34], index: 3, kind: input, shape index: {}]
  %s4 = inlined_call_operand.vmem [shape: bf16[5,33], index: 4, kind: input, shape index: {}]
  %s5 = inlined_call_operand.vmem [shape: f32[5,33], index: 5, kind: input, shape index: {}]
  %s6 = inlined_call_operand.vmem [shape: bf16[33,32], index: 6, kind: input, shape index: {}]
  %s7 = inlined_call_operand.vmem [shape: f32[1,32], index: 7, kind: input, shape index: {}]
  %s8 = inlined_call_operand.vmem [shape: bf16[33,32], index: 8, kind: input, shape index: {}]
  %s9 = inlined_call_operand.vmem [shape: f32[1,32], index: 9, kind: input, shape index: {}]
  %s10 = inlined_call_operand.vmem [shape: bf16[2,32], index: 10, kind: input, shape index: {}]
  %s11 = inlined_call_operand.<no memory space> [shape: f32[1,1], index: 11, kind: input, shape index: {}]
  %s12 = inlined_call_operand.hbm [shape: f32[2,1,128], index: 12, kind: output, shape index: {}]
  %s13 = sld [smem:[#allocation0]]
  $region81: #{tpu_custom_call.1} parent=0
    _
  %s15 = ssub.s32 1, %s13
  %s16 = scalar_select 0, %s15, %s13
  %v17 = vstv %s11
  %18 = vst [vmem:[#allocation2] sm:$0x1] %v17
  $region1: #{tpu_custom_call.1} parent=0
    #allocation3 [shape = 'u8[1024]{0}', space=vmem, size = 0x400, scoped, tag = 'output window, operand 0']
    #allocation4 [shape = 's32[2]{0}', space=sflag, size = 0x8, scoped, tag = 'scoped memory for tpu_custom_call.1']
    %19 = vsyncpa [#allocation4], 0
    %s20 = scalar_lea.sflag [#allocation4], 1
    %21 = vsyncpa %s20, 0
    loop: start=0, step=1, limit=4
    $region2: #{tpu_custom_call.1} parent=1 // loop_pre_header
      _
    $region3: #{tpu_custom_call.1} parent=1 // loop_header
      %s23 = sphi 0, %s27
      %p24 = scmp.ge.s32.totalorder %s23, 4
      %s33 = sphi 0, %s35
      %s36 = sphi 0, %s33
      %s37 = sphi 0, %s36
      %s53 = sphi 0, %s37
      %s59 = sphi 0, %s61
      %s62 = sphi 0, %s59
      %s63 = sphi 0, %s62
      %s79 = sphi 0, %s63
      %s85 = sphi 0, %s87
      %s88 = sphi 0, %s85
      %s89 = sphi 0, %s88
      %s105 = sphi 0, %s89
      %s109 = sphi 0, %s109
      %s111 = sphi 0, %s109
      %s112 = sphi 0, %s111
      %s126 = sphi 0, %s112
      %s130 = sphi 0, %s130
      %s132 = sphi 0, %s130
      %s133 = sphi 0, %s132
      %s147 = sphi 0, %s133
      %s151 = sphi 0, %s151
      %s153 = sphi 0, %s151
      %s154 = sphi 0, %s153
      %s168 = sphi 0, %s154
      %s172 = sphi 0, %s172
      %s174 = sphi 0, %s172
      %s175 = sphi 0, %s174
      %s189 = sphi 0, %s175
      %s193 = sphi 0, %s193
      %s195 = sphi 0, %s193
      %s196 = sphi 0, %s195
      %s210 = sphi 0, %s196
      %s214 = sphi 0, %s214
      %s216 = sphi 0, %s214
      %s217 = sphi 0, %s216
      %s231 = sphi 0, %s217
      %s235 = sphi 0, %s235
      %s237 = sphi 0, %s235
      %s238 = sphi 0, %s237
      %s252 = sphi 0, %s238
      %s256 = sphi 0, %s256
      %s258 = sphi 0, %s256
      %s259 = sphi 0, %s258
      %s273 = sphi 0, %s259
      %s277 = sphi 0, %s277
      %s279 = sphi 0, %s277
      %s280 = sphi 0, %s279
      %s294 = sphi 0, %s280
      %s300 = sphi 0, %s302
      %s303 = sphi 0, %s300
      %s304 = sphi 0, %s303
      %s320 = sphi 0, %s304
    $region4: #{tpu_custom_call.1} parent=1 // loop_header_branch
      %26 = sbr.rel (%p24) target = $region8
    $region5: #{tpu_custom_call.1} parent=1 // loop_body
      %s28 = ssub.s32 %s23, 1
      %s29 = ssub.s32 %s23, 2
      %s30 = sadd.s32 %s23, 1
      %s31 = ssub.s32 %s23, %s30
      %p32 = scmp.eq.s32.totalorder %s31, 0
      %s34 = sadd.s32 %s33, 1
      %s35 = scalar_select %p32, %s33, %s34
      %p38 = pneg %p32
      %p39 = scmp.eq.s32.totalorder %s23, 1
      %p40 = por %p38, %p39
      %p41 = scmp.ne.s32.totalorder %s33, %s36
      %p42 = scmp.eq.s32.totalorder %s23, 0
      %p43 = por %p41, %p42
      %p44 = scmp.ne.s32.totalorder %s33, %s36
      %p45 = scmp.eq.s32.totalorder %s28, 1
      %p46 = por %p44, %p45
      %p47 = scmp.ne.s32.totalorder %s36, %s37
      %p48 = scmp.eq.s32.totalorder %s28, 0
      %p49 = por %p47, %p48
      %p50 = scmp.ne.s32.totalorder %s36, %s37
      %p51 = scmp.eq.s32.totalorder %s29, 1
      %p52 = por %p50, %p51
      %p54 = scmp.ne.s32.totalorder %s37, %s53
      %p55 = scmp.eq.s32.totalorder %s29, 0
      %p56 = por %p54, %p55
      %s57 = ssub.s32 %s23, %s30
      %p58 = scmp.eq.s32.totalorder %s57, 0
      %s60 = sadd.s32 %s59, 1
      %s61 = scalar_select %p58, %s59, %s60
      %p64 = pneg %p58
      %p65 = scmp.eq.s32.totalorder %s23, 1
      %p66 = por %p64, %p65
      %p67 = scmp.ne.s32.totalorder %s59, %s62
      %p68 = scmp.eq.s32.totalorder %s23, 0
      %p69 = por %p67, %p68
      %p70 = scmp.ne.s32.totalorder %s59, %s62
      %p71 = scmp.eq.s32.totalorder %s28, 1
      %p72 = por %p70, %p71
      %p73 = scmp.ne.s32.totalorder %s62, %s63
      %p74 = scmp.eq.s32.totalorder %s28, 0
      %p75 = por %p73, %p74
      %p76 = scmp.ne.s32.totalorder %s62, %s63
      %p77 = scmp.eq.s32.totalorder %s29, 1
      %p78 = por %p76, %p77
      %p80 = scmp.ne.s32.totalorder %s63, %s79
      %p81 = scmp.eq.s32.totalorder %s29, 0
      %p82 = por %p80, %p81
      %s83 = ssub.s32 %s23, %s30
      %p84 = scmp.eq.s32.totalorder %s83, 0
      %s86 = sadd.s32 %s85, 1
      %s87 = scalar_select %p84, %s85, %s86
      %p90 = pneg %p84
      %p91 = scmp.eq.s32.totalorder %s23, 1
      %p92 = por %p90, %p91
      %p93 = scmp.ne.s32.totalorder %s85, %s88
      %p94 = scmp.eq.s32.totalorder %s23, 0
      %p95 = por %p93, %p94
      %p96 = scmp.ne.s32.totalorder %s85, %s88
      %p97 = scmp.eq.s32.totalorder %s28, 1
      %p98 = por %p96, %p97
      %p99 = scmp.ne.s32.totalorder %s88, %s89
      %p100 = scmp.eq.s32.totalorder %s28, 0
      %p101 = por %p99, %p100
      %p102 = scmp.ne.s32.totalorder %s88, %s89
      %p103 = scmp.eq.s32.totalorder %s29, 1
      %p104 = por %p102, %p103
      %p106 = scmp.ne.s32.totalorder %s89, %s105
      %p107 = scmp.eq.s32.totalorder %s29, 0
      %p108 = por %p106, %p107
      %s110 = sadd.s32 %s109, 1
      %p113 = scmp.eq.s32.totalorder %s23, 1
      %p114 = scmp.ne.s32.totalorder %s109, %s111
      %p115 = scmp.eq.s32.totalorder %s23, 0
      %p116 = por %p114, %p115
      %p117 = scmp.ne.s32.totalorder %s109, %s111
      %p118 = scmp.eq.s32.totalorder %s28, 1
      %p119 = por %p117, %p118
      %p120 = scmp.ne.s32.totalorder %s111, %s112
      %p121 = scmp.eq.s32.totalorder %s28, 0
      %p122 = por %p120, %p121
      %p123 = scmp.ne.s32.totalorder %s111, %s112
      %p124 = scmp.eq.s32.totalorder %s29, 1
      %p125 = por %p123, %p124
      %p127 = scmp.ne.s32.totalorder %s112, %s126
      %p128 = scmp.eq.s32.totalorder %s29, 0
      %p129 = por %p127, %p128
      %s131 = sadd.s32 %s130, 1
      %p134 = scmp.eq.s32.totalorder %s23, 1
      %p135 = scmp.ne.s32.totalorder %s130, %s132
      %p136 = scmp.eq.s32.totalorder %s23, 0
      %p137 = por %p135, %p136
      %p138 = scmp.ne.s32.totalorder %s130, %s132
      %p139 = scmp.eq.s32.totalorder %s28, 1
      %p140 = por %p138, %p139
      %p141 = scmp.ne.s32.totalorder %s132, %s133
      %p142 = scmp.eq.s32.totalorder %s28, 0
      %p143 = por %p141, %p142
      %p144 = scmp.ne.s32.totalorder %s132, %s133
      %p145 = scmp.eq.s32.totalorder %s29, 1
      %p146 = por %p144, %p145
      %p148 = scmp.ne.s32.totalorder %s133, %s147
      %p149 = scmp.eq.s32.totalorder %s29, 0
      %p150 = por %p148, %p149
      %s152 = sadd.s32 %s151, 1
      %p155 = scmp.eq.s32.totalorder %s23, 1
      %p156 = scmp.ne.s32.totalorder %s151, %s153
      %p157 = scmp.eq.s32.totalorder %s23, 0
      %p158 = por %p156, %p157
      %p159 = scmp.ne.s32.totalorder %s151, %s153
      %p160 = scmp.eq.s32.totalorder %s28, 1
      %p161 = por %p159, %p160
      %p162 = scmp.ne.s32.totalorder %s153, %s154
      %p163 = scmp.eq.s32.totalorder %s28, 0
      %p164 = por %p162, %p163
      %p165 = scmp.ne.s32.totalorder %s153, %s154
      %p166 = scmp.eq.s32.totalorder %s29, 1
      %p167 = por %p165, %p166
      %p169 = scmp.ne.s32.totalorder %s154, %s168
      %p170 = scmp.eq.s32.totalorder %s29, 0
      %p171 = por %p169, %p170
      %s173 = sadd.s32 %s172, 1
      %p176 = scmp.eq.s32.totalorder %s23, 1
      %p177 = scmp.ne.s32.totalorder %s172, %s174
      %p178 = scmp.eq.s32.totalorder %s23, 0
      %p179 = por %p177, %p178
      %p180 = scmp.ne.s32.totalorder %s172, %s174
      %p181 = scmp.eq.s32.totalorder %s28, 1
      %p182 = por %p180, %p181
      %p183 = scmp.ne.s32.totalorder %s174, %s175
      %p184 = scmp.eq.s32.totalorder %s28, 0
      %p185 = por %p183, %p184
      %p186 = scmp.ne.s32.totalorder %s174, %s175
      %p187 = scmp.eq.s32.totalorder %s29, 1
      %p188 = por %p186, %p187
      %p190 = scmp.ne.s32.totalorder %s175, %s189
      %p191 = scmp.eq.s32.totalorder %s29, 0
      %p192 = por %p190, %p191
      %s194 = sadd.s32 %s193, 1
      %p197 = scmp.eq.s32.totalorder %s23, 1
      %p198 = scmp.ne.s32.totalorder %s193, %s195
      %p199 = scmp.eq.s32.totalorder %s23, 0
      %p200 = por %p198, %p199
      %p201 = scmp.ne.s32.totalorder %s193, %s195
      %p202 = scmp.eq.s32.totalorder %s28, 1
      %p203 = por %p201, %p202
      %p204 = scmp.ne.s32.totalorder %s195, %s196
      %p205 = scmp.eq.s32.totalorder %s28, 0
      %p206 = por %p204, %p205
      %p207 = scmp.ne.s32.totalorder %s195, %s196
      %p208 = scmp.eq.s32.totalorder %s29, 1
      %p209 = por %p207, %p208
      %p211 = scmp.ne.s32.totalorder %s196, %s210
      %p212 = scmp.eq.s32.totalorder %s29, 0
      %p213 = por %p211, %p212
      %s215 = sadd.s32 %s214, 1
      %p218 = scmp.eq.s32.totalorder %s23, 1
      %p219 = scmp.ne.s32.totalorder %s214, %s216
      %p220 = scmp.eq.s32.totalorder %s23, 0
      %p221 = por %p219, %p220
      %p222 = scmp.ne.s32.totalorder %s214, %s216
      %p223 = scmp.eq.s32.totalorder %s28, 1
      %p224 = por %p222, %p223
      %p225 = scmp.ne.s32.totalorder %s216, %s217
      %p226 = scmp.eq.s32.totalorder %s28, 0
      %p227 = por %p225, %p226
      %p228 = scmp.ne.s32.totalorder %s216, %s217
      %p229 = scmp.eq.s32.totalorder %s29, 1
      %p230 = por %p228, %p229
      %p232 = scmp.ne.s32.totalorder %s217, %s231
      %p233 = scmp.eq.s32.totalorder %s29, 0
      %p234 = por %p232, %p233
      %s236 = sadd.s32 %s235, 1
      %p239 = scmp.eq.s32.totalorder %s23, 1
      %p240 = scmp.ne.s32.totalorder %s235, %s237
      %p241 = scmp.eq.s32.totalorder %s23, 0
      %p242 = por %p240, %p241
      %p243 = scmp.ne.s32.totalorder %s235, %s237
      %p244 = scmp.eq.s32.totalorder %s28, 1
      %p245 = por %p243, %p244
      %p246 = scmp.ne.s32.totalorder %s237, %s238
      %p247 = scmp.eq.s32.totalorder %s28, 0
      %p248 = por %p246, %p247
      %p249 = scmp.ne.s32.totalorder %s237, %s238
      %p250 = scmp.eq.s32.totalorder %s29, 1
      %p251 = por %p249, %p250
      %p253 = scmp.ne.s32.totalorder %s238, %s252
      %p254 = scmp.eq.s32.totalorder %s29, 0
      %p255 = por %p253, %p254
      %s257 = sadd.s32 %s256, 1
      %p260 = scmp.eq.s32.totalorder %s23, 1
      %p261 = scmp.ne.s32.totalorder %s256, %s258
      %p262 = scmp.eq.s32.totalorder %s23, 0
      %p263 = por %p261, %p262
      %p264 = scmp.ne.s32.totalorder %s256, %s258
      %p265 = scmp.eq.s32.totalorder %s28, 1
      %p266 = por %p264, %p265
      %p267 = scmp.ne.s32.totalorder %s258, %s259
      %p268 = scmp.eq.s32.totalorder %s28, 0
      %p269 = por %p267, %p268
      %p270 = scmp.ne.s32.totalorder %s258, %s259
      %p271 = scmp.eq.s32.totalorder %s29, 1
      %p272 = por %p270, %p271
      %p274 = scmp.ne.s32.totalorder %s259, %s273
      %p275 = scmp.eq.s32.totalorder %s29, 0
      %p276 = por %p274, %p275
      %s278 = sadd.s32 %s277, 1
      %p281 = scmp.eq.s32.totalorder %s23, 1
      %p282 = scmp.ne.s32.totalorder %s277, %s279
      %p283 = scmp.eq.s32.totalorder %s23, 0
      %p284 = por %p282, %p283
      %p285 = scmp.ne.s32.totalorder %s277, %s279
      %p286 = scmp.eq.s32.totalorder %s28, 1
      %p287 = por %p285, %p286
      %p288 = scmp.ne.s32.totalorder %s279, %s280
      %p289 = scmp.eq.s32.totalorder %s28, 0
      %p290 = por %p288, %p289
      %p291 = scmp.ne.s32.totalorder %s279, %s280
      %p292 = scmp.eq.s32.totalorder %s29, 1
      %p293 = por %p291, %p292
      %p295 = scmp.ne.s32.totalorder %s280, %s294
      %p296 = scmp.eq.s32.totalorder %s29, 0
      %p297 = por %p295, %p296
      %s298 = ssub.s32 %s23, %s30
      %p299 = scmp.eq.s32.totalorder %s298, 0
      %s301 = sadd.s32 %s300, 1
      %s302 = scalar_select %p299, %s300, %s301
      %p305 = pneg %p299
      %p306 = scmp.eq.s32.totalorder %s23, 1
      %p307 = por %p305, %p306
      %p308 = scmp.ne.s32.totalorder %s300, %s303
      %p309 = scmp.eq.s32.totalorder %s23, 0
      %p310 = por %p308, %p309
      %p311 = scmp.ne.s32.totalorder %s300, %s303
      %p312 = scmp.eq.s32.totalorder %s28, 1
      %p313 = por %p311, %p312
      %p314 = scmp.ne.s32.totalorder %s303, %s304
      %p315 = scmp.eq.s32.totalorder %s28, 0
      %p316 = por %p314, %p315
      %p317 = scmp.ne.s32.totalorder %s303, %s304
      %p318 = scmp.eq.s32.totalorder %s29, 1
      %p319 = por %p317, %p318
      %p321 = scmp.ne.s32.totalorder %s304, %s320
      %p322 = scmp.eq.s32.totalorder %s29, 0
      %p323 = por %p321, %p322
      %p324 = scmp.le.s32.totalorder 1, %s23
      %p325 = scmp.lt.s32.totalorder %s23, 3
      %p326 = pnand %p324, %p325
      %p327 = pneg %p326
      // Predicated region
      $region9: #{tpu_custom_call.1} parent=5 // pred_check
        _
      $region10: #{tpu_custom_call.1} parent=5 // pred_check_branch
        %329 = sbr.rel (%p326) target = $region12
      $region11: #{tpu_custom_call.1} parent=5 // pred_region
        %s330 = ssub.s32 %s23, 1
        // Predicated region
        $region13: #{tpu_custom_call.1} parent=11 // pred_check
          %p331 = pneg %p122
        $region14: #{tpu_custom_call.1} parent=11 // pred_check_branch
          %333 = sbr.rel (%p331) target = $region16
        $region15: #{tpu_custom_call.1} parent=11 // pred_region
          _
        $region16: #{tpu_custom_call.1} parent=11 // pred_fallthru
          _
        // Predicated region
        $region17: #{tpu_custom_call.1} parent=11 // pred_check
          %p334 = pneg %p143
        $region18: #{tpu_custom_call.1} parent=11 // pred_check_branch
          %336 = sbr.rel (%p334) target = $region20
        $region19: #{tpu_custom_call.1} parent=11 // pred_region
          _
        $region20: #{tpu_custom_call.1} parent=11 // pred_fallthru
          _
        // Predicated region
        $region21: #{tpu_custom_call.1} parent=11 // pred_check
          %p337 = pneg %p164
        $region22: #{tpu_custom_call.1} parent=11 // pred_check_branch
          %339 = sbr.rel (%p337) target = $region24
        $region23: #{tpu_custom_call.1} parent=11 // pred_region
          _
        $region24: #{tpu_custom_call.1} parent=11 // pred_fallthru
          _
        // Predicated region
        $region25: #{tpu_custom_call.1} parent=11 // pred_check
          %p340 = pneg %p185
        $region26: #{tpu_custom_call.1} parent=11 // pred_check_branch
          %342 = sbr.rel (%p340) target = $region28
        $region27: #{tpu_custom_call.1} parent=11 // pred_region
          _
        $region28: #{tpu_custom_call.1} parent=11 // pred_fallthru
          _
        // Predicated region
        $region29: #{tpu_custom_call.1} parent=11 // pred_check
          %p343 = pneg %p206
        $region30: #{tpu_custom_call.1} parent=11 // pred_check_branch
          %345 = sbr.rel (%p343) target = $region32
        $region31: #{tpu_custom_call.1} parent=11 // pred_region
          _
        $region32: #{tpu_custom_call.1} parent=11 // pred_fallthru
          _
        // Predicated region
        $region33: #{tpu_custom_call.1} parent=11 // pred_check
          %p346 = pneg %p227
        $region34: #{tpu_custom_call.1} parent=11 // pred_check_branch
          %348 = sbr.rel (%p346) target = $region36
        $region35: #{tpu_custom_call.1} parent=11 // pred_region
          _
        $region36: #{tpu_custom_call.1} parent=11 // pred_fallthru
          _
        // Predicated region
        $region37: #{tpu_custom_call.1} parent=11 // pred_check
          %p349 = pneg %p248
        $region38: #{tpu_custom_call.1} parent=11 // pred_check_branch
          %351 = sbr.rel (%p349) target = $region40
        $region39: #{tpu_custom_call.1} parent=11 // pred_region
          _
        $region40: #{tpu_custom_call.1} parent=11 // pred_fallthru
          _
        // Predicated region
        $region41: #{tpu_custom_call.1} parent=11 // pred_check
          %p352 = pneg %p269
        $region42: #{tpu_custom_call.1} parent=11 // pred_check_branch
          %354 = sbr.rel (%p352) target = $region44
        $region43: #{tpu_custom_call.1} parent=11 // pred_region
          _
        $region44: #{tpu_custom_call.1} parent=11 // pred_fallthru
          _
        // Predicated region
        $region45: #{tpu_custom_call.1} parent=11 // pred_check
          %p355 = pneg %p290
        $region46: #{tpu_custom_call.1} parent=11 // pred_check_branch
          %357 = sbr.rel (%p355) target = $region48
        $region47: #{tpu_custom_call.1} parent=11 // pred_region
          _
        $region48: #{tpu_custom_call.1} parent=11 // pred_fallthru
          _
      $region12: #{tpu_custom_call.1} parent=5 // pred_fallthru
        _
      %p358 = scmp.lt.s32.totalorder %s23, 2
      // Predicated region
      $region49: #{tpu_custom_call.1} parent=5 // pred_check
        %p359 = pneg %p358
      $region50: #{tpu_custom_call.1} parent=5 // pred_check_branch
        %361 = sbr.rel (%p359) target = $region52
      $region51: #{tpu_custom_call.1} parent=5 // pred_region
        // Predicated region
        $region53: #{tpu_custom_call.1} parent=51 // pred_check
          %p362 = pneg %p43
        $region54: #{tpu_custom_call.1} parent=51 // pred_check_branch
          %364 = sbr.rel (%p362) target = $region56
        $region55: #{tpu_custom_call.1} parent=51 // pred_region
          %s365 = smul.u32 16, %s23
          %p366 = scmp.lt.s32.totalorder %s365, 31
          %s367 = scalar_select %p366, %s365, 31
          %s368 = smul.addr %s367, 8
          %s369 = scalar_lea.vmem %s0, %s368
          %s370 = smul.u32 16, %s23
        $region56: #{tpu_custom_call.1} parent=51 // pred_fallthru
          _
        // Predicated region
        $region57: #{tpu_custom_call.1} parent=51 // pred_check
          %p371 = pneg %p69
        $region58: #{tpu_custom_call.1} parent=51 // pred_check_branch
          %373 = sbr.rel (%p371) target = $region60
        $region59: #{tpu_custom_call.1} parent=51 // pred_region
          %p374 = scmp.lt.s32.totalorder %s23, 1
          %s375 = scalar_select %p374, %s23, 1
          %s376 = smul.addr %s375, 16
          %s377 = smul.addr %s376, 4
          %s378 = scalar_lea.vmem %s1, %s377
        $region60: #{tpu_custom_call.1} parent=51 // pred_fallthru
          _
        // Predicated region
        $region61: #{tpu_custom_call.1} parent=51 // pred_check
          %p379 = pneg %p95
        $region62: #{tpu_custom_call.1} parent=51 // pred_check_branch
          %381 = sbr.rel (%p379) target = $region64
        $region63: #{tpu_custom_call.1} parent=51 // pred_region
          %p382 = scmp.lt.s32.totalorder %s23, 1
          %s383 = scalar_select %p382, %s23, 1
          %s384 = smul.addr %s383, 16
          %s385 = smul.addr %s384, 4
          %s386 = scalar_lea.vmem %s2, %s385
        $region64: #{tpu_custom_call.1} parent=51 // pred_fallthru
          _
      $region52: #{tpu_custom_call.1} parent=5 // pred_fallthru
        _
      %p387 = scmp.le.s32.totalorder 1, %s23
      %p388 = scmp.lt.s32.totalorder %s23, 3
      %p389 = pnand %p387, %p388
      %p390 = pneg %p389
      // Predicated region
      $region65: #{tpu_custom_call.1} parent=5 // pred_check
        _
      $region66: #{tpu_custom_call.1} parent=5 // pred_check_branch
        %392 = sbr.rel (%p389) target = $region68
      $region67: #{tpu_custom_call.1} parent=5 // pred_region
        %s393 = ssub.s32 %s23, 1
        %s394 = smul.u32 16, %s28
        %p395 = scmp.lt.s32.totalorder %s394, 31
        %s396 = scalar_select %p395, %s394, 31
        %s397 = smul.addr %s396, 8
        %s398 = scalar_lea.vmem %s0, %s397
        %p399 = pneg %p49
        %p400 = pneg %p46
        %p401 = scmp.lt.s32.totalorder %s28, 1
        %s402 = scalar_select %p401, %s28, 1
        %s403 = smul.addr %s402, 16
        %s404 = smul.addr %s403, 4
        %s405 = scalar_lea.vmem %s1, %s404
        %p406 = pneg %p75
        %p407 = pneg %p72
        %p408 = scmp.lt.s32.totalorder %s28, 1
        %s409 = scalar_select %p408, %s28, 1
        %s410 = smul.addr %s409, 16
        %s411 = smul.addr %s410, 4
        %s412 = scalar_lea.vmem %s2, %s411
        %p413 = pneg %p101
        %p414 = pneg %p98
        %p415 = pneg %p122
        %p416 = pneg %p119
        %p417 = pneg %p143
        %p418 = pneg %p140
        %p419 = pneg %p164
        %p420 = pneg %p161
        %p421 = pneg %p185
        %p422 = pneg %p182
        %p423 = pneg %p206
        %p424 = pneg %p203
        %p425 = pneg %p227
        %p426 = pneg %p224
        %p427 = pneg %p248
        %p428 = pneg %p245
        %p429 = pneg %p269
        %p430 = pneg %p266
        %p431 = pneg %p290
        %p432 = pneg %p287
        %p433 = pneg %p316
        %p434 = pneg %p313
        %s435 = sand.u32 %s303, 1
        %s436 = scalar_lea.sflag [#allocation4], %s435
        %s437 = sand.u32 %s303, 1
        %s438 = scalar_lea.vmem [#allocation3], %s437
        %s439 = smul.u32 16, %s28
        %p440 = scmp.lt.s32.totalorder %s439, 31
        %s441 = scalar_select %p440, %s439, 31
        %s442 = smul.addr %s441, 8
        %s443 = scalar_lea.vmem %s0, %s442
        %s444 = smul.u32 16, %s28
        %p445 = scmp.lt.s32.totalorder %s28, 1
        %s446 = scalar_select %p445, %s28, 1
        %s447 = smul.addr %s446, 16
        %s448 = smul.addr %s447, 4
        %s449 = scalar_lea.vmem %s1, %s448
        %p450 = scmp.lt.s32.totalorder %s28, 1
        %s451 = scalar_select %p450, %s28, 1
        %s452 = smul.addr %s451, 16
        %s453 = smul.addr %s452, 4
        %s454 = scalar_lea.vmem %s2, %s453
        %v456 = vld [vmem:[%s443] sm:$0xff]
        %v457 = vld [vmem:[%s443 + $0x8] sm:$0xff]
        %v458 = vld [vmem:[%s443 + $0x10] sm:$0xff]
        %v459 = vld [vmem:[%s443 + $0x18] sm:$0xff]
        %v460 = vld [vmem:[%s443 + $0x20] sm:$0xff]
        %v461 = vld [vmem:[%s443 + $0x28] sm:$0xff]
        %v462 = vld [vmem:[%s443 + $0x30] sm:$0xff]
        %v463 = vld [vmem:[%s443 + $0x38] sm:$0xff]
        %v464 = vld [vmem:[%s443 + $0x40] sm:$0xff]
        %v465 = vld [vmem:[%s443 + $0x48] sm:$0xff]
        %v466 = vld [vmem:[%s443 + $0x50] sm:$0xff]
        %v467 = vld [vmem:[%s443 + $0x58] sm:$0xff]
        %v468 = vld [vmem:[%s443 + $0x60] sm:$0xff]
        %v469 = vld [vmem:[%s443 + $0x68] sm:$0xff]
        %v470 = vld [vmem:[%s443 + $0x70] sm:$0xff]
        %v471 = vld [vmem:[%s443 + $0x78] sm:$0xff]
        %v472 = vld [vmem:[%s449] sm:$0xf]
        %v473 = vld [vmem:[%s449 + $0x4] sm:$0xf]
        %v474 = vld [vmem:[%s449 + $0x8] sm:$0xf]
        %v475 = vld [vmem:[%s449 + $0xc] sm:$0xf]
        %v476 = vld [vmem:[%s449 + $0x10] sm:$0xf]
        %v477 = vld [vmem:[%s449 + $0x14] sm:$0xf]
        %v478 = vld [vmem:[%s449 + $0x18] sm:$0xf]
        %v479 = vld [vmem:[%s449 + $0x1c] sm:$0xf]
        %v480 = vld [vmem:[%s449 + $0x20] sm:$0xf]
        %v481 = vld [vmem:[%s449 + $0x24] sm:$0xf]
        %v482 = vld [vmem:[%s449 + $0x28] sm:$0xf]
        %v483 = vld [vmem:[%s449 + $0x2c] sm:$0xf]
        %v484 = vld [vmem:[%s449 + $0x30] sm:$0xf]
        %v485 = vld [vmem:[%s449 + $0x34] sm:$0xf]
        %v486 = vld [vmem:[%s449 + $0x38] sm:$0xf]
        %v487 = vld [vmem:[%s449 + $0x3c] sm:$0xf]
        %v488 = vunpack.c.l.bf16 %v472
        %v489 = vunpack.c.l.bf16 %v473
        %v490 = vunpack.c.l.bf16 %v474
        %v491 = vunpack.c.l.bf16 %v475
        %v492 = vunpack.c.l.bf16 %v476
        %v493 = vunpack.c.l.bf16 %v477
        %v494 = vunpack.c.l.bf16 %v478
        %v495 = vunpack.c.l.bf16 %v479
        %v496 = vunpack.c.l.bf16 %v480
        %v497 = vunpack.c.l.bf16 %v481
        %v498 = vunpack.c.l.bf16 %v482
        %v499 = vunpack.c.l.bf16 %v483
        %v500 = vunpack.c.l.bf16 %v484
        %v501 = vunpack.c.l.bf16 %v485
        %v502 = vunpack.c.l.bf16 %v486
        %v503 = vunpack.c.l.bf16 %v487
        %v504 = vld [vmem:[%s3] sm:$0xf]
        %v505 = vld [vmem:[%s3 + $0x4] sm:$0xf]
        %v506 = vld [vmem:[%s3 + $0x8] sm:$0xf]
        %v507 = vld [vmem:[%s3 + $0xc] sm:$0xf]
        %v508 = vld [vmem:[%s3 + $0x10] sm:$0x1]
        %v509 = vld [vmem:[%s3 + $0x14] sm:$0xf]
        %v510 = vld [vmem:[%s3 + $0x18] sm:$0xf]
        %v511 = vld [vmem:[%s3 + $0x1c] sm:$0xf]
        %v512 = vld [vmem:[%s3 + $0x20] sm:$0xf]
        %v513 = vld [vmem:[%s3 + $0x24] sm:$0x1]
        %v514 = vld [vmem:[%s3 + $0x28] sm:$0xf]
        %v515 = vld [vmem:[%s3 + $0x2c] sm:$0xf]
        %v516 = vld [vmem:[%s3 + $0x30] sm:$0xf]
        %v517 = vld [vmem:[%s3 + $0x34] sm:$0xf]
        %v518 = vld [vmem:[%s3 + $0x38] sm:$0x1]
        %v519 = vld [vmem:[%s3 + $0x3c] sm:$0xf]
        %v520 = vld [vmem:[%s3 + $0x40] sm:$0xf]
        %v521 = vld [vmem:[%s3 + $0x44] sm:$0xf]
        %v522 = vld [vmem:[%s3 + $0x48] sm:$0xf]
        %v523 = vld [vmem:[%s3 + $0x4c] sm:$0x1]
        %v524 = vld [vmem:[%s3 + $0x50] sm:$0xf]
        %v525 = vld [vmem:[%s3 + $0x54] sm:$0xf]
        %v526 = vld [vmem:[%s3 + $0x58] sm:$0xf]
        %v527 = vld [vmem:[%s3 + $0x5c] sm:$0xf]
        %v528 = vld [vmem:[%s3 + $0x60] sm:$0x1]
        %v529 = vld [vmem:[%s4] sm:$0x7]
        %v530 = vld [vmem:[%s5] sm:$0x1f]
        %v531 = vpack.c.bf16 %v457, %v456
        %v532 = vpack.c.bf16 %v459, %v458
        %v533 = vpack.c.bf16 %v461, %v460
        %v534 = vpack.c.bf16 %v463, %v462
        %v535 = vpack.c.bf16 %v465, %v464
        %v536 = vpack.c.bf16 %v467, %v466
        %v537 = vpack.c.bf16 %v469, %v468
        %v538 = vpack.c.bf16 %v471, %v470
        %v544 = vunpack.c.l.b16 %v504
        %v545 = vunpack.c.l.b16 %v505
        %v546 = vunpack.c.l.b16 %v506
        %v547 = vunpack.c.l.b16 %v507
        %v548 = vunpack.c.l.b16 %v508
        %v549 = vpack.c.b16 %v545, %v544
        %v550 = vpack.c.b16 %v547, %v546
        %v551 = vpack.c.b16 %v548, %v548
        %vm554 = vcmask 269312
        %v556 = vsel %vm554, %v531, 0
        %v559 = vsel %vm554, %v532, 0
        %v562 = vsel %vm554, %v533, 0
        %v565 = vsel %vm554, %v534, 0
        %v568 = vsel %vm554, %v535, 0
        %v571 = vsel %vm554, %v536, 0
        %v574 = vsel %vm554, %v537, 0
        %v577 = vsel %vm554, %v538, 0
        %vm579 = vcmask 1040384
        %v580 = vsel 0, 4294967295, 65535
        %v581 = vsel %vm579, %v580, 0
        %v583 = vand.u32 %v551, %v581
        %585 = vmatpush.bf16.msra.mxu0 0
        %586 = vmatpush.bf16.msra.mxu0 0
        %587 = vmatpush.bf16.msra.mxu0 0
        %588 = vmatpush.bf16.msra.mxu0 0
        %589 = vmatpush.bf16.msra.mxu0 0
        %590 = vmatpush.bf16.msra.mxu0 %v583
        %591 = vmatpush.bf16.msra.mxu0 %v550
        %592 = vmatpush.bf16.msra.mxu0 %v549
        %593 = vmatmul.bf16.gmra.mxu0 %v556
        %v594 = vpop.f32.mrf.mxu0
        %v595 = vadd.f32 0.0, %v594
        %v596 = vpop.f32.mrf.mxu0
        %v597 = vadd.f32 0.0, %v596
        %598 = vmatmul.bf16.gmra.mxu0 %v559
        %v599 = vpop.f32.mrf.mxu0
        %v600 = vadd.f32 0.0, %v599
        %v601 = vpop.f32.mrf.mxu0
        %v602 = vadd.f32 0.0, %v601
        %603 = vmatmul.bf16.gmra.mxu0 %v562
        %v604 = vpop.f32.mrf.mxu0
        %v605 = vadd.f32 0.0, %v604
        %v606 = vpop.f32.mrf.mxu0
        %v607 = vadd.f32 0.0, %v606
        %608 = vmatmul.bf16.gmra.mxu0 %v565
        %v609 = vpop.f32.mrf.mxu0
        %v610 = vadd.f32 0.0, %v609
        %v611 = vpop.f32.mrf.mxu0
        %v612 = vadd.f32 0.0, %v611
        %613 = vmatmul.bf16.gmra.mxu0 %v568
        %v614 = vpop.f32.mrf.mxu0
        %v615 = vadd.f32 0.0, %v614
        %v616 = vpop.f32.mrf.mxu0
        %v617 = vadd.f32 0.0, %v616
        %618 = vmatmul.bf16.gmra.mxu0 %v571
        %v619 = vpop.f32.mrf.mxu0
        %v620 = vadd.f32 0.0, %v619
        %v621 = vpop.f32.mrf.mxu0
        %v622 = vadd.f32 0.0, %v621
        %623 = vmatmul.bf16.gmra.mxu0 %v574
        %v624 = vpop.f32.mrf.mxu0
        %v625 = vadd.f32 0.0, %v624
        %v626 = vpop.f32.mrf.mxu0
        %v627 = vadd.f32 0.0, %v626
        %628 = vmatmul.bf16.gmra.mxu0 %v577
        %v629 = vpop.f32.mrf.mxu0
        %v630 = vadd.f32 0.0, %v629
        %v631 = vpop.f32.mrf.mxu0
        %v632 = vadd.f32 0.0, %v631
        %633 = vdwg.mxu0
        %v634 = vpack.c.bf16 %v597, %v595
        %v635 = vpack.c.bf16 %v602, %v600
        %v636 = vpack.c.bf16 %v607, %v605
        %v637 = vpack.c.bf16 %v612, %v610
        %v638 = vpack.c.bf16 %v617, %v615
        %v639 = vpack.c.bf16 %v622, %v620
        %v640 = vpack.c.bf16 %v627, %v625
        %v641 = vpack.c.bf16 %v632, %v630
        %v643 = vsel %vm554, %v529, 0
        %v646 = vsel %vm554, %v634, 0
        %v649 = vsel %vm554, %v635, 0
        %v652 = vsel %vm554, %v636, 0
        %v655 = vsel %vm554, %v637, 0
        %v658 = vsel %vm554, %v638, 0
        %v661 = vsel %vm554, %v639, 0
        %v664 = vsel %vm554, %v640, 0
        %v667 = vsel %vm554, %v641, 0
        %669 = vmatpush.bf16.xpose.msra.mxu0 %v667
        %670 = vmatpush.bf16.xpose.msra.mxu0 %v664
        %671 = vmatpush.bf16.xpose.msra.mxu0 %v661
        %672 = vmatpush.bf16.xpose.msra.mxu0 %v658
        %673 = vmatpush.bf16.xpose.msra.mxu0 %v655
        %674 = vmatpush.bf16.xpose.msra.mxu0 %v652
        %675 = vmatpush.bf16.xpose.msra.mxu0 %v649
        %676 = vmatpush.bf16.xpose.msra.mxu0 %v646
        %677 = vmatmul.bf16.gmra.mxu0 %v643
        %v678 = vpop.f32.mrf.mxu0
        %v679 = vadd.f32 0.0, %v678
        %v680 = vpop.f32.mrf.mxu0
        %681 = vdwg.mxu0
        %683 = vset.pattern.permute.xlu0 33
        %684 = vperm.xlu0 %683, %v595
        %v685 = vpop.permute.xlu0 %684
        %688 = vset.pattern.permute.xlu0 33
        %689 = vperm.xlu0 %688, %v597
        %v690 = vpop.permute.xlu0 %689
        %693 = vset.pattern.permute.xlu0 33
        %694 = vperm.xlu0 %693, %v600
        %v695 = vpop.permute.xlu0 %694
        %698 = vset.pattern.permute.xlu0 33
        %699 = vperm.xlu0 %698, %v602
        %v700 = vpop.permute.xlu0 %699
        %703 = vset.pattern.permute.xlu0 33
        %704 = vperm.xlu0 %703, %v605
        %v705 = vpop.permute.xlu0 %704
        %708 = vset.pattern.permute.xlu0 33
        %709 = vperm.xlu0 %708, %v607
        %v710 = vpop.permute.xlu0 %709
        %713 = vset.pattern.permute.xlu0 33
        %714 = vperm.xlu0 %713, %v610
        %v715 = vpop.permute.xlu0 %714
        %718 = vset.pattern.permute.xlu0 33
        %719 = vperm.xlu0 %718, %v612
        %v720 = vpop.permute.xlu0 %719
        %723 = vset.pattern.permute.xlu0 33
        %724 = vperm.xlu0 %723, %v615
        %v725 = vpop.permute.xlu0 %724
        %728 = vset.pattern.permute.xlu0 33
        %729 = vperm.xlu0 %728, %v617
        %v730 = vpop.permute.xlu0 %729
        %733 = vset.pattern.permute.xlu0 33
        %734 = vperm.xlu0 %733, %v620
        %v735 = vpop.permute.xlu0 %734
        %738 = vset.pattern.permute.xlu0 33
        %739 = vperm.xlu0 %738, %v622
        %v740 = vpop.permute.xlu0 %739
        %743 = vset.pattern.permute.xlu0 33
        %744 = vperm.xlu0 %743, %v625
        %v745 = vpop.permute.xlu0 %744
        %748 = vset.pattern.permute.xlu0 33
        %749 = vperm.xlu0 %748, %v627
        %v750 = vpop.permute.xlu0 %749
        %753 = vset.pattern.permute.xlu0 33
        %754 = vperm.xlu0 %753, %v630
        %v755 = vpop.permute.xlu0 %754
        %758 = vset.pattern.permute.xlu0 33
        %759 = vperm.xlu0 %758, %v632
        %v760 = vpop.permute.xlu0 %759
        %v762 = vperm.slane %v679, 0
        %v763 = vadd.f32 %v685, %v762
        %v764 = vadd.f32 %v690, %v762
        %v765 = vadd.f32 %v695, %v762
        %v766 = vadd.f32 %v700, %v762
        %v767 = vadd.f32 %v705, %v762
        %v768 = vadd.f32 %v710, %v762
        %v769 = vadd.f32 %v715, %v762
        %v770 = vadd.f32 %v720, %v762
        %v771 = vadd.f32 %v725, %v762
        %v772 = vadd.f32 %v730, %v762
        %v773 = vadd.f32 %v735, %v762
        %v774 = vadd.f32 %v740, %v762
        %v775 = vadd.f32 %v745, %v762
        %v776 = vadd.f32 %v750, %v762
        %v777 = vadd.f32 %v755, %v762
        %v778 = vadd.f32 %v760, %v762
        %v779 = vmul.f32 %v763, 0.2
        %v780 = vmul.f32 %v764, 0.2
        %v781 = vmul.f32 %v765, 0.2
        %v782 = vmul.f32 %v766, 0.2
        %v783 = vmul.f32 %v767, 0.2
        %v784 = vmul.f32 %v768, 0.2
        %v785 = vmul.f32 %v769, 0.2
        %v786 = vmul.f32 %v770, 0.2
        %v787 = vmul.f32 %v771, 0.2
        %v788 = vmul.f32 %v772, 0.2
        %v789 = vmul.f32 %v773, 0.2
        %v790 = vmul.f32 %v774, 0.2
        %v791 = vmul.f32 %v775, 0.2
        %v792 = vmul.f32 %v776, 0.2
        %v793 = vmul.f32 %v777, 0.2
        %v794 = vmul.f32 %v778, 0.2
        %v795 = vmax.f32 %v763, %v779
        %v796 = vmax.f32 %v764, %v780
        %v797 = vmax.f32 %v765, %v781
        %v798 = vmax.f32 %v766, %v782
        %v799 = vmax.f32 %v767, %v783
        %v800 = vmax.f32 %v768, %v784
        %v801 = vmax.f32 %v769, %v785
        %v802 = vmax.f32 %v770, %v786
        %v803 = vmax.f32 %v771, %v787
        %v804 = vmax.f32 %v772, %v788
        %v805 = vmax.f32 %v773, %v789
        %v806 = vmax.f32 %v774, %v790
        %v807 = vmax.f32 %v775, %v791
        %v808 = vmax.f32 %v776, %v792
        %v809 = vmax.f32 %v777, %v793
        %v810 = vmax.f32 %v778, %v794
        %v811 = vadd.f32 %v795, %v488
        %v812 = vadd.f32 %v796, %v489
        %v813 = vadd.f32 %v797, %v490
        %v814 = vadd.f32 %v798, %v491
        %v815 = vadd.f32 %v799, %v492
        %v816 = vadd.f32 %v800, %v493
        %v817 = vadd.f32 %v801, %v494
        %v818 = vadd.f32 %v802, %v495
        %v819 = vadd.f32 %v803, %v496
        %v820 = vadd.f32 %v804, %v497
        %v821 = vadd.f32 %v805, %v498
        %v822 = vadd.f32 %v806, %v499
        %v823 = vadd.f32 %v807, %v500
        %v824 = vadd.f32 %v808, %v501
        %v825 = vadd.f32 %v809, %v502
        %v826 = vadd.f32 %v810, %v503
        %827 = vmax.xlane.f32.xlu0 %v811
        %v828 = vpop.xlane.xlu0 %827
        %829 = vmax.xlane.f32.xlu0 %v812
        %v830 = vpop.xlane.xlu0 %829
        %831 = vmax.xlane.f32.xlu0 %v813
        %v832 = vpop.xlane.xlu0 %831
        %833 = vmax.xlane.f32.xlu0 %v814
        %v834 = vpop.xlane.xlu0 %833
        %835 = vmax.xlane.f32.xlu0 %v815
        %v836 = vpop.xlane.xlu0 %835
        %837 = vmax.xlane.f32.xlu0 %v816
        %v838 = vpop.xlane.xlu0 %837
        %839 = vmax.xlane.f32.xlu0 %v817
        %v840 = vpop.xlane.xlu0 %839
        %841 = vmax.xlane.f32.xlu0 %v818
        %v842 = vpop.xlane.xlu0 %841
        %843 = vmax.xlane.f32.xlu0 %v819
        %v844 = vpop.xlane.xlu0 %843
        %845 = vmax.xlane.f32.xlu0 %v820
        %v846 = vpop.xlane.xlu0 %845
        %847 = vmax.xlane.f32.xlu0 %v821
        %v848 = vpop.xlane.xlu0 %847
        %849 = vmax.xlane.f32.xlu0 %v822
        %v850 = vpop.xlane.xlu0 %849
        %851 = vmax.xlane.f32.xlu0 %v823
        %v852 = vpop.xlane.xlu0 %851
        %853 = vmax.xlane.f32.xlu0 %v824
        %v854 = vpop.xlane.xlu0 %853
        %855 = vmax.xlane.f32.xlu0 %v825
        %v856 = vpop.xlane.xlu0 %855
        %857 = vmax.xlane.f32.xlu0 %v826
        %v858 = vpop.xlane.xlu0 %857
        %v859 = vsub.f32 %v811, %v828
        %v860 = vsub.f32 %v812, %v830
        %v861 = vsub.f32 %v813, %v832
        %v862 = vsub.f32 %v814, %v834
        %v863 = vsub.f32 %v815, %v836
        %v864 = vsub.f32 %v816, %v838
        %v865 = vsub.f32 %v817, %v840
        %v866 = vsub.f32 %v818, %v842
        %v867 = vsub.f32 %v819, %v844
        %v868 = vsub.f32 %v820, %v846
        %v869 = vsub.f32 %v821, %v848
        %v870 = vsub.f32 %v822, %v850
        %v871 = vsub.f32 %v823, %v852
        %v872 = vsub.f32 %v824, %v854
        %v873 = vsub.f32 %v825, %v856
        %v874 = vsub.f32 %v826, %v858
        %v875 = vmul.f32 %v859, 1.442695
        %v876 = vpow.pop %v875
        %v877 = vmul.f32 %v860, 1.442695
        %v878 = vpow.pop %v877
        %v879 = vmul.f32 %v861, 1.442695
        %v880 = vpow.pop %v879
        %v881 = vmul.f32 %v862, 1.442695
        %v882 = vpow.pop %v881
        %v883 = vmul.f32 %v863, 1.442695
        %v884 = vpow.pop %v883
        %v885 = vmul.f32 %v864, 1.442695
        %v886 = vpow.pop %v885
        %v887 = vmul.f32 %v865, 1.442695
        %v888 = vpow.pop %v887
        %v889 = vmul.f32 %v866, 1.442695
        %v890 = vpow.pop %v889
        %v891 = vmul.f32 %v867, 1.442695
        %v892 = vpow.pop %v891
        %v893 = vmul.f32 %v868, 1.442695
        %v894 = vpow.pop %v893
        %v895 = vmul.f32 %v869, 1.442695
        %v896 = vpow.pop %v895
        %v897 = vmul.f32 %v870, 1.442695
        %v898 = vpow.pop %v897
        %v899 = vmul.f32 %v871, 1.442695
        %v900 = vpow.pop %v899
        %v901 = vmul.f32 %v872, 1.442695
        %v902 = vpow.pop %v901
        %v903 = vmul.f32 %v873, 1.442695
        %v904 = vpow.pop %v903
        %v905 = vmul.f32 %v874, 1.442695
        %v906 = vpow.pop %v905
        %v907 = vpack.c.bf16 %v878, %v876
        %v908 = vpack.c.bf16 %v882, %v880
        %v909 = vpack.c.bf16 %v886, %v884
        %v910 = vpack.c.bf16 %v890, %v888
        %v911 = vpack.c.bf16 %v894, %v892
        %v912 = vpack.c.bf16 %v898, %v896
        %v913 = vpack.c.bf16 %v902, %v900
        %v914 = vpack.c.bf16 %v906, %v904
        %915 = vmatpush.bf16.msra.mxu0 %v641
        %916 = vmatpush.bf16.msra.mxu0 %v640
        %917 = vmatpush.bf16.msra.mxu0 %v639
        %918 = vmatpush.bf16.msra.mxu0 %v638
        %919 = vmatpush.bf16.msra.mxu0 %v637
        %920 = vmatpush.bf16.msra.mxu0 %v636
        %921 = vmatpush.bf16.msra.mxu0 %v635
        %922 = vmatpush.bf16.msra.mxu0 %v634
        %923 = vmatmul.bf16.gmra.mxu0 %v907
        %v924 = vpop.f32.mrf.mxu0
        %v925 = vadd.f32 0.0, %v924
        %v926 = vpop.f32.mrf.mxu0
        %v927 = vadd.f32 0.0, %v926
        %928 = vmatmul.bf16.gmra.mxu0 %v908
        %v929 = vpop.f32.mrf.mxu0
        %v930 = vadd.f32 0.0, %v929
        %v931 = vpop.f32.mrf.mxu0
        %v932 = vadd.f32 0.0, %v931
        %933 = vmatmul.bf16.gmra.mxu0 %v909
        %v934 = vpop.f32.mrf.mxu0
        %v935 = vadd.f32 0.0, %v934
        %v936 = vpop.f32.mrf.mxu0
        %v937 = vadd.f32 0.0, %v936
        %938 = vmatmul.bf16.gmra.mxu0 %v910
        %v939 = vpop.f32.mrf.mxu0
        %v940 = vadd.f32 0.0, %v939
        %v941 = vpop.f32.mrf.mxu0
        %v942 = vadd.f32 0.0, %v941
        %943 = vmatmul.bf16.gmra.mxu0 %v911
        %v944 = vpop.f32.mrf.mxu0
        %v945 = vadd.f32 0.0, %v944
        %v946 = vpop.f32.mrf.mxu0
        %v947 = vadd.f32 0.0, %v946
        %948 = vmatmul.bf16.gmra.mxu0 %v912
        %v949 = vpop.f32.mrf.mxu0
        %v950 = vadd.f32 0.0, %v949
        %v951 = vpop.f32.mrf.mxu0
        %v952 = vadd.f32 0.0, %v951
        %953 = vmatmul.bf16.gmra.mxu0 %v913
        %v954 = vpop.f32.mrf.mxu0
        %v955 = vadd.f32 0.0, %v954
        %v956 = vpop.f32.mrf.mxu0
        %v957 = vadd.f32 0.0, %v956
        %958 = vmatmul.bf16.gmra.mxu0 %v914
        %v959 = vpop.f32.mrf.mxu0
        %v960 = vadd.f32 0.0, %v959
        %v961 = vpop.f32.mrf.mxu0
        %v962 = vadd.f32 0.0, %v961
        %963 = vdwg.mxu0
        %v964 = vrcp.pop %v925
        %v965 = vrcp.pop %v927
        %v966 = vrcp.pop %v930
        %v967 = vrcp.pop %v932
        %v968 = vrcp.pop %v935
        %v969 = vrcp.pop %v937
        %v970 = vrcp.pop %v940
        %v971 = vrcp.pop %v942
        %v972 = vrcp.pop %v945
        %v973 = vrcp.pop %v947
        %v974 = vrcp.pop %v950
        %v975 = vrcp.pop %v952
        %v976 = vrcp.pop %v955
        %v977 = vrcp.pop %v957
        %v978 = vrcp.pop %v960
        %v979 = vrcp.pop %v962
        %981 = vset.pattern.permute.xlu0 32
        %982 = vperm.xlu0 %981, %v964
        %v983 = vpop.permute.xlu0 %982
        %986 = vset.pattern.permute.xlu0 32
        %987 = vperm.xlu0 %986, %v965
        %v988 = vpop.permute.xlu0 %987
        %991 = vset.pattern.permute.xlu0 32
        %992 = vperm.xlu0 %991, %v966
        %v993 = vpop.permute.xlu0 %992
        %996 = vset.pattern.permute.xlu0 32
        %997 = vperm.xlu0 %996, %v967
        %v998 = vpop.permute.xlu0 %997
        %1001 = vset.pattern.permute.xlu0 32
        %1002 = vperm.xlu0 %1001, %v968
        %v1003 = vpop.permute.xlu0 %1002
        %1006 = vset.pattern.permute.xlu0 32
        %1007 = vperm.xlu0 %1006, %v969
        %v1008 = vpop.permute.xlu0 %1007
        %1011 = vset.pattern.permute.xlu0 32
        %1012 = vperm.xlu0 %1011, %v970
        %v1013 = vpop.permute.xlu0 %1012
        %1016 = vset.pattern.permute.xlu0 32
        %1017 = vperm.xlu0 %1016, %v971
        %v1018 = vpop.permute.xlu0 %1017
        %1021 = vset.pattern.permute.xlu0 32
        %1022 = vperm.xlu0 %1021, %v972
        %v1023 = vpop.permute.xlu0 %1022
        %1026 = vset.pattern.permute.xlu0 32
        %1027 = vperm.xlu0 %1026, %v973
        %v1028 = vpop.permute.xlu0 %1027
        %1031 = vset.pattern.permute.xlu0 32
        %1032 = vperm.xlu0 %1031, %v974
        %v1033 = vpop.permute.xlu0 %1032
        %1036 = vset.pattern.permute.xlu0 32
        %1037 = vperm.xlu0 %1036, %v975
        %v1038 = vpop.permute.xlu0 %1037
        %1041 = vset.pattern.permute.xlu0 32
        %1042 = vperm.xlu0 %1041, %v976
        %v1043 = vpop.permute.xlu0 %1042
        %1046 = vset.pattern.permute.xlu0 32
        %1047 = vperm.xlu0 %1046, %v977
        %v1048 = vpop.permute.xlu0 %1047
        %1051 = vset.pattern.permute.xlu0 32
        %1052 = vperm.xlu0 %1051, %v978
        %v1053 = vpop.permute.xlu0 %1052
        %1056 = vset.pattern.permute.xlu0 32
        %1057 = vperm.xlu0 %1056, %v979
        %v1058 = vpop.permute.xlu0 %1057
        %v1060 = vmul.f32 %v925, %v983
        %v1061 = vmul.f32 %v927, %v988
        %v1062 = vmul.f32 %v930, %v993
        %v1063 = vmul.f32 %v932, %v998
        %v1064 = vmul.f32 %v935, %v1003
        %v1065 = vmul.f32 %v937, %v1008
        %v1066 = vmul.f32 %v940, %v1013
        %v1067 = vmul.f32 %v942, %v1018
        %v1068 = vmul.f32 %v945, %v1023
        %v1069 = vmul.f32 %v947, %v1028
        %v1070 = vmul.f32 %v950, %v1033
        %v1071 = vmul.f32 %v952, %v1038
        %v1072 = vmul.f32 %v955, %v1043
        %v1073 = vmul.f32 %v957, %v1048
        %v1074 = vmul.f32 %v960, %v1053
        %v1075 = vmul.f32 %v962, %v1058
        %v1076 = vperm.slane %v530, 0
        %v1077 = vadd.f32 %v1060, %v1076
        %v1078 = vadd.f32 %v1061, %v1076
        %v1079 = vadd.f32 %v1062, %v1076
        %v1080 = vadd.f32 %v1063, %v1076
        %v1081 = vadd.f32 %v1064, %v1076
        %v1082 = vadd.f32 %v1065, %v1076
        %v1083 = vadd.f32 %v1066, %v1076
        %v1084 = vadd.f32 %v1067, %v1076
        %v1085 = vadd.f32 %v1068, %v1076
        %v1086 = vadd.f32 %v1069, %v1076
        %v1087 = vadd.f32 %v1070, %v1076
        %v1088 = vadd.f32 %v1071, %v1076
        %v1089 = vadd.f32 %v1072, %v1076
        %v1090 = vadd.f32 %v1073, %v1076
        %v1091 = vadd.f32 %v1074, %v1076
        %v1092 = vadd.f32 %v1075, %v1076
        %v1093 = vmax.f32 %v1077, 0.0
        %v1094 = vmax.f32 %v1078, 0.0
        %v1095 = vmax.f32 %v1079, 0.0
        %v1096 = vmax.f32 %v1080, 0.0
        %v1097 = vmax.f32 %v1081, 0.0
        %v1098 = vmax.f32 %v1082, 0.0
        %v1099 = vmax.f32 %v1083, 0.0
        %v1100 = vmax.f32 %v1084, 0.0
        %v1101 = vmax.f32 %v1085, 0.0
        %v1102 = vmax.f32 %v1086, 0.0
        %v1103 = vmax.f32 %v1087, 0.0
        %v1104 = vmax.f32 %v1088, 0.0
        %v1105 = vmax.f32 %v1089, 0.0
        %v1106 = vmax.f32 %v1090, 0.0
        %v1107 = vmax.f32 %v1091, 0.0
        %v1108 = vmax.f32 %v1092, 0.0
        %v1109 = vpack.c.bf16 %v1094, %v1093
        %v1110 = vpack.c.bf16 %v1096, %v1095
        %v1111 = vpack.c.bf16 %v1098, %v1097
        %v1112 = vpack.c.bf16 %v1100, %v1099
        %v1113 = vpack.c.bf16 %v1102, %v1101
        %v1114 = vpack.c.bf16 %v1104, %v1103
        %v1115 = vpack.c.bf16 %v1106, %v1105
        %v1116 = vpack.c.bf16 %v1108, %v1107
        %v1122 = vunpack.c.l.b16 %v509
        %v1123 = vunpack.c.l.b16 %v510
        %v1124 = vunpack.c.l.b16 %v511
        %v1125 = vunpack.c.l.b16 %v512
        %v1126 = vunpack.c.l.b16 %v513
        %v1127 = vpack.c.b16 %v1123, %v1122
        %v1128 = vpack.c.b16 %v1125, %v1124
        %v1129 = vpack.c.b16 %v1126, %v1126
        %v1133 = vsel %vm554, %v1109, 0
        %v1136 = vsel %vm554, %v1110, 0
        %v1139 = vsel %vm554, %v1111, 0
        %v1142 = vsel %vm554, %v1112, 0
        %v1145 = vsel %vm554, %v1113, 0
        %v1148 = vsel %vm554, %v1114, 0
        %v1151 = vsel %vm554, %v1115, 0
        %v1154 = vsel %vm554, %v1116, 0
        %v1157 = vand.u32 %v1129, %v581
        %1159 = vmatpush.bf16.msra.mxu0 0
        %1160 = vmatpush.bf16.msra.mxu0 0
        %1161 = vmatpush.bf16.msra.mxu0 0
        %1162 = vmatpush.bf16.msra.mxu0 0
        %1163 = vmatpush.bf16.msra.mxu0 0
        %1164 = vmatpush.bf16.msra.mxu0 %v1157
        %1165 = vmatpush.bf16.msra.mxu0 %v1128
        %1166 = vmatpush.bf16.msra.mxu0 %v1127
        %1167 = vmatmul.bf16.gmra.mxu0 %v1133
        %v1168 = vpop.f32.mrf.mxu0
        %v1169 = vadd.f32 0.0, %v1168
        %v1170 = vpop.f32.mrf.mxu0
        %v1171 = vadd.f32 0.0, %v1170
        %1172 = vmatmul.bf16.gmra.mxu0 %v1136
        %v1173 = vpop.f32.mrf.mxu0
        %v1174 = vadd.f32 0.0, %v1173
        %v1175 = vpop.f32.mrf.mxu0
        %v1176 = vadd.f32 0.0, %v1175
        %1177 = vmatmul.bf16.gmra.mxu0 %v1139
        %v1178 = vpop.f32.mrf.mxu0
        %v1179 = vadd.f32 0.0, %v1178
        %v1180 = vpop.f32.mrf.mxu0
        %v1181 = vadd.f32 0.0, %v1180
        %1182 = vmatmul.bf16.gmra.mxu0 %v1142
        %v1183 = vpop.f32.mrf.mxu0
        %v1184 = vadd.f32 0.0, %v1183
        %v1185 = vpop.f32.mrf.mxu0
        %v1186 = vadd.f32 0.0, %v1185
        %1187 = vmatmul.bf16.gmra.mxu0 %v1145
        %v1188 = vpop.f32.mrf.mxu0
        %v1189 = vadd.f32 0.0, %v1188
        %v1190 = vpop.f32.mrf.mxu0
        %v1191 = vadd.f32 0.0, %v1190
        %1192 = vmatmul.bf16.gmra.mxu0 %v1148
        %v1193 = vpop.f32.mrf.mxu0
        %v1194 = vadd.f32 0.0, %v1193
        %v1195 = vpop.f32.mrf.mxu0
        %v1196 = vadd.f32 0.0, %v1195
        %1197 = vmatmul.bf16.gmra.mxu0 %v1151
        %v1198 = vpop.f32.mrf.mxu0
        %v1199 = vadd.f32 0.0, %v1198
        %v1200 = vpop.f32.mrf.mxu0
        %v1201 = vadd.f32 0.0, %v1200
        %1202 = vmatmul.bf16.gmra.mxu0 %v1154
        %v1203 = vpop.f32.mrf.mxu0
        %v1204 = vadd.f32 0.0, %v1203
        %v1205 = vpop.f32.mrf.mxu0
        %v1206 = vadd.f32 0.0, %v1205
        %1207 = vdwg.mxu0
        %v1208 = vpack.c.bf16 %v1171, %v1169
        %v1209 = vpack.c.bf16 %v1176, %v1174
        %v1210 = vpack.c.bf16 %v1181, %v1179
        %v1211 = vpack.c.bf16 %v1186, %v1184
        %v1212 = vpack.c.bf16 %v1191, %v1189
        %v1213 = vpack.c.bf16 %v1196, %v1194
        %v1214 = vpack.c.bf16 %v1201, %v1199
        %v1215 = vpack.c.bf16 %v1206, %v1204
        %v1217 = vunpack.c.l.b16 %v529
        %v1218 = vpack.c.b16 %v1217, %v1217
        %v1220 = vshrl.u32 %v1218, 16
        %v1223 = vsel %vm554, %v1220, 0
        %v1226 = vsel %vm554, %v1208, 0
        %v1229 = vsel %vm554, %v1209, 0
        %v1232 = vsel %vm554, %v1210, 0
        %v1235 = vsel %vm554, %v1211, 0
        %v1238 = vsel %vm554, %v1212, 0
        %v1241 = vsel %vm554, %v1213, 0
        %v1244 = vsel %vm554, %v1214, 0
        %v1247 = vsel %vm554, %v1215, 0
        %1249 = vmatpush.bf16.xpose.msra.mxu0 %v1247
        %1250 = vmatpush.bf16.xpose.msra.mxu0 %v1244
        %1251 = vmatpush.bf16.xpose.msra.mxu0 %v1241
        %1252 = vmatpush.bf16.xpose.msra.mxu0 %v1238
        %1253 = vmatpush.bf16.xpose.msra.mxu0 %v1235
        %1254 = vmatpush.bf16.xpose.msra.mxu0 %v1232
        %1255 = vmatpush.bf16.xpose.msra.mxu0 %v1229
        %1256 = vmatpush.bf16.xpose.msra.mxu0 %v1226
        %1257 = vmatmul.bf16.gmra.mxu0 %v1223
        %v1258 = vpop.f32.mrf.mxu0
        %v1259 = vadd.f32 0.0, %v1258
        %v1260 = vpop.f32.mrf.mxu0
        %1261 = vdwg.mxu0
        %1263 = vset.pattern.permute.xlu0 33
        %1264 = vperm.xlu0 %1263, %v1169
        %v1265 = vpop.permute.xlu0 %1264
        %1268 = vset.pattern.permute.xlu0 33
        %1269 = vperm.xlu0 %1268, %v1171
        %v1270 = vpop.permute.xlu0 %1269
        %1273 = vset.pattern.permute.xlu0 33
        %1274 = vperm.xlu0 %1273, %v1174
        %v1275 = vpop.permute.xlu0 %1274
        %1278 = vset.pattern.permute.xlu0 33
        %1279 = vperm.xlu0 %1278, %v1176
        %v1280 = vpop.permute.xlu0 %1279
        %1283 = vset.pattern.permute.xlu0 33
        %1284 = vperm.xlu0 %1283, %v1179
        %v1285 = vpop.permute.xlu0 %1284
        %1288 = vset.pattern.permute.xlu0 33
        %1289 = vperm.xlu0 %1288, %v1181
        %v1290 = vpop.permute.xlu0 %1289
        %1293 = vset.pattern.permute.xlu0 33
        %1294 = vperm.xlu0 %1293, %v1184
        %v1295 = vpop.permute.xlu0 %1294
        %1298 = vset.pattern.permute.xlu0 33
        %1299 = vperm.xlu0 %1298, %v1186
        %v1300 = vpop.permute.xlu0 %1299
        %1303 = vset.pattern.permute.xlu0 33
        %1304 = vperm.xlu0 %1303, %v1189
        %v1305 = vpop.permute.xlu0 %1304
        %1308 = vset.pattern.permute.xlu0 33
        %1309 = vperm.xlu0 %1308, %v1191
        %v1310 = vpop.permute.xlu0 %1309
        %1313 = vset.pattern.permute.xlu0 33
        %1314 = vperm.xlu0 %1313, %v1194
        %v1315 = vpop.permute.xlu0 %1314
        %1318 = vset.pattern.permute.xlu0 33
        %1319 = vperm.xlu0 %1318, %v1196
        %v1320 = vpop.permute.xlu0 %1319
        %1323 = vset.pattern.permute.xlu0 33
        %1324 = vperm.xlu0 %1323, %v1199
        %v1325 = vpop.permute.xlu0 %1324
        %1328 = vset.pattern.permute.xlu0 33
        %1329 = vperm.xlu0 %1328, %v1201
        %v1330 = vpop.permute.xlu0 %1329
        %1333 = vset.pattern.permute.xlu0 33
        %1334 = vperm.xlu0 %1333, %v1204
        %v1335 = vpop.permute.xlu0 %1334
        %1338 = vset.pattern.permute.xlu0 33
        %1339 = vperm.xlu0 %1338, %v1206
        %v1340 = vpop.permute.xlu0 %1339
        %v1342 = vperm.slane %v1259, 0
        %v1343 = vadd.f32 %v1265, %v1342
        %v1344 = vadd.f32 %v1270, %v1342
        %v1345 = vadd.f32 %v1275, %v1342
        %v1346 = vadd.f32 %v1280, %v1342
        %v1347 = vadd.f32 %v1285, %v1342
        %v1348 = vadd.f32 %v1290, %v1342
        %v1349 = vadd.f32 %v1295, %v1342
        %v1350 = vadd.f32 %v1300, %v1342
        %v1351 = vadd.f32 %v1305, %v1342
        %v1352 = vadd.f32 %v1310, %v1342
        %v1353 = vadd.f32 %v1315, %v1342
        %v1354 = vadd.f32 %v1320, %v1342
        %v1355 = vadd.f32 %v1325, %v1342
        %v1356 = vadd.f32 %v1330, %v1342
        %v1357 = vadd.f32 %v1335, %v1342
        %v1358 = vadd.f32 %v1340, %v1342
        %v1359 = vmul.f32 %v1343, 0.2
        %v1360 = vmul.f32 %v1344, 0.2
        %v1361 = vmul.f32 %v1345, 0.2
        %v1362 = vmul.f32 %v1346, 0.2
        %v1363 = vmul.f32 %v1347, 0.2
        %v1364 = vmul.f32 %v1348, 0.2
        %v1365 = vmul.f32 %v1349, 0.2
        %v1366 = vmul.f32 %v1350, 0.2
        %v1367 = vmul.f32 %v1351, 0.2
        %v1368 = vmul.f32 %v1352, 0.2
        %v1369 = vmul.f32 %v1353, 0.2
        %v1370 = vmul.f32 %v1354, 0.2
        %v1371 = vmul.f32 %v1355, 0.2
        %v1372 = vmul.f32 %v1356, 0.2
        %v1373 = vmul.f32 %v1357, 0.2
        %v1374 = vmul.f32 %v1358, 0.2
        %v1375 = vmax.f32 %v1343, %v1359
        %v1376 = vmax.f32 %v1344, %v1360
        %v1377 = vmax.f32 %v1345, %v1361
        %v1378 = vmax.f32 %v1346, %v1362
        %v1379 = vmax.f32 %v1347, %v1363
        %v1380 = vmax.f32 %v1348, %v1364
        %v1381 = vmax.f32 %v1349, %v1365
        %v1382 = vmax.f32 %v1350, %v1366
        %v1383 = vmax.f32 %v1351, %v1367
        %v1384 = vmax.f32 %v1352, %v1368
        %v1385 = vmax.f32 %v1353, %v1369
        %v1386 = vmax.f32 %v1354, %v1370
        %v1387 = vmax.f32 %v1355, %v1371
        %v1388 = vmax.f32 %v1356, %v1372
        %v1389 = vmax.f32 %v1357, %v1373
        %v1390 = vmax.f32 %v1358, %v1374
        %v1391 = vadd.f32 %v1375, %v488
        %v1392 = vadd.f32 %v1376, %v489
        %v1393 = vadd.f32 %v1377, %v490
        %v1394 = vadd.f32 %v1378, %v491
        %v1395 = vadd.f32 %v1379, %v492
        %v1396 = vadd.f32 %v1380, %v493
        %v1397 = vadd.f32 %v1381, %v494
        %v1398 = vadd.f32 %v1382, %v495
        %v1399 = vadd.f32 %v1383, %v496
        %v1400 = vadd.f32 %v1384, %v497
        %v1401 = vadd.f32 %v1385, %v498
        %v1402 = vadd.f32 %v1386, %v499
        %v1403 = vadd.f32 %v1387, %v500
        %v1404 = vadd.f32 %v1388, %v501
        %v1405 = vadd.f32 %v1389, %v502
        %v1406 = vadd.f32 %v1390, %v503
        %1407 = vmax.xlane.f32.xlu0 %v1391
        %v1408 = vpop.xlane.xlu0 %1407
        %1409 = vmax.xlane.f32.xlu0 %v1392
        %v1410 = vpop.xlane.xlu0 %1409
        %1411 = vmax.xlane.f32.xlu0 %v1393
        %v1412 = vpop.xlane.xlu0 %1411
        %1413 = vmax.xlane.f32.xlu0 %v1394
        %v1414 = vpop.xlane.xlu0 %1413
        %1415 = vmax.xlane.f32.xlu0 %v1395
        %v1416 = vpop.xlane.xlu0 %1415
        %1417 = vmax.xlane.f32.xlu0 %v1396
        %v1418 = vpop.xlane.xlu0 %1417
        %1419 = vmax.xlane.f32.xlu0 %v1397
        %v1420 = vpop.xlane.xlu0 %1419
        %1421 = vmax.xlane.f32.xlu0 %v1398
        %v1422 = vpop.xlane.xlu0 %1421
        %1423 = vmax.xlane.f32.xlu0 %v1399
        %v1424 = vpop.xlane.xlu0 %1423
        %1425 = vmax.xlane.f32.xlu0 %v1400
        %v1426 = vpop.xlane.xlu0 %1425
        %1427 = vmax.xlane.f32.xlu0 %v1401
        %v1428 = vpop.xlane.xlu0 %1427
        %1429 = vmax.xlane.f32.xlu0 %v1402
        %v1430 = vpop.xlane.xlu0 %1429
        %1431 = vmax.xlane.f32.xlu0 %v1403
        %v1432 = vpop.xlane.xlu0 %1431
        %1433 = vmax.xlane.f32.xlu0 %v1404
        %v1434 = vpop.xlane.xlu0 %1433
        %1435 = vmax.xlane.f32.xlu0 %v1405
        %v1436 = vpop.xlane.xlu0 %1435
        %1437 = vmax.xlane.f32.xlu0 %v1406
        %v1438 = vpop.xlane.xlu0 %1437
        %v1439 = vsub.f32 %v1391, %v1408
        %v1440 = vsub.f32 %v1392, %v1410
        %v1441 = vsub.f32 %v1393, %v1412
        %v1442 = vsub.f32 %v1394, %v1414
        %v1443 = vsub.f32 %v1395, %v1416
        %v1444 = vsub.f32 %v1396, %v1418
        %v1445 = vsub.f32 %v1397, %v1420
        %v1446 = vsub.f32 %v1398, %v1422
        %v1447 = vsub.f32 %v1399, %v1424
        %v1448 = vsub.f32 %v1400, %v1426
        %v1449 = vsub.f32 %v1401, %v1428
        %v1450 = vsub.f32 %v1402, %v1430
        %v1451 = vsub.f32 %v1403, %v1432
        %v1452 = vsub.f32 %v1404, %v1434
        %v1453 = vsub.f32 %v1405, %v1436
        %v1454 = vsub.f32 %v1406, %v1438
        %v1455 = vmul.f32 %v1439, 1.442695
        %v1456 = vpow.pop %v1455
        %v1457 = vmul.f32 %v1440, 1.442695
        %v1458 = vpow.pop %v1457
        %v1459 = vmul.f32 %v1441, 1.442695
        %v1460 = vpow.pop %v1459
        %v1461 = vmul.f32 %v1442, 1.442695
        %v1462 = vpow.pop %v1461
        %v1463 = vmul.f32 %v1443, 1.442695
        %v1464 = vpow.pop %v1463
        %v1465 = vmul.f32 %v1444, 1.442695
        %v1466 = vpow.pop %v1465
        %v1467 = vmul.f32 %v1445, 1.442695
        %v1468 = vpow.pop %v1467
        %v1469 = vmul.f32 %v1446, 1.442695
        %v1470 = vpow.pop %v1469
        %v1471 = vmul.f32 %v1447, 1.442695
        %v1472 = vpow.pop %v1471
        %v1473 = vmul.f32 %v1448, 1.442695
        %v1474 = vpow.pop %v1473
        %v1475 = vmul.f32 %v1449, 1.442695
        %v1476 = vpow.pop %v1475
        %v1477 = vmul.f32 %v1450, 1.442695
        %v1478 = vpow.pop %v1477
        %v1479 = vmul.f32 %v1451, 1.442695
        %v1480 = vpow.pop %v1479
        %v1481 = vmul.f32 %v1452, 1.442695
        %v1482 = vpow.pop %v1481
        %v1483 = vmul.f32 %v1453, 1.442695
        %v1484 = vpow.pop %v1483
        %v1485 = vmul.f32 %v1454, 1.442695
        %v1486 = vpow.pop %v1485
        %v1487 = vpack.c.bf16 %v1458, %v1456
        %v1488 = vpack.c.bf16 %v1462, %v1460
        %v1489 = vpack.c.bf16 %v1466, %v1464
        %v1490 = vpack.c.bf16 %v1470, %v1468
        %v1491 = vpack.c.bf16 %v1474, %v1472
        %v1492 = vpack.c.bf16 %v1478, %v1476
        %v1493 = vpack.c.bf16 %v1482, %v1480
        %v1494 = vpack.c.bf16 %v1486, %v1484
        %1495 = vmatpush.bf16.msra.mxu0 %v1215
        %1496 = vmatpush.bf16.msra.mxu0 %v1214
        %1497 = vmatpush.bf16.msra.mxu0 %v1213
        %1498 = vmatpush.bf16.msra.mxu0 %v1212
        %1499 = vmatpush.bf16.msra.mxu0 %v1211
        %1500 = vmatpush.bf16.msra.mxu0 %v1210
        %1501 = vmatpush.bf16.msra.mxu0 %v1209
        %1502 = vmatpush.bf16.msra.mxu0 %v1208
        %1503 = vmatmul.bf16.gmra.mxu0 %v1487
        %v1504 = vpop.f32.mrf.mxu0
        %v1505 = vadd.f32 0.0, %v1504
        %v1506 = vpop.f32.mrf.mxu0
        %v1507 = vadd.f32 0.0, %v1506
        %1508 = vmatmul.bf16.gmra.mxu0 %v1488
        %v1509 = vpop.f32.mrf.mxu0
        %v1510 = vadd.f32 0.0, %v1509
        %v1511 = vpop.f32.mrf.mxu0
        %v1512 = vadd.f32 0.0, %v1511
        %1513 = vmatmul.bf16.gmra.mxu0 %v1489
        %v1514 = vpop.f32.mrf.mxu0
        %v1515 = vadd.f32 0.0, %v1514
        %v1516 = vpop.f32.mrf.mxu0
        %v1517 = vadd.f32 0.0, %v1516
        %1518 = vmatmul.bf16.gmra.mxu0 %v1490
        %v1519 = vpop.f32.mrf.mxu0
        %v1520 = vadd.f32 0.0, %v1519
        %v1521 = vpop.f32.mrf.mxu0
        %v1522 = vadd.f32 0.0, %v1521
        %1523 = vmatmul.bf16.gmra.mxu0 %v1491
        %v1524 = vpop.f32.mrf.mxu0
        %v1525 = vadd.f32 0.0, %v1524
        %v1526 = vpop.f32.mrf.mxu0
        %v1527 = vadd.f32 0.0, %v1526
        %1528 = vmatmul.bf16.gmra.mxu0 %v1492
        %v1529 = vpop.f32.mrf.mxu0
        %v1530 = vadd.f32 0.0, %v1529
        %v1531 = vpop.f32.mrf.mxu0
        %v1532 = vadd.f32 0.0, %v1531
        %1533 = vmatmul.bf16.gmra.mxu0 %v1493
        %v1534 = vpop.f32.mrf.mxu0
        %v1535 = vadd.f32 0.0, %v1534
        %v1536 = vpop.f32.mrf.mxu0
        %v1537 = vadd.f32 0.0, %v1536
        %1538 = vmatmul.bf16.gmra.mxu0 %v1494
        %v1539 = vpop.f32.mrf.mxu0
        %v1540 = vadd.f32 0.0, %v1539
        %v1541 = vpop.f32.mrf.mxu0
        %v1542 = vadd.f32 0.0, %v1541
        %1543 = vdwg.mxu0
        %v1544 = vrcp.pop %v1505
        %v1545 = vrcp.pop %v1507
        %v1546 = vrcp.pop %v1510
        %v1547 = vrcp.pop %v1512
        %v1548 = vrcp.pop %v1515
        %v1549 = vrcp.pop %v1517
        %v1550 = vrcp.pop %v1520
        %v1551 = vrcp.pop %v1522
        %v1552 = vrcp.pop %v1525
        %v1553 = vrcp.pop %v1527
        %v1554 = vrcp.pop %v1530
        %v1555 = vrcp.pop %v1532
        %v1556 = vrcp.pop %v1535
        %v1557 = vrcp.pop %v1537
        %v1558 = vrcp.pop %v1540
        %v1559 = vrcp.pop %v1542
        %1561 = vset.pattern.permute.xlu0 32
        %1562 = vperm.xlu0 %1561, %v1544
        %v1563 = vpop.permute.xlu0 %1562
        %1566 = vset.pattern.permute.xlu0 32
        %1567 = vperm.xlu0 %1566, %v1545
        %v1568 = vpop.permute.xlu0 %1567
        %1571 = vset.pattern.permute.xlu0 32
        %1572 = vperm.xlu0 %1571, %v1546
        %v1573 = vpop.permute.xlu0 %1572
        %1576 = vset.pattern.permute.xlu0 32
        %1577 = vperm.xlu0 %1576, %v1547
        %v1578 = vpop.permute.xlu0 %1577
        %1581 = vset.pattern.permute.xlu0 32
        %1582 = vperm.xlu0 %1581, %v1548
        %v1583 = vpop.permute.xlu0 %1582
        %1586 = vset.pattern.permute.xlu0 32
        %1587 = vperm.xlu0 %1586, %v1549
        %v1588 = vpop.permute.xlu0 %1587
        %1591 = vset.pattern.permute.xlu0 32
        %1592 = vperm.xlu0 %1591, %v1550
        %v1593 = vpop.permute.xlu0 %1592
        %1596 = vset.pattern.permute.xlu0 32
        %1597 = vperm.xlu0 %1596, %v1551
        %v1598 = vpop.permute.xlu0 %1597
        %1601 = vset.pattern.permute.xlu0 32
        %1602 = vperm.xlu0 %1601, %v1552
        %v1603 = vpop.permute.xlu0 %1602
        %1606 = vset.pattern.permute.xlu0 32
        %1607 = vperm.xlu0 %1606, %v1553
        %v1608 = vpop.permute.xlu0 %1607
        %1611 = vset.pattern.permute.xlu0 32
        %1612 = vperm.xlu0 %1611, %v1554
        %v1613 = vpop.permute.xlu0 %1612
        %1616 = vset.pattern.permute.xlu0 32
        %1617 = vperm.xlu0 %1616, %v1555
        %v1618 = vpop.permute.xlu0 %1617
        %1621 = vset.pattern.permute.xlu0 32
        %1622 = vperm.xlu0 %1621, %v1556
        %v1623 = vpop.permute.xlu0 %1622
        %1626 = vset.pattern.permute.xlu0 32
        %1627 = vperm.xlu0 %1626, %v1557
        %v1628 = vpop.permute.xlu0 %1627
        %1631 = vset.pattern.permute.xlu0 32
        %1632 = vperm.xlu0 %1631, %v1558
        %v1633 = vpop.permute.xlu0 %1632
        %1636 = vset.pattern.permute.xlu0 32
        %1637 = vperm.xlu0 %1636, %v1559
        %v1638 = vpop.permute.xlu0 %1637
        %v1640 = vmul.f32 %v1505, %v1563
        %v1641 = vmul.f32 %v1507, %v1568
        %v1642 = vmul.f32 %v1510, %v1573
        %v1643 = vmul.f32 %v1512, %v1578
        %v1644 = vmul.f32 %v1515, %v1583
        %v1645 = vmul.f32 %v1517, %v1588
        %v1646 = vmul.f32 %v1520, %v1593
        %v1647 = vmul.f32 %v1522, %v1598
        %v1648 = vmul.f32 %v1525, %v1603
        %v1649 = vmul.f32 %v1527, %v1608
        %v1650 = vmul.f32 %v1530, %v1613
        %v1651 = vmul.f32 %v1532, %v1618
        %v1652 = vmul.f32 %v1535, %v1623
        %v1653 = vmul.f32 %v1537, %v1628
        %v1654 = vmul.f32 %v1540, %v1633
        %v1655 = vmul.f32 %v1542, %v1638
        %v1656 = vperm.slane %v530, 1
        %v1657 = vadd.f32 %v1640, %v1656
        %v1658 = vadd.f32 %v1641, %v1656
        %v1659 = vadd.f32 %v1642, %v1656
        %v1660 = vadd.f32 %v1643, %v1656
        %v1661 = vadd.f32 %v1644, %v1656
        %v1662 = vadd.f32 %v1645, %v1656
        %v1663 = vadd.f32 %v1646, %v1656
        %v1664 = vadd.f32 %v1647, %v1656
        %v1665 = vadd.f32 %v1648, %v1656
        %v1666 = vadd.f32 %v1649, %v1656
        %v1667 = vadd.f32 %v1650, %v1656
        %v1668 = vadd.f32 %v1651, %v1656
        %v1669 = vadd.f32 %v1652, %v1656
        %v1670 = vadd.f32 %v1653, %v1656
        %v1671 = vadd.f32 %v1654, %v1656
        %v1672 = vadd.f32 %v1655, %v1656
        %v1673 = vmax.f32 %v1657, 0.0
        %v1674 = vmax.f32 %v1658, 0.0
        %v1675 = vmax.f32 %v1659, 0.0
        %v1676 = vmax.f32 %v1660, 0.0
        %v1677 = vmax.f32 %v1661, 0.0
        %v1678 = vmax.f32 %v1662, 0.0
        %v1679 = vmax.f32 %v1663, 0.0
        %v1680 = vmax.f32 %v1664, 0.0
        %v1681 = vmax.f32 %v1665, 0.0
        %v1682 = vmax.f32 %v1666, 0.0
        %v1683 = vmax.f32 %v1667, 0.0
        %v1684 = vmax.f32 %v1668, 0.0
        %v1685 = vmax.f32 %v1669, 0.0
        %v1686 = vmax.f32 %v1670, 0.0
        %v1687 = vmax.f32 %v1671, 0.0
        %v1688 = vmax.f32 %v1672, 0.0
        %v1689 = vpack.c.bf16 %v1674, %v1673
        %v1690 = vpack.c.bf16 %v1676, %v1675
        %v1691 = vpack.c.bf16 %v1678, %v1677
        %v1692 = vpack.c.bf16 %v1680, %v1679
        %v1693 = vpack.c.bf16 %v1682, %v1681
        %v1694 = vpack.c.bf16 %v1684, %v1683
        %v1695 = vpack.c.bf16 %v1686, %v1685
        %v1696 = vpack.c.bf16 %v1688, %v1687
        %v1702 = vunpack.c.l.b16 %v514
        %v1703 = vunpack.c.l.b16 %v515
        %v1704 = vunpack.c.l.b16 %v516
        %v1705 = vunpack.c.l.b16 %v517
        %v1706 = vunpack.c.l.b16 %v518
        %v1707 = vpack.c.b16 %v1703, %v1702
        %v1708 = vpack.c.b16 %v1705, %v1704
        %v1709 = vpack.c.b16 %v1706, %v1706
        %v1713 = vsel %vm554, %v1689, 0
        %v1716 = vsel %vm554, %v1690, 0
        %v1719 = vsel %vm554, %v1691, 0
        %v1722 = vsel %vm554, %v1692, 0
        %v1725 = vsel %vm554, %v1693, 0
        %v1728 = vsel %vm554, %v1694, 0
        %v1731 = vsel %vm554, %v1695, 0
        %v1734 = vsel %vm554, %v1696, 0
        %v1737 = vand.u32 %v1709, %v581
        %1739 = vmatpush.bf16.msra.mxu0 0
        %1740 = vmatpush.bf16.msra.mxu0 0
        %1741 = vmatpush.bf16.msra.mxu0 0
        %1742 = vmatpush.bf16.msra.mxu0 0
        %1743 = vmatpush.bf16.msra.mxu0 0
        %1744 = vmatpush.bf16.msra.mxu0 %v1737
        %1745 = vmatpush.bf16.msra.mxu0 %v1708
        %1746 = vmatpush.bf16.msra.mxu0 %v1707
        %1747 = vmatmul.bf16.gmra.mxu0 %v1713
        %v1748 = vpop.f32.mrf.mxu0
        %v1749 = vadd.f32 0.0, %v1748
        %v1750 = vpop.f32.mrf.mxu0
        %v1751 = vadd.f32 0.0, %v1750
        %1752 = vmatmul.bf16.gmra.mxu0 %v1716
        %v1753 = vpop.f32.mrf.mxu0
        %v1754 = vadd.f32 0.0, %v1753
        %v1755 = vpop.f32.mrf.mxu0
        %v1756 = vadd.f32 0.0, %v1755
        %1757 = vmatmul.bf16.gmra.mxu0 %v1719
        %v1758 = vpop.f32.mrf.mxu0
        %v1759 = vadd.f32 0.0, %v1758
        %v1760 = vpop.f32.mrf.mxu0
        %v1761 = vadd.f32 0.0, %v1760
        %1762 = vmatmul.bf16.gmra.mxu0 %v1722
        %v1763 = vpop.f32.mrf.mxu0
        %v1764 = vadd.f32 0.0, %v1763
        %v1765 = vpop.f32.mrf.mxu0
        %v1766 = vadd.f32 0.0, %v1765
        %1767 = vmatmul.bf16.gmra.mxu0 %v1725
        %v1768 = vpop.f32.mrf.mxu0
        %v1769 = vadd.f32 0.0, %v1768
        %v1770 = vpop.f32.mrf.mxu0
        %v1771 = vadd.f32 0.0, %v1770
        %1772 = vmatmul.bf16.gmra.mxu0 %v1728
        %v1773 = vpop.f32.mrf.mxu0
        %v1774 = vadd.f32 0.0, %v1773
        %v1775 = vpop.f32.mrf.mxu0
        %v1776 = vadd.f32 0.0, %v1775
        %1777 = vmatmul.bf16.gmra.mxu0 %v1731
        %v1778 = vpop.f32.mrf.mxu0
        %v1779 = vadd.f32 0.0, %v1778
        %v1780 = vpop.f32.mrf.mxu0
        %v1781 = vadd.f32 0.0, %v1780
        %1782 = vmatmul.bf16.gmra.mxu0 %v1734
        %v1783 = vpop.f32.mrf.mxu0
        %v1784 = vadd.f32 0.0, %v1783
        %v1785 = vpop.f32.mrf.mxu0
        %v1786 = vadd.f32 0.0, %v1785
        %1787 = vdwg.mxu0
        %v1788 = vpack.c.bf16 %v1751, %v1749
        %v1789 = vpack.c.bf16 %v1756, %v1754
        %v1790 = vpack.c.bf16 %v1761, %v1759
        %v1791 = vpack.c.bf16 %v1766, %v1764
        %v1792 = vpack.c.bf16 %v1771, %v1769
        %v1793 = vpack.c.bf16 %v1776, %v1774
        %v1794 = vpack.c.bf16 %v1781, %v1779
        %v1795 = vpack.c.bf16 %v1786, %v1784
        %v1796 = vrot.slane %v1218, 1
        %v1798 = vsel %vm554, %v1796, 0
        %v1801 = vsel %vm554, %v1788, 0
        %v1804 = vsel %vm554, %v1789, 0
        %v1807 = vsel %vm554, %v1790, 0
        %v1810 = vsel %vm554, %v1791, 0
        %v1813 = vsel %vm554, %v1792, 0
        %v1816 = vsel %vm554, %v1793, 0
        %v1819 = vsel %vm554, %v1794, 0
        %v1822 = vsel %vm554, %v1795, 0
        %1824 = vmatpush.bf16.xpose.msra.mxu0 %v1822
        %1825 = vmatpush.bf16.xpose.msra.mxu0 %v1819
        %1826 = vmatpush.bf16.xpose.msra.mxu0 %v1816
        %1827 = vmatpush.bf16.xpose.msra.mxu0 %v1813
        %1828 = vmatpush.bf16.xpose.msra.mxu0 %v1810
        %1829 = vmatpush.bf16.xpose.msra.mxu0 %v1807
        %1830 = vmatpush.bf16.xpose.msra.mxu0 %v1804
        %1831 = vmatpush.bf16.xpose.msra.mxu0 %v1801
        %1832 = vmatmul.bf16.gmra.mxu0 %v1798
        %v1833 = vpop.f32.mrf.mxu0
        %v1834 = vadd.f32 0.0, %v1833
        %v1835 = vpop.f32.mrf.mxu0
        %1836 = vdwg.mxu0
        %1838 = vset.pattern.permute.xlu0 33
        %1839 = vperm.xlu0 %1838, %v1749
        %v1840 = vpop.permute.xlu0 %1839
        %1843 = vset.pattern.permute.xlu0 33
        %1844 = vperm.xlu0 %1843, %v1751
        %v1845 = vpop.permute.xlu0 %1844
        %1848 = vset.pattern.permute.xlu0 33
        %1849 = vperm.xlu0 %1848, %v1754
        %v1850 = vpop.permute.xlu0 %1849
        %1853 = vset.pattern.permute.xlu0 33
        %1854 = vperm.xlu0 %1853, %v1756
        %v1855 = vpop.permute.xlu0 %1854
        %1858 = vset.pattern.permute.xlu0 33
        %1859 = vperm.xlu0 %1858, %v1759
        %v1860 = vpop.permute.xlu0 %1859
        %1863 = vset.pattern.permute.xlu0 33
        %1864 = vperm.xlu0 %1863, %v1761
        %v1865 = vpop.permute.xlu0 %1864
        %1868 = vset.pattern.permute.xlu0 33
        %1869 = vperm.xlu0 %1868, %v1764
        %v1870 = vpop.permute.xlu0 %1869
        %1873 = vset.pattern.permute.xlu0 33
        %1874 = vperm.xlu0 %1873, %v1766
        %v1875 = vpop.permute.xlu0 %1874
        %1878 = vset.pattern.permute.xlu0 33
        %1879 = vperm.xlu0 %1878, %v1769
        %v1880 = vpop.permute.xlu0 %1879
        %1883 = vset.pattern.permute.xlu0 33
        %1884 = vperm.xlu0 %1883, %v1771
        %v1885 = vpop.permute.xlu0 %1884
        %1888 = vset.pattern.permute.xlu0 33
        %1889 = vperm.xlu0 %1888, %v1774
        %v1890 = vpop.permute.xlu0 %1889
        %1893 = vset.pattern.permute.xlu0 33
        %1894 = vperm.xlu0 %1893, %v1776
        %v1895 = vpop.permute.xlu0 %1894
        %1898 = vset.pattern.permute.xlu0 33
        %1899 = vperm.xlu0 %1898, %v1779
        %v1900 = vpop.permute.xlu0 %1899
        %1903 = vset.pattern.permute.xlu0 33
        %1904 = vperm.xlu0 %1903, %v1781
        %v1905 = vpop.permute.xlu0 %1904
        %1908 = vset.pattern.permute.xlu0 33
        %1909 = vperm.xlu0 %1908, %v1784
        %v1910 = vpop.permute.xlu0 %1909
        %1913 = vset.pattern.permute.xlu0 33
        %1914 = vperm.xlu0 %1913, %v1786
        %v1915 = vpop.permute.xlu0 %1914
        %v1917 = vperm.slane %v1834, 0
        %v1918 = vadd.f32 %v1840, %v1917
        %v1919 = vadd.f32 %v1845, %v1917
        %v1920 = vadd.f32 %v1850, %v1917
        %v1921 = vadd.f32 %v1855, %v1917
        %v1922 = vadd.f32 %v1860, %v1917
        %v1923 = vadd.f32 %v1865, %v1917
        %v1924 = vadd.f32 %v1870, %v1917
        %v1925 = vadd.f32 %v1875, %v1917
        %v1926 = vadd.f32 %v1880, %v1917
        %v1927 = vadd.f32 %v1885, %v1917
        %v1928 = vadd.f32 %v1890, %v1917
        %v1929 = vadd.f32 %v1895, %v1917
        %v1930 = vadd.f32 %v1900, %v1917
        %v1931 = vadd.f32 %v1905, %v1917
        %v1932 = vadd.f32 %v1910, %v1917
        %v1933 = vadd.f32 %v1915, %v1917
        %v1934 = vmul.f32 %v1918, 0.2
        %v1935 = vmul.f32 %v1919, 0.2
        %v1936 = vmul.f32 %v1920, 0.2
        %v1937 = vmul.f32 %v1921, 0.2
        %v1938 = vmul.f32 %v1922, 0.2
        %v1939 = vmul.f32 %v1923, 0.2
        %v1940 = vmul.f32 %v1924, 0.2
        %v1941 = vmul.f32 %v1925, 0.2
        %v1942 = vmul.f32 %v1926, 0.2
        %v1943 = vmul.f32 %v1927, 0.2
        %v1944 = vmul.f32 %v1928, 0.2
        %v1945 = vmul.f32 %v1929, 0.2
        %v1946 = vmul.f32 %v1930, 0.2
        %v1947 = vmul.f32 %v1931, 0.2
        %v1948 = vmul.f32 %v1932, 0.2
        %v1949 = vmul.f32 %v1933, 0.2
        %v1950 = vmax.f32 %v1918, %v1934
        %v1951 = vmax.f32 %v1919, %v1935
        %v1952 = vmax.f32 %v1920, %v1936
        %v1953 = vmax.f32 %v1921, %v1937
        %v1954 = vmax.f32 %v1922, %v1938
        %v1955 = vmax.f32 %v1923, %v1939
        %v1956 = vmax.f32 %v1924, %v1940
        %v1957 = vmax.f32 %v1925, %v1941
        %v1958 = vmax.f32 %v1926, %v1942
        %v1959 = vmax.f32 %v1927, %v1943
        %v1960 = vmax.f32 %v1928, %v1944
        %v1961 = vmax.f32 %v1929, %v1945
        %v1962 = vmax.f32 %v1930, %v1946
        %v1963 = vmax.f32 %v1931, %v1947
        %v1964 = vmax.f32 %v1932, %v1948
        %v1965 = vmax.f32 %v1933, %v1949
        %v1966 = vadd.f32 %v1950, %v488
        %v1967 = vadd.f32 %v1951, %v489
        %v1968 = vadd.f32 %v1952, %v490
        %v1969 = vadd.f32 %v1953, %v491
        %v1970 = vadd.f32 %v1954, %v492
        %v1971 = vadd.f32 %v1955, %v493
        %v1972 = vadd.f32 %v1956, %v494
        %v1973 = vadd.f32 %v1957, %v495
        %v1974 = vadd.f32 %v1958, %v496
        %v1975 = vadd.f32 %v1959, %v497
        %v1976 = vadd.f32 %v1960, %v498
        %v1977 = vadd.f32 %v1961, %v499
        %v1978 = vadd.f32 %v1962, %v500
        %v1979 = vadd.f32 %v1963, %v501
        %v1980 = vadd.f32 %v1964, %v502
        %v1981 = vadd.f32 %v1965, %v503
        %1982 = vmax.xlane.f32.xlu0 %v1966
        %v1983 = vpop.xlane.xlu0 %1982
        %1984 = vmax.xlane.f32.xlu0 %v1967
        %v1985 = vpop.xlane.xlu0 %1984
        %1986 = vmax.xlane.f32.xlu0 %v1968
        %v1987 = vpop.xlane.xlu0 %1986
        %1988 = vmax.xlane.f32.xlu0 %v1969
        %v1989 = vpop.xlane.xlu0 %1988
        %1990 = vmax.xlane.f32.xlu0 %v1970
        %v1991 = vpop.xlane.xlu0 %1990
        %1992 = vmax.xlane.f32.xlu0 %v1971
        %v1993 = vpop.xlane.xlu0 %1992
        %1994 = vmax.xlane.f32.xlu0 %v1972
        %v1995 = vpop.xlane.xlu0 %1994
        %1996 = vmax.xlane.f32.xlu0 %v1973
        %v1997 = vpop.xlane.xlu0 %1996
        %1998 = vmax.xlane.f32.xlu0 %v1974
        %v1999 = vpop.xlane.xlu0 %1998
        %2000 = vmax.xlane.f32.xlu0 %v1975
        %v2001 = vpop.xlane.xlu0 %2000
        %2002 = vmax.xlane.f32.xlu0 %v1976
        %v2003 = vpop.xlane.xlu0 %2002
        %2004 = vmax.xlane.f32.xlu0 %v1977
        %v2005 = vpop.xlane.xlu0 %2004
        %2006 = vmax.xlane.f32.xlu0 %v1978
        %v2007 = vpop.xlane.xlu0 %2006
        %2008 = vmax.xlane.f32.xlu0 %v1979
        %v2009 = vpop.xlane.xlu0 %2008
        %2010 = vmax.xlane.f32.xlu0 %v1980
        %v2011 = vpop.xlane.xlu0 %2010
        %2012 = vmax.xlane.f32.xlu0 %v1981
        %v2013 = vpop.xlane.xlu0 %2012
        %v2014 = vsub.f32 %v1966, %v1983
        %v2015 = vsub.f32 %v1967, %v1985
        %v2016 = vsub.f32 %v1968, %v1987
        %v2017 = vsub.f32 %v1969, %v1989
        %v2018 = vsub.f32 %v1970, %v1991
        %v2019 = vsub.f32 %v1971, %v1993
        %v2020 = vsub.f32 %v1972, %v1995
        %v2021 = vsub.f32 %v1973, %v1997
        %v2022 = vsub.f32 %v1974, %v1999
        %v2023 = vsub.f32 %v1975, %v2001
        %v2024 = vsub.f32 %v1976, %v2003
        %v2025 = vsub.f32 %v1977, %v2005
        %v2026 = vsub.f32 %v1978, %v2007
        %v2027 = vsub.f32 %v1979, %v2009
        %v2028 = vsub.f32 %v1980, %v2011
        %v2029 = vsub.f32 %v1981, %v2013
        %v2030 = vmul.f32 %v2014, 1.442695
        %v2031 = vpow.pop %v2030
        %v2032 = vmul.f32 %v2015, 1.442695
        %v2033 = vpow.pop %v2032
        %v2034 = vmul.f32 %v2016, 1.442695
        %v2035 = vpow.pop %v2034
        %v2036 = vmul.f32 %v2017, 1.442695
        %v2037 = vpow.pop %v2036
        %v2038 = vmul.f32 %v2018, 1.442695
        %v2039 = vpow.pop %v2038
        %v2040 = vmul.f32 %v2019, 1.442695
        %v2041 = vpow.pop %v2040
        %v2042 = vmul.f32 %v2020, 1.442695
        %v2043 = vpow.pop %v2042
        %v2044 = vmul.f32 %v2021, 1.442695
        %v2045 = vpow.pop %v2044
        %v2046 = vmul.f32 %v2022, 1.442695
        %v2047 = vpow.pop %v2046
        %v2048 = vmul.f32 %v2023, 1.442695
        %v2049 = vpow.pop %v2048
        %v2050 = vmul.f32 %v2024, 1.442695
        %v2051 = vpow.pop %v2050
        %v2052 = vmul.f32 %v2025, 1.442695
        %v2053 = vpow.pop %v2052
        %v2054 = vmul.f32 %v2026, 1.442695
        %v2055 = vpow.pop %v2054
        %v2056 = vmul.f32 %v2027, 1.442695
        %v2057 = vpow.pop %v2056
        %v2058 = vmul.f32 %v2028, 1.442695
        %v2059 = vpow.pop %v2058
        %v2060 = vmul.f32 %v2029, 1.442695
        %v2061 = vpow.pop %v2060
        %v2062 = vpack.c.bf16 %v2033, %v2031
        %v2063 = vpack.c.bf16 %v2037, %v2035
        %v2064 = vpack.c.bf16 %v2041, %v2039
        %v2065 = vpack.c.bf16 %v2045, %v2043
        %v2066 = vpack.c.bf16 %v2049, %v2047
        %v2067 = vpack.c.bf16 %v2053, %v2051
        %v2068 = vpack.c.bf16 %v2057, %v2055
        %v2069 = vpack.c.bf16 %v2061, %v2059
        %2070 = vmatpush.bf16.msra.mxu0 %v1795
        %2071 = vmatpush.bf16.msra.mxu0 %v1794
        %2072 = vmatpush.bf16.msra.mxu0 %v1793
        %2073 = vmatpush.bf16.msra.mxu0 %v1792
        %2074 = vmatpush.bf16.msra.mxu0 %v1791
        %2075 = vmatpush.bf16.msra.mxu0 %v1790
        %2076 = vmatpush.bf16.msra.mxu0 %v1789
        %2077 = vmatpush.bf16.msra.mxu0 %v1788
        %2078 = vmatmul.bf16.gmra.mxu0 %v2062
        %v2079 = vpop.f32.mrf.mxu0
        %v2080 = vadd.f32 0.0, %v2079
        %v2081 = vpop.f32.mrf.mxu0
        %v2082 = vadd.f32 0.0, %v2081
        %2083 = vmatmul.bf16.gmra.mxu0 %v2063
        %v2084 = vpop.f32.mrf.mxu0
        %v2085 = vadd.f32 0.0, %v2084
        %v2086 = vpop.f32.mrf.mxu0
        %v2087 = vadd.f32 0.0, %v2086
        %2088 = vmatmul.bf16.gmra.mxu0 %v2064
        %v2089 = vpop.f32.mrf.mxu0
        %v2090 = vadd.f32 0.0, %v2089
        %v2091 = vpop.f32.mrf.mxu0
        %v2092 = vadd.f32 0.0, %v2091
        %2093 = vmatmul.bf16.gmra.mxu0 %v2065
        %v2094 = vpop.f32.mrf.mxu0
        %v2095 = vadd.f32 0.0, %v2094
        %v2096 = vpop.f32.mrf.mxu0
        %v2097 = vadd.f32 0.0, %v2096
        %2098 = vmatmul.bf16.gmra.mxu0 %v2066
        %v2099 = vpop.f32.mrf.mxu0
        %v2100 = vadd.f32 0.0, %v2099
        %v2101 = vpop.f32.mrf.mxu0
        %v2102 = vadd.f32 0.0, %v2101
        %2103 = vmatmul.bf16.gmra.mxu0 %v2067
        %v2104 = vpop.f32.mrf.mxu0
        %v2105 = vadd.f32 0.0, %v2104
        %v2106 = vpop.f32.mrf.mxu0
        %v2107 = vadd.f32 0.0, %v2106
        %2108 = vmatmul.bf16.gmra.mxu0 %v2068
        %v2109 = vpop.f32.mrf.mxu0
        %v2110 = vadd.f32 0.0, %v2109
        %v2111 = vpop.f32.mrf.mxu0
        %v2112 = vadd.f32 0.0, %v2111
        %2113 = vmatmul.bf16.gmra.mxu0 %v2069
        %v2114 = vpop.f32.mrf.mxu0
        %v2115 = vadd.f32 0.0, %v2114
        %v2116 = vpop.f32.mrf.mxu0
        %v2117 = vadd.f32 0.0, %v2116
        %2118 = vdwg.mxu0
        %v2119 = vrcp.pop %v2080
        %v2120 = vrcp.pop %v2082
        %v2121 = vrcp.pop %v2085
        %v2122 = vrcp.pop %v2087
        %v2123 = vrcp.pop %v2090
        %v2124 = vrcp.pop %v2092
        %v2125 = vrcp.pop %v2095
        %v2126 = vrcp.pop %v2097
        %v2127 = vrcp.pop %v2100
        %v2128 = vrcp.pop %v2102
        %v2129 = vrcp.pop %v2105
        %v2130 = vrcp.pop %v2107
        %v2131 = vrcp.pop %v2110
        %v2132 = vrcp.pop %v2112
        %v2133 = vrcp.pop %v2115
        %v2134 = vrcp.pop %v2117
        %2136 = vset.pattern.permute.xlu0 32
        %2137 = vperm.xlu0 %2136, %v2119
        %v2138 = vpop.permute.xlu0 %2137
        %2141 = vset.pattern.permute.xlu0 32
        %2142 = vperm.xlu0 %2141, %v2120
        %v2143 = vpop.permute.xlu0 %2142
        %2146 = vset.pattern.permute.xlu0 32
        %2147 = vperm.xlu0 %2146, %v2121
        %v2148 = vpop.permute.xlu0 %2147
        %2151 = vset.pattern.permute.xlu0 32
        %2152 = vperm.xlu0 %2151, %v2122
        %v2153 = vpop.permute.xlu0 %2152
        %2156 = vset.pattern.permute.xlu0 32
        %2157 = vperm.xlu0 %2156, %v2123
        %v2158 = vpop.permute.xlu0 %2157
        %2161 = vset.pattern.permute.xlu0 32
        %2162 = vperm.xlu0 %2161, %v2124
        %v2163 = vpop.permute.xlu0 %2162
        %2166 = vset.pattern.permute.xlu0 32
        %2167 = vperm.xlu0 %2166, %v2125
        %v2168 = vpop.permute.xlu0 %2167
        %2171 = vset.pattern.permute.xlu0 32
        %2172 = vperm.xlu0 %2171, %v2126
        %v2173 = vpop.permute.xlu0 %2172
        %2176 = vset.pattern.permute.xlu0 32
        %2177 = vperm.xlu0 %2176, %v2127
        %v2178 = vpop.permute.xlu0 %2177
        %2181 = vset.pattern.permute.xlu0 32
        %2182 = vperm.xlu0 %2181, %v2128
        %v2183 = vpop.permute.xlu0 %2182
        %2186 = vset.pattern.permute.xlu0 32
        %2187 = vperm.xlu0 %2186, %v2129
        %v2188 = vpop.permute.xlu0 %2187
        %2191 = vset.pattern.permute.xlu0 32
        %2192 = vperm.xlu0 %2191, %v2130
        %v2193 = vpop.permute.xlu0 %2192
        %2196 = vset.pattern.permute.xlu0 32
        %2197 = vperm.xlu0 %2196, %v2131
        %v2198 = vpop.permute.xlu0 %2197
        %2201 = vset.pattern.permute.xlu0 32
        %2202 = vperm.xlu0 %2201, %v2132
        %v2203 = vpop.permute.xlu0 %2202
        %2206 = vset.pattern.permute.xlu0 32
        %2207 = vperm.xlu0 %2206, %v2133
        %v2208 = vpop.permute.xlu0 %2207
        %2211 = vset.pattern.permute.xlu0 32
        %2212 = vperm.xlu0 %2211, %v2134
        %v2213 = vpop.permute.xlu0 %2212
        %v2215 = vmul.f32 %v2080, %v2138
        %v2216 = vmul.f32 %v2082, %v2143
        %v2217 = vmul.f32 %v2085, %v2148
        %v2218 = vmul.f32 %v2087, %v2153
        %v2219 = vmul.f32 %v2090, %v2158
        %v2220 = vmul.f32 %v2092, %v2163
        %v2221 = vmul.f32 %v2095, %v2168
        %v2222 = vmul.f32 %v2097, %v2173
        %v2223 = vmul.f32 %v2100, %v2178
        %v2224 = vmul.f32 %v2102, %v2183
        %v2225 = vmul.f32 %v2105, %v2188
        %v2226 = vmul.f32 %v2107, %v2193
        %v2227 = vmul.f32 %v2110, %v2198
        %v2228 = vmul.f32 %v2112, %v2203
        %v2229 = vmul.f32 %v2115, %v2208
        %v2230 = vmul.f32 %v2117, %v2213
        %v2231 = vperm.slane %v530, 2
        %v2232 = vadd.f32 %v2215, %v2231
        %v2233 = vadd.f32 %v2216, %v2231
        %v2234 = vadd.f32 %v2217, %v2231
        %v2235 = vadd.f32 %v2218, %v2231
        %v2236 = vadd.f32 %v2219, %v2231
        %v2237 = vadd.f32 %v2220, %v2231
        %v2238 = vadd.f32 %v2221, %v2231
        %v2239 = vadd.f32 %v2222, %v2231
        %v2240 = vadd.f32 %v2223, %v2231
        %v2241 = vadd.f32 %v2224, %v2231
        %v2242 = vadd.f32 %v2225, %v2231
        %v2243 = vadd.f32 %v2226, %v2231
        %v2244 = vadd.f32 %v2227, %v2231
        %v2245 = vadd.f32 %v2228, %v2231
        %v2246 = vadd.f32 %v2229, %v2231
        %v2247 = vadd.f32 %v2230, %v2231
        %v2248 = vmax.f32 %v2232, 0.0
        %v2249 = vmax.f32 %v2233, 0.0
        %v2250 = vmax.f32 %v2234, 0.0
        %v2251 = vmax.f32 %v2235, 0.0
        %v2252 = vmax.f32 %v2236, 0.0
        %v2253 = vmax.f32 %v2237, 0.0
        %v2254 = vmax.f32 %v2238, 0.0
        %v2255 = vmax.f32 %v2239, 0.0
        %v2256 = vmax.f32 %v2240, 0.0
        %v2257 = vmax.f32 %v2241, 0.0
        %v2258 = vmax.f32 %v2242, 0.0
        %v2259 = vmax.f32 %v2243, 0.0
        %v2260 = vmax.f32 %v2244, 0.0
        %v2261 = vmax.f32 %v2245, 0.0
        %v2262 = vmax.f32 %v2246, 0.0
        %v2263 = vmax.f32 %v2247, 0.0
        %v2264 = vpack.c.bf16 %v2249, %v2248
        %v2265 = vpack.c.bf16 %v2251, %v2250
        %v2266 = vpack.c.bf16 %v2253, %v2252
        %v2267 = vpack.c.bf16 %v2255, %v2254
        %v2268 = vpack.c.bf16 %v2257, %v2256
        %v2269 = vpack.c.bf16 %v2259, %v2258
        %v2270 = vpack.c.bf16 %v2261, %v2260
        %v2271 = vpack.c.bf16 %v2263, %v2262
        %v2277 = vunpack.c.l.b16 %v519
        %v2278 = vunpack.c.l.b16 %v520
        %v2279 = vunpack.c.l.b16 %v521
        %v2280 = vunpack.c.l.b16 %v522
        %v2281 = vunpack.c.l.b16 %v523
        %v2282 = vpack.c.b16 %v2278, %v2277
        %v2283 = vpack.c.b16 %v2280, %v2279
        %v2284 = vpack.c.b16 %v2281, %v2281
        %v2288 = vsel %vm554, %v2264, 0
        %v2291 = vsel %vm554, %v2265, 0
        %v2294 = vsel %vm554, %v2266, 0
        %v2297 = vsel %vm554, %v2267, 0
        %v2300 = vsel %vm554, %v2268, 0
        %v2303 = vsel %vm554, %v2269, 0
        %v2306 = vsel %vm554, %v2270, 0
        %v2309 = vsel %vm554, %v2271, 0
        %v2312 = vand.u32 %v2284, %v581
        %2314 = vmatpush.bf16.msra.mxu0 0
        %2315 = vmatpush.bf16.msra.mxu0 0
        %2316 = vmatpush.bf16.msra.mxu0 0
        %2317 = vmatpush.bf16.msra.mxu0 0
        %2318 = vmatpush.bf16.msra.mxu0 0
        %2319 = vmatpush.bf16.msra.mxu0 %v2312
        %2320 = vmatpush.bf16.msra.mxu0 %v2283
        %2321 = vmatpush.bf16.msra.mxu0 %v2282
        %2322 = vmatmul.bf16.gmra.mxu0 %v2288
        %v2323 = vpop.f32.mrf.mxu0
        %v2324 = vadd.f32 0.0, %v2323
        %v2325 = vpop.f32.mrf.mxu0
        %v2326 = vadd.f32 0.0, %v2325
        %2327 = vmatmul.bf16.gmra.mxu0 %v2291
        %v2328 = vpop.f32.mrf.mxu0
        %v2329 = vadd.f32 0.0, %v2328
        %v2330 = vpop.f32.mrf.mxu0
        %v2331 = vadd.f32 0.0, %v2330
        %2332 = vmatmul.bf16.gmra.mxu0 %v2294
        %v2333 = vpop.f32.mrf.mxu0
        %v2334 = vadd.f32 0.0, %v2333
        %v2335 = vpop.f32.mrf.mxu0
        %v2336 = vadd.f32 0.0, %v2335
        %2337 = vmatmul.bf16.gmra.mxu0 %v2297
        %v2338 = vpop.f32.mrf.mxu0
        %v2339 = vadd.f32 0.0, %v2338
        %v2340 = vpop.f32.mrf.mxu0
        %v2341 = vadd.f32 0.0, %v2340
        %2342 = vmatmul.bf16.gmra.mxu0 %v2300
        %v2343 = vpop.f32.mrf.mxu0
        %v2344 = vadd.f32 0.0, %v2343
        %v2345 = vpop.f32.mrf.mxu0
        %v2346 = vadd.f32 0.0, %v2345
        %2347 = vmatmul.bf16.gmra.mxu0 %v2303
        %v2348 = vpop.f32.mrf.mxu0
        %v2349 = vadd.f32 0.0, %v2348
        %v2350 = vpop.f32.mrf.mxu0
        %v2351 = vadd.f32 0.0, %v2350
        %2352 = vmatmul.bf16.gmra.mxu0 %v2306
        %v2353 = vpop.f32.mrf.mxu0
        %v2354 = vadd.f32 0.0, %v2353
        %v2355 = vpop.f32.mrf.mxu0
        %v2356 = vadd.f32 0.0, %v2355
        %2357 = vmatmul.bf16.gmra.mxu0 %v2309
        %v2358 = vpop.f32.mrf.mxu0
        %v2359 = vadd.f32 0.0, %v2358
        %v2360 = vpop.f32.mrf.mxu0
        %v2361 = vadd.f32 0.0, %v2360
        %2362 = vdwg.mxu0
        %v2363 = vpack.c.bf16 %v2326, %v2324
        %v2364 = vpack.c.bf16 %v2331, %v2329
        %v2365 = vpack.c.bf16 %v2336, %v2334
        %v2366 = vpack.c.bf16 %v2341, %v2339
        %v2367 = vpack.c.bf16 %v2346, %v2344
        %v2368 = vpack.c.bf16 %v2351, %v2349
        %v2369 = vpack.c.bf16 %v2356, %v2354
        %v2370 = vpack.c.bf16 %v2361, %v2359
        %v2371 = vrot.slane %v1220, 1
        %v2373 = vsel %vm554, %v2371, 0
        %v2376 = vsel %vm554, %v2363, 0
        %v2379 = vsel %vm554, %v2364, 0
        %v2382 = vsel %vm554, %v2365, 0
        %v2385 = vsel %vm554, %v2366, 0
        %v2388 = vsel %vm554, %v2367, 0
        %v2391 = vsel %vm554, %v2368, 0
        %v2394 = vsel %vm554, %v2369, 0
        %v2397 = vsel %vm554, %v2370, 0
        %2399 = vmatpush.bf16.xpose.msra.mxu0 %v2397
        %2400 = vmatpush.bf16.xpose.msra.mxu0 %v2394
        %2401 = vmatpush.bf16.xpose.msra.mxu0 %v2391
        %2402 = vmatpush.bf16.xpose.msra.mxu0 %v2388
        %2403 = vmatpush.bf16.xpose.msra.mxu0 %v2385
        %2404 = vmatpush.bf16.xpose.msra.mxu0 %v2382
        %2405 = vmatpush.bf16.xpose.msra.mxu0 %v2379
        %2406 = vmatpush.bf16.xpose.msra.mxu0 %v2376
        %2407 = vmatmul.bf16.gmra.mxu0 %v2373
        %v2408 = vpop.f32.mrf.mxu0
        %v2409 = vadd.f32 0.0, %v2408
        %v2410 = vpop.f32.mrf.mxu0
        %2411 = vdwg.mxu0
        %2413 = vset.pattern.permute.xlu0 33
        %2414 = vperm.xlu0 %2413, %v2324
        %v2415 = vpop.permute.xlu0 %2414
        %2418 = vset.pattern.permute.xlu0 33
        %2419 = vperm.xlu0 %2418, %v2326
        %v2420 = vpop.permute.xlu0 %2419
        %2423 = vset.pattern.permute.xlu0 33
        %2424 = vperm.xlu0 %2423, %v2329
        %v2425 = vpop.permute.xlu0 %2424
        %2428 = vset.pattern.permute.xlu0 33
        %2429 = vperm.xlu0 %2428, %v2331
        %v2430 = vpop.permute.xlu0 %2429
        %2433 = vset.pattern.permute.xlu0 33
        %2434 = vperm.xlu0 %2433, %v2334
        %v2435 = vpop.permute.xlu0 %2434
        %2438 = vset.pattern.permute.xlu0 33
        %2439 = vperm.xlu0 %2438, %v2336
        %v2440 = vpop.permute.xlu0 %2439
        %2443 = vset.pattern.permute.xlu0 33
        %2444 = vperm.xlu0 %2443, %v2339
        %v2445 = vpop.permute.xlu0 %2444
        %2448 = vset.pattern.permute.xlu0 33
        %2449 = vperm.xlu0 %2448, %v2341
        %v2450 = vpop.permute.xlu0 %2449
        %2453 = vset.pattern.permute.xlu0 33
        %2454 = vperm.xlu0 %2453, %v2344
        %v2455 = vpop.permute.xlu0 %2454
        %2458 = vset.pattern.permute.xlu0 33
        %2459 = vperm.xlu0 %2458, %v2346
        %v2460 = vpop.permute.xlu0 %2459
        %2463 = vset.pattern.permute.xlu0 33
        %2464 = vperm.xlu0 %2463, %v2349
        %v2465 = vpop.permute.xlu0 %2464
        %2468 = vset.pattern.permute.xlu0 33
        %2469 = vperm.xlu0 %2468, %v2351
        %v2470 = vpop.permute.xlu0 %2469
        %2473 = vset.pattern.permute.xlu0 33
        %2474 = vperm.xlu0 %2473, %v2354
        %v2475 = vpop.permute.xlu0 %2474
        %2478 = vset.pattern.permute.xlu0 33
        %2479 = vperm.xlu0 %2478, %v2356
        %v2480 = vpop.permute.xlu0 %2479
        %2483 = vset.pattern.permute.xlu0 33
        %2484 = vperm.xlu0 %2483, %v2359
        %v2485 = vpop.permute.xlu0 %2484
        %2488 = vset.pattern.permute.xlu0 33
        %2489 = vperm.xlu0 %2488, %v2361
        %v2490 = vpop.permute.xlu0 %2489
        %v2492 = vperm.slane %v2409, 0
        %v2493 = vadd.f32 %v2415, %v2492
        %v2494 = vadd.f32 %v2420, %v2492
        %v2495 = vadd.f32 %v2425, %v2492
        %v2496 = vadd.f32 %v2430, %v2492
        %v2497 = vadd.f32 %v2435, %v2492
        %v2498 = vadd.f32 %v2440, %v2492
        %v2499 = vadd.f32 %v2445, %v2492
        %v2500 = vadd.f32 %v2450, %v2492
        %v2501 = vadd.f32 %v2455, %v2492
        %v2502 = vadd.f32 %v2460, %v2492
        %v2503 = vadd.f32 %v2465, %v2492
        %v2504 = vadd.f32 %v2470, %v2492
        %v2505 = vadd.f32 %v2475, %v2492
        %v2506 = vadd.f32 %v2480, %v2492
        %v2507 = vadd.f32 %v2485, %v2492
        %v2508 = vadd.f32 %v2490, %v2492
        %v2509 = vmul.f32 %v2493, 0.2
        %v2510 = vmul.f32 %v2494, 0.2
        %v2511 = vmul.f32 %v2495, 0.2
        %v2512 = vmul.f32 %v2496, 0.2
        %v2513 = vmul.f32 %v2497, 0.2
        %v2514 = vmul.f32 %v2498, 0.2
        %v2515 = vmul.f32 %v2499, 0.2
        %v2516 = vmul.f32 %v2500, 0.2
        %v2517 = vmul.f32 %v2501, 0.2
        %v2518 = vmul.f32 %v2502, 0.2
        %v2519 = vmul.f32 %v2503, 0.2
        %v2520 = vmul.f32 %v2504, 0.2
        %v2521 = vmul.f32 %v2505, 0.2
        %v2522 = vmul.f32 %v2506, 0.2
        %v2523 = vmul.f32 %v2507, 0.2
        %v2524 = vmul.f32 %v2508, 0.2
        %v2525 = vmax.f32 %v2493, %v2509
        %v2526 = vmax.f32 %v2494, %v2510
        %v2527 = vmax.f32 %v2495, %v2511
        %v2528 = vmax.f32 %v2496, %v2512
        %v2529 = vmax.f32 %v2497, %v2513
        %v2530 = vmax.f32 %v2498, %v2514
        %v2531 = vmax.f32 %v2499, %v2515
        %v2532 = vmax.f32 %v2500, %v2516
        %v2533 = vmax.f32 %v2501, %v2517
        %v2534 = vmax.f32 %v2502, %v2518
        %v2535 = vmax.f32 %v2503, %v2519
        %v2536 = vmax.f32 %v2504, %v2520
        %v2537 = vmax.f32 %v2505, %v2521
        %v2538 = vmax.f32 %v2506, %v2522
        %v2539 = vmax.f32 %v2507, %v2523
        %v2540 = vmax.f32 %v2508, %v2524
        %v2541 = vadd.f32 %v2525, %v488
        %v2542 = vadd.f32 %v2526, %v489
        %v2543 = vadd.f32 %v2527, %v490
        %v2544 = vadd.f32 %v2528, %v491
        %v2545 = vadd.f32 %v2529, %v492
        %v2546 = vadd.f32 %v2530, %v493
        %v2547 = vadd.f32 %v2531, %v494
        %v2548 = vadd.f32 %v2532, %v495
        %v2549 = vadd.f32 %v2533, %v496
        %v2550 = vadd.f32 %v2534, %v497
        %v2551 = vadd.f32 %v2535, %v498
        %v2552 = vadd.f32 %v2536, %v499
        %v2553 = vadd.f32 %v2537, %v500
        %v2554 = vadd.f32 %v2538, %v501
        %v2555 = vadd.f32 %v2539, %v502
        %v2556 = vadd.f32 %v2540, %v503
        %2557 = vmax.xlane.f32.xlu0 %v2541
        %v2558 = vpop.xlane.xlu0 %2557
        %2559 = vmax.xlane.f32.xlu0 %v2542
        %v2560 = vpop.xlane.xlu0 %2559
        %2561 = vmax.xlane.f32.xlu0 %v2543
        %v2562 = vpop.xlane.xlu0 %2561
        %2563 = vmax.xlane.f32.xlu0 %v2544
        %v2564 = vpop.xlane.xlu0 %2563
        %2565 = vmax.xlane.f32.xlu0 %v2545
        %v2566 = vpop.xlane.xlu0 %2565
        %2567 = vmax.xlane.f32.xlu0 %v2546
        %v2568 = vpop.xlane.xlu0 %2567
        %2569 = vmax.xlane.f32.xlu0 %v2547
        %v2570 = vpop.xlane.xlu0 %2569
        %2571 = vmax.xlane.f32.xlu0 %v2548
        %v2572 = vpop.xlane.xlu0 %2571
        %2573 = vmax.xlane.f32.xlu0 %v2549
        %v2574 = vpop.xlane.xlu0 %2573
        %2575 = vmax.xlane.f32.xlu0 %v2550
        %v2576 = vpop.xlane.xlu0 %2575
        %2577 = vmax.xlane.f32.xlu0 %v2551
        %v2578 = vpop.xlane.xlu0 %2577
        %2579 = vmax.xlane.f32.xlu0 %v2552
        %v2580 = vpop.xlane.xlu0 %2579
        %2581 = vmax.xlane.f32.xlu0 %v2553
        %v2582 = vpop.xlane.xlu0 %2581
        %2583 = vmax.xlane.f32.xlu0 %v2554
        %v2584 = vpop.xlane.xlu0 %2583
        %2585 = vmax.xlane.f32.xlu0 %v2555
        %v2586 = vpop.xlane.xlu0 %2585
        %2587 = vmax.xlane.f32.xlu0 %v2556
        %v2588 = vpop.xlane.xlu0 %2587
        %v2589 = vsub.f32 %v2541, %v2558
        %v2590 = vsub.f32 %v2542, %v2560
        %v2591 = vsub.f32 %v2543, %v2562
        %v2592 = vsub.f32 %v2544, %v2564
        %v2593 = vsub.f32 %v2545, %v2566
        %v2594 = vsub.f32 %v2546, %v2568
        %v2595 = vsub.f32 %v2547, %v2570
        %v2596 = vsub.f32 %v2548, %v2572
        %v2597 = vsub.f32 %v2549, %v2574
        %v2598 = vsub.f32 %v2550, %v2576
        %v2599 = vsub.f32 %v2551, %v2578
        %v2600 = vsub.f32 %v2552, %v2580
        %v2601 = vsub.f32 %v2553, %v2582
        %v2602 = vsub.f32 %v2554, %v2584
        %v2603 = vsub.f32 %v2555, %v2586
        %v2604 = vsub.f32 %v2556, %v2588
        %v2605 = vmul.f32 %v2589, 1.442695
        %v2606 = vpow.pop %v2605
        %v2607 = vmul.f32 %v2590, 1.442695
        %v2608 = vpow.pop %v2607
        %v2609 = vmul.f32 %v2591, 1.442695
        %v2610 = vpow.pop %v2609
        %v2611 = vmul.f32 %v2592, 1.442695
        %v2612 = vpow.pop %v2611
        %v2613 = vmul.f32 %v2593, 1.442695
        %v2614 = vpow.pop %v2613
        %v2615 = vmul.f32 %v2594, 1.442695
        %v2616 = vpow.pop %v2615
        %v2617 = vmul.f32 %v2595, 1.442695
        %v2618 = vpow.pop %v2617
        %v2619 = vmul.f32 %v2596, 1.442695
        %v2620 = vpow.pop %v2619
        %v2621 = vmul.f32 %v2597, 1.442695
        %v2622 = vpow.pop %v2621
        %v2623 = vmul.f32 %v2598, 1.442695
        %v2624 = vpow.pop %v2623
        %v2625 = vmul.f32 %v2599, 1.442695
        %v2626 = vpow.pop %v2625
        %v2627 = vmul.f32 %v2600, 1.442695
        %v2628 = vpow.pop %v2627
        %v2629 = vmul.f32 %v2601, 1.442695
        %v2630 = vpow.pop %v2629
        %v2631 = vmul.f32 %v2602, 1.442695
        %v2632 = vpow.pop %v2631
        %v2633 = vmul.f32 %v2603, 1.442695
        %v2634 = vpow.pop %v2633
        %v2635 = vmul.f32 %v2604, 1.442695
        %v2636 = vpow.pop %v2635
        %v2637 = vpack.c.bf16 %v2608, %v2606
        %v2638 = vpack.c.bf16 %v2612, %v2610
        %v2639 = vpack.c.bf16 %v2616, %v2614
        %v2640 = vpack.c.bf16 %v2620, %v2618
        %v2641 = vpack.c.bf16 %v2624, %v2622
        %v2642 = vpack.c.bf16 %v2628, %v2626
        %v2643 = vpack.c.bf16 %v2632, %v2630
        %v2644 = vpack.c.bf16 %v2636, %v2634
        %2645 = vmatpush.bf16.msra.mxu0 %v2370
        %2646 = vmatpush.bf16.msra.mxu0 %v2369
        %2647 = vmatpush.bf16.msra.mxu0 %v2368
        %2648 = vmatpush.bf16.msra.mxu0 %v2367
        %2649 = vmatpush.bf16.msra.mxu0 %v2366
        %2650 = vmatpush.bf16.msra.mxu0 %v2365
        %2651 = vmatpush.bf16.msra.mxu0 %v2364
        %2652 = vmatpush.bf16.msra.mxu0 %v2363
        %2653 = vmatmul.bf16.gmra.mxu0 %v2637
        %v2654 = vpop.f32.mrf.mxu0
        %v2655 = vadd.f32 0.0, %v2654
        %v2656 = vpop.f32.mrf.mxu0
        %v2657 = vadd.f32 0.0, %v2656
        %2658 = vmatmul.bf16.gmra.mxu0 %v2638
        %v2659 = vpop.f32.mrf.mxu0
        %v2660 = vadd.f32 0.0, %v2659
        %v2661 = vpop.f32.mrf.mxu0
        %v2662 = vadd.f32 0.0, %v2661
        %2663 = vmatmul.bf16.gmra.mxu0 %v2639
        %v2664 = vpop.f32.mrf.mxu0
        %v2665 = vadd.f32 0.0, %v2664
        %v2666 = vpop.f32.mrf.mxu0
        %v2667 = vadd.f32 0.0, %v2666
        %2668 = vmatmul.bf16.gmra.mxu0 %v2640
        %v2669 = vpop.f32.mrf.mxu0
        %v2670 = vadd.f32 0.0, %v2669
        %v2671 = vpop.f32.mrf.mxu0
        %v2672 = vadd.f32 0.0, %v2671
        %2673 = vmatmul.bf16.gmra.mxu0 %v2641
        %v2674 = vpop.f32.mrf.mxu0
        %v2675 = vadd.f32 0.0, %v2674
        %v2676 = vpop.f32.mrf.mxu0
        %v2677 = vadd.f32 0.0, %v2676
        %2678 = vmatmul.bf16.gmra.mxu0 %v2642
        %v2679 = vpop.f32.mrf.mxu0
        %v2680 = vadd.f32 0.0, %v2679
        %v2681 = vpop.f32.mrf.mxu0
        %v2682 = vadd.f32 0.0, %v2681
        %2683 = vmatmul.bf16.gmra.mxu0 %v2643
        %v2684 = vpop.f32.mrf.mxu0
        %v2685 = vadd.f32 0.0, %v2684
        %v2686 = vpop.f32.mrf.mxu0
        %v2687 = vadd.f32 0.0, %v2686
        %2688 = vmatmul.bf16.gmra.mxu0 %v2644
        %v2689 = vpop.f32.mrf.mxu0
        %v2690 = vadd.f32 0.0, %v2689
        %v2691 = vpop.f32.mrf.mxu0
        %v2692 = vadd.f32 0.0, %v2691
        %2693 = vdwg.mxu0
        %v2694 = vrcp.pop %v2655
        %v2695 = vrcp.pop %v2657
        %v2696 = vrcp.pop %v2660
        %v2697 = vrcp.pop %v2662
        %v2698 = vrcp.pop %v2665
        %v2699 = vrcp.pop %v2667
        %v2700 = vrcp.pop %v2670
        %v2701 = vrcp.pop %v2672
        %v2702 = vrcp.pop %v2675
        %v2703 = vrcp.pop %v2677
        %v2704 = vrcp.pop %v2680
        %v2705 = vrcp.pop %v2682
        %v2706 = vrcp.pop %v2685
        %v2707 = vrcp.pop %v2687
        %v2708 = vrcp.pop %v2690
        %v2709 = vrcp.pop %v2692
        %2711 = vset.pattern.permute.xlu0 32
        %2712 = vperm.xlu0 %2711, %v2694
        %v2713 = vpop.permute.xlu0 %2712
        %2716 = vset.pattern.permute.xlu0 32
        %2717 = vperm.xlu0 %2716, %v2695
        %v2718 = vpop.permute.xlu0 %2717
        %2721 = vset.pattern.permute.xlu0 32
        %2722 = vperm.xlu0 %2721, %v2696
        %v2723 = vpop.permute.xlu0 %2722
        %2726 = vset.pattern.permute.xlu0 32
        %2727 = vperm.xlu0 %2726, %v2697
        %v2728 = vpop.permute.xlu0 %2727
        %2731 = vset.pattern.permute.xlu0 32
        %2732 = vperm.xlu0 %2731, %v2698
        %v2733 = vpop.permute.xlu0 %2732
        %2736 = vset.pattern.permute.xlu0 32
        %2737 = vperm.xlu0 %2736, %v2699
        %v2738 = vpop.permute.xlu0 %2737
        %2741 = vset.pattern.permute.xlu0 32
        %2742 = vperm.xlu0 %2741, %v2700
        %v2743 = vpop.permute.xlu0 %2742
        %2746 = vset.pattern.permute.xlu0 32
        %2747 = vperm.xlu0 %2746, %v2701
        %v2748 = vpop.permute.xlu0 %2747
        %2751 = vset.pattern.permute.xlu0 32
        %2752 = vperm.xlu0 %2751, %v2702
        %v2753 = vpop.permute.xlu0 %2752
        %2756 = vset.pattern.permute.xlu0 32
        %2757 = vperm.xlu0 %2756, %v2703
        %v2758 = vpop.permute.xlu0 %2757
        %2761 = vset.pattern.permute.xlu0 32
        %2762 = vperm.xlu0 %2761, %v2704
        %v2763 = vpop.permute.xlu0 %2762
        %2766 = vset.pattern.permute.xlu0 32
        %2767 = vperm.xlu0 %2766, %v2705
        %v2768 = vpop.permute.xlu0 %2767
        %2771 = vset.pattern.permute.xlu0 32
        %2772 = vperm.xlu0 %2771, %v2706
        %v2773 = vpop.permute.xlu0 %2772
        %2776 = vset.pattern.permute.xlu0 32
        %2777 = vperm.xlu0 %2776, %v2707
        %v2778 = vpop.permute.xlu0 %2777
        %2781 = vset.pattern.permute.xlu0 32
        %2782 = vperm.xlu0 %2781, %v2708
        %v2783 = vpop.permute.xlu0 %2782
        %2786 = vset.pattern.permute.xlu0 32
        %2787 = vperm.xlu0 %2786, %v2709
        %v2788 = vpop.permute.xlu0 %2787
        %v2790 = vmul.f32 %v2655, %v2713
        %v2791 = vmul.f32 %v2657, %v2718
        %v2792 = vmul.f32 %v2660, %v2723
        %v2793 = vmul.f32 %v2662, %v2728
        %v2794 = vmul.f32 %v2665, %v2733
        %v2795 = vmul.f32 %v2667, %v2738
        %v2796 = vmul.f32 %v2670, %v2743
        %v2797 = vmul.f32 %v2672, %v2748
        %v2798 = vmul.f32 %v2675, %v2753
        %v2799 = vmul.f32 %v2677, %v2758
        %v2800 = vmul.f32 %v2680, %v2763
        %v2801 = vmul.f32 %v2682, %v2768
        %v2802 = vmul.f32 %v2685, %v2773
        %v2803 = vmul.f32 %v2687, %v2778
        %v2804 = vmul.f32 %v2690, %v2783
        %v2805 = vmul.f32 %v2692, %v2788
        %v2806 = vperm.slane %v530, 3
        %v2807 = vadd.f32 %v2790, %v2806
        %v2808 = vadd.f32 %v2791, %v2806
        %v2809 = vadd.f32 %v2792, %v2806
        %v2810 = vadd.f32 %v2793, %v2806
        %v2811 = vadd.f32 %v2794, %v2806
        %v2812 = vadd.f32 %v2795, %v2806
        %v2813 = vadd.f32 %v2796, %v2806
        %v2814 = vadd.f32 %v2797, %v2806
        %v2815 = vadd.f32 %v2798, %v2806
        %v2816 = vadd.f32 %v2799, %v2806
        %v2817 = vadd.f32 %v2800, %v2806
        %v2818 = vadd.f32 %v2801, %v2806
        %v2819 = vadd.f32 %v2802, %v2806
        %v2820 = vadd.f32 %v2803, %v2806
        %v2821 = vadd.f32 %v2804, %v2806
        %v2822 = vadd.f32 %v2805, %v2806
        %v2823 = vmax.f32 %v2807, 0.0
        %v2824 = vmax.f32 %v2808, 0.0
        %v2825 = vmax.f32 %v2809, 0.0
        %v2826 = vmax.f32 %v2810, 0.0
        %v2827 = vmax.f32 %v2811, 0.0
        %v2828 = vmax.f32 %v2812, 0.0
        %v2829 = vmax.f32 %v2813, 0.0
        %v2830 = vmax.f32 %v2814, 0.0
        %v2831 = vmax.f32 %v2815, 0.0
        %v2832 = vmax.f32 %v2816, 0.0
        %v2833 = vmax.f32 %v2817, 0.0
        %v2834 = vmax.f32 %v2818, 0.0
        %v2835 = vmax.f32 %v2819, 0.0
        %v2836 = vmax.f32 %v2820, 0.0
        %v2837 = vmax.f32 %v2821, 0.0
        %v2838 = vmax.f32 %v2822, 0.0
        %v2839 = vpack.c.bf16 %v2824, %v2823
        %v2840 = vpack.c.bf16 %v2826, %v2825
        %v2841 = vpack.c.bf16 %v2828, %v2827
        %v2842 = vpack.c.bf16 %v2830, %v2829
        %v2843 = vpack.c.bf16 %v2832, %v2831
        %v2844 = vpack.c.bf16 %v2834, %v2833
        %v2845 = vpack.c.bf16 %v2836, %v2835
        %v2846 = vpack.c.bf16 %v2838, %v2837
        %v2852 = vunpack.c.l.b16 %v524
        %v2853 = vunpack.c.l.b16 %v525
        %v2854 = vunpack.c.l.b16 %v526
        %v2855 = vunpack.c.l.b16 %v527
        %v2856 = vunpack.c.l.b16 %v528
        %v2857 = vpack.c.b16 %v2853, %v2852
        %v2858 = vpack.c.b16 %v2855, %v2854
        %v2859 = vpack.c.b16 %v2856, %v2856
        %v2863 = vsel %vm554, %v2839, 0
        %v2866 = vsel %vm554, %v2840, 0
        %v2869 = vsel %vm554, %v2841, 0
        %v2872 = vsel %vm554, %v2842, 0
        %v2875 = vsel %vm554, %v2843, 0
        %v2878 = vsel %vm554, %v2844, 0
        %v2881 = vsel %vm554, %v2845, 0
        %v2884 = vsel %vm554, %v2846, 0
        %v2887 = vand.u32 %v2859, %v581
        %2889 = vmatpush.bf16.msra.mxu0 0
        %2890 = vmatpush.bf16.msra.mxu0 0
        %2891 = vmatpush.bf16.msra.mxu0 0
        %2892 = vmatpush.bf16.msra.mxu0 0
        %2893 = vmatpush.bf16.msra.mxu0 0
        %2894 = vmatpush.bf16.msra.mxu0 %v2887
        %2895 = vmatpush.bf16.msra.mxu0 %v2858
        %2896 = vmatpush.bf16.msra.mxu0 %v2857
        %2897 = vmatmul.bf16.gmra.mxu0 %v2863
        %v2898 = vpop.f32.mrf.mxu0
        %v2899 = vadd.f32 0.0, %v2898
        %v2900 = vpop.f32.mrf.mxu0
        %v2901 = vadd.f32 0.0, %v2900
        %2902 = vmatmul.bf16.gmra.mxu0 %v2866
        %v2903 = vpop.f32.mrf.mxu0
        %v2904 = vadd.f32 0.0, %v2903
        %v2905 = vpop.f32.mrf.mxu0
        %v2906 = vadd.f32 0.0, %v2905
        %2907 = vmatmul.bf16.gmra.mxu0 %v2869
        %v2908 = vpop.f32.mrf.mxu0
        %v2909 = vadd.f32 0.0, %v2908
        %v2910 = vpop.f32.mrf.mxu0
        %v2911 = vadd.f32 0.0, %v2910
        %2912 = vmatmul.bf16.gmra.mxu0 %v2872
        %v2913 = vpop.f32.mrf.mxu0
        %v2914 = vadd.f32 0.0, %v2913
        %v2915 = vpop.f32.mrf.mxu0
        %v2916 = vadd.f32 0.0, %v2915
        %2917 = vmatmul.bf16.gmra.mxu0 %v2875
        %v2918 = vpop.f32.mrf.mxu0
        %v2919 = vadd.f32 0.0, %v2918
        %v2920 = vpop.f32.mrf.mxu0
        %v2921 = vadd.f32 0.0, %v2920
        %2922 = vmatmul.bf16.gmra.mxu0 %v2878
        %v2923 = vpop.f32.mrf.mxu0
        %v2924 = vadd.f32 0.0, %v2923
        %v2925 = vpop.f32.mrf.mxu0
        %v2926 = vadd.f32 0.0, %v2925
        %2927 = vmatmul.bf16.gmra.mxu0 %v2881
        %v2928 = vpop.f32.mrf.mxu0
        %v2929 = vadd.f32 0.0, %v2928
        %v2930 = vpop.f32.mrf.mxu0
        %v2931 = vadd.f32 0.0, %v2930
        %2932 = vmatmul.bf16.gmra.mxu0 %v2884
        %v2933 = vpop.f32.mrf.mxu0
        %v2934 = vadd.f32 0.0, %v2933
        %v2935 = vpop.f32.mrf.mxu0
        %v2936 = vadd.f32 0.0, %v2935
        %2937 = vdwg.mxu0
        %v2938 = vpack.c.bf16 %v2901, %v2899
        %v2939 = vpack.c.bf16 %v2906, %v2904
        %v2940 = vpack.c.bf16 %v2911, %v2909
        %v2941 = vpack.c.bf16 %v2916, %v2914
        %v2942 = vpack.c.bf16 %v2921, %v2919
        %v2943 = vpack.c.bf16 %v2926, %v2924
        %v2944 = vpack.c.bf16 %v2931, %v2929
        %v2945 = vpack.c.bf16 %v2936, %v2934
        %v2946 = vrot.slane %v1218, 2
        %v2948 = vsel %vm554, %v2946, 0
        %v2951 = vsel %vm554, %v2938, 0
        %v2954 = vsel %vm554, %v2939, 0
        %v2957 = vsel %vm554, %v2940, 0
        %v2960 = vsel %vm554, %v2941, 0
        %v2963 = vsel %vm554, %v2942, 0
        %v2966 = vsel %vm554, %v2943, 0
        %v2969 = vsel %vm554, %v2944, 0
        %v2972 = vsel %vm554, %v2945, 0
        %2974 = vmatpush.bf16.xpose.msra.mxu0 %v2972
        %2975 = vmatpush.bf16.xpose.msra.mxu0 %v2969
        %2976 = vmatpush.bf16.xpose.msra.mxu0 %v2966
        %2977 = vmatpush.bf16.xpose.msra.mxu0 %v2963
        %2978 = vmatpush.bf16.xpose.msra.mxu0 %v2960
        %2979 = vmatpush.bf16.xpose.msra.mxu0 %v2957
        %2980 = vmatpush.bf16.xpose.msra.mxu0 %v2954
        %2981 = vmatpush.bf16.xpose.msra.mxu0 %v2951
        %2982 = vmatmul.bf16.gmra.mxu0 %v2948
        %v2983 = vpop.f32.mrf.mxu0
        %v2984 = vadd.f32 0.0, %v2983
        %v2985 = vpop.f32.mrf.mxu0
        %2986 = vdwg.mxu0
        %2988 = vset.pattern.permute.xlu0 33
        %2989 = vperm.xlu0 %2988, %v2899
        %v2990 = vpop.permute.xlu0 %2989
        %2993 = vset.pattern.permute.xlu0 33
        %2994 = vperm.xlu0 %2993, %v2901
        %v2995 = vpop.permute.xlu0 %2994
        %2998 = vset.pattern.permute.xlu0 33
        %2999 = vperm.xlu0 %2998, %v2904
        %v3000 = vpop.permute.xlu0 %2999
        %3003 = vset.pattern.permute.xlu0 33
        %3004 = vperm.xlu0 %3003, %v2906
        %v3005 = vpop.permute.xlu0 %3004
        %3008 = vset.pattern.permute.xlu0 33
        %3009 = vperm.xlu0 %3008, %v2909
        %v3010 = vpop.permute.xlu0 %3009
        %3013 = vset.pattern.permute.xlu0 33
        %3014 = vperm.xlu0 %3013, %v2911
        %v3015 = vpop.permute.xlu0 %3014
        %3018 = vset.pattern.permute.xlu0 33
        %3019 = vperm.xlu0 %3018, %v2914
        %v3020 = vpop.permute.xlu0 %3019
        %3023 = vset.pattern.permute.xlu0 33
        %3024 = vperm.xlu0 %3023, %v2916
        %v3025 = vpop.permute.xlu0 %3024
        %3028 = vset.pattern.permute.xlu0 33
        %3029 = vperm.xlu0 %3028, %v2919
        %v3030 = vpop.permute.xlu0 %3029
        %3033 = vset.pattern.permute.xlu0 33
        %3034 = vperm.xlu0 %3033, %v2921
        %v3035 = vpop.permute.xlu0 %3034
        %3038 = vset.pattern.permute.xlu0 33
        %3039 = vperm.xlu0 %3038, %v2924
        %v3040 = vpop.permute.xlu0 %3039
        %3043 = vset.pattern.permute.xlu0 33
        %3044 = vperm.xlu0 %3043, %v2926
        %v3045 = vpop.permute.xlu0 %3044
        %3048 = vset.pattern.permute.xlu0 33
        %3049 = vperm.xlu0 %3048, %v2929
        %v3050 = vpop.permute.xlu0 %3049
        %3053 = vset.pattern.permute.xlu0 33
        %3054 = vperm.xlu0 %3053, %v2931
        %v3055 = vpop.permute.xlu0 %3054
        %3058 = vset.pattern.permute.xlu0 33
        %3059 = vperm.xlu0 %3058, %v2934
        %v3060 = vpop.permute.xlu0 %3059
        %3063 = vset.pattern.permute.xlu0 33
        %3064 = vperm.xlu0 %3063, %v2936
        %v3065 = vpop.permute.xlu0 %3064
        %v3067 = vperm.slane %v2984, 0
        %v3068 = vadd.f32 %v2990, %v3067
        %v3069 = vadd.f32 %v2995, %v3067
        %v3070 = vadd.f32 %v3000, %v3067
        %v3071 = vadd.f32 %v3005, %v3067
        %v3072 = vadd.f32 %v3010, %v3067
        %v3073 = vadd.f32 %v3015, %v3067
        %v3074 = vadd.f32 %v3020, %v3067
        %v3075 = vadd.f32 %v3025, %v3067
        %v3076 = vadd.f32 %v3030, %v3067
        %v3077 = vadd.f32 %v3035, %v3067
        %v3078 = vadd.f32 %v3040, %v3067
        %v3079 = vadd.f32 %v3045, %v3067
        %v3080 = vadd.f32 %v3050, %v3067
        %v3081 = vadd.f32 %v3055, %v3067
        %v3082 = vadd.f32 %v3060, %v3067
        %v3083 = vadd.f32 %v3065, %v3067
        %v3084 = vmul.f32 %v3068, 0.2
        %v3085 = vmul.f32 %v3069, 0.2
        %v3086 = vmul.f32 %v3070, 0.2
        %v3087 = vmul.f32 %v3071, 0.2
        %v3088 = vmul.f32 %v3072, 0.2
        %v3089 = vmul.f32 %v3073, 0.2
        %v3090 = vmul.f32 %v3074, 0.2
        %v3091 = vmul.f32 %v3075, 0.2
        %v3092 = vmul.f32 %v3076, 0.2
        %v3093 = vmul.f32 %v3077, 0.2
        %v3094 = vmul.f32 %v3078, 0.2
        %v3095 = vmul.f32 %v3079, 0.2
        %v3096 = vmul.f32 %v3080, 0.2
        %v3097 = vmul.f32 %v3081, 0.2
        %v3098 = vmul.f32 %v3082, 0.2
        %v3099 = vmul.f32 %v3083, 0.2
        %v3100 = vmax.f32 %v3068, %v3084
        %v3101 = vmax.f32 %v3069, %v3085
        %v3102 = vmax.f32 %v3070, %v3086
        %v3103 = vmax.f32 %v3071, %v3087
        %v3104 = vmax.f32 %v3072, %v3088
        %v3105 = vmax.f32 %v3073, %v3089
        %v3106 = vmax.f32 %v3074, %v3090
        %v3107 = vmax.f32 %v3075, %v3091
        %v3108 = vmax.f32 %v3076, %v3092
        %v3109 = vmax.f32 %v3077, %v3093
        %v3110 = vmax.f32 %v3078, %v3094
        %v3111 = vmax.f32 %v3079, %v3095
        %v3112 = vmax.f32 %v3080, %v3096
        %v3113 = vmax.f32 %v3081, %v3097
        %v3114 = vmax.f32 %v3082, %v3098
        %v3115 = vmax.f32 %v3083, %v3099
        %v3116 = vadd.f32 %v3100, %v488
        %v3117 = vadd.f32 %v3101, %v489
        %v3118 = vadd.f32 %v3102, %v490
        %v3119 = vadd.f32 %v3103, %v491
        %v3120 = vadd.f32 %v3104, %v492
        %v3121 = vadd.f32 %v3105, %v493
        %v3122 = vadd.f32 %v3106, %v494
        %v3123 = vadd.f32 %v3107, %v495
        %v3124 = vadd.f32 %v3108, %v496
        %v3125 = vadd.f32 %v3109, %v497
        %v3126 = vadd.f32 %v3110, %v498
        %v3127 = vadd.f32 %v3111, %v499
        %v3128 = vadd.f32 %v3112, %v500
        %v3129 = vadd.f32 %v3113, %v501
        %v3130 = vadd.f32 %v3114, %v502
        %v3131 = vadd.f32 %v3115, %v503
        %3132 = vmax.xlane.f32.xlu0 %v3116
        %v3133 = vpop.xlane.xlu0 %3132
        %3134 = vmax.xlane.f32.xlu0 %v3117
        %v3135 = vpop.xlane.xlu0 %3134
        %3136 = vmax.xlane.f32.xlu0 %v3118
        %v3137 = vpop.xlane.xlu0 %3136
        %3138 = vmax.xlane.f32.xlu0 %v3119
        %v3139 = vpop.xlane.xlu0 %3138
        %3140 = vmax.xlane.f32.xlu0 %v3120
        %v3141 = vpop.xlane.xlu0 %3140
        %3142 = vmax.xlane.f32.xlu0 %v3121
        %v3143 = vpop.xlane.xlu0 %3142
        %3144 = vmax.xlane.f32.xlu0 %v3122
        %v3145 = vpop.xlane.xlu0 %3144
        %3146 = vmax.xlane.f32.xlu0 %v3123
        %v3147 = vpop.xlane.xlu0 %3146
        %3148 = vmax.xlane.f32.xlu0 %v3124
        %v3149 = vpop.xlane.xlu0 %3148
        %3150 = vmax.xlane.f32.xlu0 %v3125
        %v3151 = vpop.xlane.xlu0 %3150
        %3152 = vmax.xlane.f32.xlu0 %v3126
        %v3153 = vpop.xlane.xlu0 %3152
        %3154 = vmax.xlane.f32.xlu0 %v3127
        %v3155 = vpop.xlane.xlu0 %3154
        %3156 = vmax.xlane.f32.xlu0 %v3128
        %v3157 = vpop.xlane.xlu0 %3156
        %3158 = vmax.xlane.f32.xlu0 %v3129
        %v3159 = vpop.xlane.xlu0 %3158
        %3160 = vmax.xlane.f32.xlu0 %v3130
        %v3161 = vpop.xlane.xlu0 %3160
        %3162 = vmax.xlane.f32.xlu0 %v3131
        %v3163 = vpop.xlane.xlu0 %3162
        %v3164 = vsub.f32 %v3116, %v3133
        %v3165 = vsub.f32 %v3117, %v3135
        %v3166 = vsub.f32 %v3118, %v3137
        %v3167 = vsub.f32 %v3119, %v3139
        %v3168 = vsub.f32 %v3120, %v3141
        %v3169 = vsub.f32 %v3121, %v3143
        %v3170 = vsub.f32 %v3122, %v3145
        %v3171 = vsub.f32 %v3123, %v3147
        %v3172 = vsub.f32 %v3124, %v3149
        %v3173 = vsub.f32 %v3125, %v3151
        %v3174 = vsub.f32 %v3126, %v3153
        %v3175 = vsub.f32 %v3127, %v3155
        %v3176 = vsub.f32 %v3128, %v3157
        %v3177 = vsub.f32 %v3129, %v3159
        %v3178 = vsub.f32 %v3130, %v3161
        %v3179 = vsub.f32 %v3131, %v3163
        %v3180 = vmul.f32 %v3164, 1.442695
        %v3181 = vpow.pop %v3180
        %v3182 = vmul.f32 %v3165, 1.442695
        %v3183 = vpow.pop %v3182
        %v3184 = vmul.f32 %v3166, 1.442695
        %v3185 = vpow.pop %v3184
        %v3186 = vmul.f32 %v3167, 1.442695
        %v3187 = vpow.pop %v3186
        %v3188 = vmul.f32 %v3168, 1.442695
        %v3189 = vpow.pop %v3188
        %v3190 = vmul.f32 %v3169, 1.442695
        %v3191 = vpow.pop %v3190
        %v3192 = vmul.f32 %v3170, 1.442695
        %v3193 = vpow.pop %v3192
        %v3194 = vmul.f32 %v3171, 1.442695
        %v3195 = vpow.pop %v3194
        %v3196 = vmul.f32 %v3172, 1.442695
        %v3197 = vpow.pop %v3196
        %v3198 = vmul.f32 %v3173, 1.442695
        %v3199 = vpow.pop %v3198
        %v3200 = vmul.f32 %v3174, 1.442695
        %v3201 = vpow.pop %v3200
        %v3202 = vmul.f32 %v3175, 1.442695
        %v3203 = vpow.pop %v3202
        %v3204 = vmul.f32 %v3176, 1.442695
        %v3205 = vpow.pop %v3204
        %v3206 = vmul.f32 %v3177, 1.442695
        %v3207 = vpow.pop %v3206
        %v3208 = vmul.f32 %v3178, 1.442695
        %v3209 = vpow.pop %v3208
        %v3210 = vmul.f32 %v3179, 1.442695
        %v3211 = vpow.pop %v3210
        %v3212 = vpack.c.bf16 %v3183, %v3181
        %v3213 = vpack.c.bf16 %v3187, %v3185
        %v3214 = vpack.c.bf16 %v3191, %v3189
        %v3215 = vpack.c.bf16 %v3195, %v3193
        %v3216 = vpack.c.bf16 %v3199, %v3197
        %v3217 = vpack.c.bf16 %v3203, %v3201
        %v3218 = vpack.c.bf16 %v3207, %v3205
        %v3219 = vpack.c.bf16 %v3211, %v3209
        %3220 = vmatpush.bf16.msra.mxu0 %v2945
        %3221 = vmatpush.bf16.msra.mxu0 %v2944
        %3222 = vmatpush.bf16.msra.mxu0 %v2943
        %3223 = vmatpush.bf16.msra.mxu0 %v2942
        %3224 = vmatpush.bf16.msra.mxu0 %v2941
        %3225 = vmatpush.bf16.msra.mxu0 %v2940
        %3226 = vmatpush.bf16.msra.mxu0 %v2939
        %3227 = vmatpush.bf16.msra.mxu0 %v2938
        %3228 = vmatmul.bf16.gmra.mxu0 %v3212
        %v3229 = vpop.f32.mrf.mxu0
        %v3230 = vadd.f32 0.0, %v3229
        %v3231 = vpop.f32.mrf.mxu0
        %v3232 = vadd.f32 0.0, %v3231
        %3233 = vmatmul.bf16.gmra.mxu0 %v3213
        %v3234 = vpop.f32.mrf.mxu0
        %v3235 = vadd.f32 0.0, %v3234
        %v3236 = vpop.f32.mrf.mxu0
        %v3237 = vadd.f32 0.0, %v3236
        %3238 = vmatmul.bf16.gmra.mxu0 %v3214
        %v3239 = vpop.f32.mrf.mxu0
        %v3240 = vadd.f32 0.0, %v3239
        %v3241 = vpop.f32.mrf.mxu0
        %v3242 = vadd.f32 0.0, %v3241
        %3243 = vmatmul.bf16.gmra.mxu0 %v3215
        %v3244 = vpop.f32.mrf.mxu0
        %v3245 = vadd.f32 0.0, %v3244
        %v3246 = vpop.f32.mrf.mxu0
        %v3247 = vadd.f32 0.0, %v3246
        %3248 = vmatmul.bf16.gmra.mxu0 %v3216
        %v3249 = vpop.f32.mrf.mxu0
        %v3250 = vadd.f32 0.0, %v3249
        %v3251 = vpop.f32.mrf.mxu0
        %v3252 = vadd.f32 0.0, %v3251
        %3253 = vmatmul.bf16.gmra.mxu0 %v3217
        %v3254 = vpop.f32.mrf.mxu0
        %v3255 = vadd.f32 0.0, %v3254
        %v3256 = vpop.f32.mrf.mxu0
        %v3257 = vadd.f32 0.0, %v3256
        %3258 = vmatmul.bf16.gmra.mxu0 %v3218
        %v3259 = vpop.f32.mrf.mxu0
        %v3260 = vadd.f32 0.0, %v3259
        %v3261 = vpop.f32.mrf.mxu0
        %v3262 = vadd.f32 0.0, %v3261
        %3263 = vmatmul.bf16.gmra.mxu0 %v3219
        %v3264 = vpop.f32.mrf.mxu0
        %v3265 = vadd.f32 0.0, %v3264
        %v3266 = vpop.f32.mrf.mxu0
        %v3267 = vadd.f32 0.0, %v3266
        %3268 = vdwg.mxu0
        %v3269 = vrcp.pop %v3230
        %v3270 = vrcp.pop %v3232
        %v3271 = vrcp.pop %v3235
        %v3272 = vrcp.pop %v3237
        %v3273 = vrcp.pop %v3240
        %v3274 = vrcp.pop %v3242
        %v3275 = vrcp.pop %v3245
        %v3276 = vrcp.pop %v3247
        %v3277 = vrcp.pop %v3250
        %v3278 = vrcp.pop %v3252
        %v3279 = vrcp.pop %v3255
        %v3280 = vrcp.pop %v3257
        %v3281 = vrcp.pop %v3260
        %v3282 = vrcp.pop %v3262
        %v3283 = vrcp.pop %v3265
        %v3284 = vrcp.pop %v3267
        %3286 = vset.pattern.permute.xlu0 32
        %3287 = vperm.xlu0 %3286, %v3269
        %v3288 = vpop.permute.xlu0 %3287
        %3291 = vset.pattern.permute.xlu0 32
        %3292 = vperm.xlu0 %3291, %v3270
        %v3293 = vpop.permute.xlu0 %3292
        %3296 = vset.pattern.permute.xlu0 32
        %3297 = vperm.xlu0 %3296, %v3271
        %v3298 = vpop.permute.xlu0 %3297
        %3301 = vset.pattern.permute.xlu0 32
        %3302 = vperm.xlu0 %3301, %v3272
        %v3303 = vpop.permute.xlu0 %3302
        %3306 = vset.pattern.permute.xlu0 32
        %3307 = vperm.xlu0 %3306, %v3273
        %v3308 = vpop.permute.xlu0 %3307
        %3311 = vset.pattern.permute.xlu0 32
        %3312 = vperm.xlu0 %3311, %v3274
        %v3313 = vpop.permute.xlu0 %3312
        %3316 = vset.pattern.permute.xlu0 32
        %3317 = vperm.xlu0 %3316, %v3275
        %v3318 = vpop.permute.xlu0 %3317
        %3321 = vset.pattern.permute.xlu0 32
        %3322 = vperm.xlu0 %3321, %v3276
        %v3323 = vpop.permute.xlu0 %3322
        %3326 = vset.pattern.permute.xlu0 32
        %3327 = vperm.xlu0 %3326, %v3277
        %v3328 = vpop.permute.xlu0 %3327
        %3331 = vset.pattern.permute.xlu0 32
        %3332 = vperm.xlu0 %3331, %v3278
        %v3333 = vpop.permute.xlu0 %3332
        %3336 = vset.pattern.permute.xlu0 32
        %3337 = vperm.xlu0 %3336, %v3279
        %v3338 = vpop.permute.xlu0 %3337
        %3341 = vset.pattern.permute.xlu0 32
        %3342 = vperm.xlu0 %3341, %v3280
        %v3343 = vpop.permute.xlu0 %3342
        %3346 = vset.pattern.permute.xlu0 32
        %3347 = vperm.xlu0 %3346, %v3281
        %v3348 = vpop.permute.xlu0 %3347
        %3351 = vset.pattern.permute.xlu0 32
        %3352 = vperm.xlu0 %3351, %v3282
        %v3353 = vpop.permute.xlu0 %3352
        %3356 = vset.pattern.permute.xlu0 32
        %3357 = vperm.xlu0 %3356, %v3283
        %v3358 = vpop.permute.xlu0 %3357
        %3361 = vset.pattern.permute.xlu0 32
        %3362 = vperm.xlu0 %3361, %v3284
        %v3363 = vpop.permute.xlu0 %3362
        %v3365 = vmul.f32 %v3230, %v3288
        %v3366 = vmul.f32 %v3232, %v3293
        %v3367 = vmul.f32 %v3235, %v3298
        %v3368 = vmul.f32 %v3237, %v3303
        %v3369 = vmul.f32 %v3240, %v3308
        %v3370 = vmul.f32 %v3242, %v3313
        %v3371 = vmul.f32 %v3245, %v3318
        %v3372 = vmul.f32 %v3247, %v3323
        %v3373 = vmul.f32 %v3250, %v3328
        %v3374 = vmul.f32 %v3252, %v3333
        %v3375 = vmul.f32 %v3255, %v3338
        %v3376 = vmul.f32 %v3257, %v3343
        %v3377 = vmul.f32 %v3260, %v3348
        %v3378 = vmul.f32 %v3262, %v3353
        %v3379 = vmul.f32 %v3265, %v3358
        %v3380 = vmul.f32 %v3267, %v3363
        %v3381 = vperm.slane %v530, 4
        %v3382 = vadd.f32 %v3365, %v3381
        %v3383 = vadd.f32 %v3366, %v3381
        %v3384 = vadd.f32 %v3367, %v3381
        %v3385 = vadd.f32 %v3368, %v3381
        %v3386 = vadd.f32 %v3369, %v3381
        %v3387 = vadd.f32 %v3370, %v3381
        %v3388 = vadd.f32 %v3371, %v3381
        %v3389 = vadd.f32 %v3372, %v3381
        %v3390 = vadd.f32 %v3373, %v3381
        %v3391 = vadd.f32 %v3374, %v3381
        %v3392 = vadd.f32 %v3375, %v3381
        %v3393 = vadd.f32 %v3376, %v3381
        %v3394 = vadd.f32 %v3377, %v3381
        %v3395 = vadd.f32 %v3378, %v3381
        %v3396 = vadd.f32 %v3379, %v3381
        %v3397 = vadd.f32 %v3380, %v3381
        %v3398 = vpack.c.bf16 %v3383, %v3382
        %v3399 = vpack.c.bf16 %v3385, %v3384
        %v3400 = vpack.c.bf16 %v3387, %v3386
        %v3401 = vpack.c.bf16 %v3389, %v3388
        %v3402 = vpack.c.bf16 %v3391, %v3390
        %v3403 = vpack.c.bf16 %v3393, %v3392
        %v3404 = vpack.c.bf16 %v3395, %v3394
        %v3405 = vpack.c.bf16 %v3397, %v3396
        %v3406 = vld [vmem:[%s454] sm:$0xf]
        %v3407 = vld [vmem:[%s454 + $0x4] sm:$0xf]
        %v3408 = vld [vmem:[%s454 + $0x8] sm:$0xf]
        %v3409 = vld [vmem:[%s454 + $0xc] sm:$0xf]
        %v3410 = vld [vmem:[%s454 + $0x10] sm:$0xf]
        %v3411 = vld [vmem:[%s454 + $0x14] sm:$0xf]
        %v3412 = vld [vmem:[%s454 + $0x18] sm:$0xf]
        %v3413 = vld [vmem:[%s454 + $0x1c] sm:$0xf]
        %v3414 = vld [vmem:[%s454 + $0x20] sm:$0xf]
        %v3415 = vld [vmem:[%s454 + $0x24] sm:$0xf]
        %v3416 = vld [vmem:[%s454 + $0x28] sm:$0xf]
        %v3417 = vld [vmem:[%s454 + $0x2c] sm:$0xf]
        %v3418 = vld [vmem:[%s454 + $0x30] sm:$0xf]
        %v3419 = vld [vmem:[%s454 + $0x34] sm:$0xf]
        %v3420 = vld [vmem:[%s454 + $0x38] sm:$0xf]
        %v3421 = vld [vmem:[%s454 + $0x3c] sm:$0xf]
        %v3438 = vunpack.c.l.b16 %v3406
        %v3439 = vunpack.c.l.b16 %v3407
        %v3440 = vunpack.c.l.b16 %v3408
        %v3441 = vunpack.c.l.b16 %v3409
        %v3442 = vunpack.c.l.b16 %v3410
        %v3443 = vunpack.c.l.b16 %v3411
        %v3444 = vunpack.c.l.b16 %v3412
        %v3445 = vunpack.c.l.b16 %v3413
        %v3446 = vunpack.c.l.b16 %v3414
        %v3447 = vunpack.c.l.b16 %v3415
        %v3448 = vunpack.c.l.b16 %v3416
        %v3449 = vunpack.c.l.b16 %v3417
        %v3450 = vunpack.c.l.b16 %v3418
        %v3451 = vunpack.c.l.b16 %v3419
        %v3452 = vunpack.c.l.b16 %v3420
        %v3453 = vunpack.c.l.b16 %v3421
        %v3454 = vpack.c.b16 %v3439, %v3438
        %v3455 = vpack.c.b16 %v3441, %v3440
        %v3456 = vpack.c.b16 %v3443, %v3442
        %v3457 = vpack.c.b16 %v3445, %v3444
        %v3458 = vpack.c.b16 %v3447, %v3446
        %v3459 = vpack.c.b16 %v3449, %v3448
        %v3460 = vpack.c.b16 %v3451, %v3450
        %v3461 = vpack.c.b16 %v3453, %v3452
        %3470 = vmatpush.bf16.msra.mxu0 %v3405
        %3471 = vmatpush.bf16.msra.mxu0 %v3404
        %3472 = vmatpush.bf16.msra.mxu0 %v3403
        %3473 = vmatpush.bf16.msra.mxu0 %v3402
        %3474 = vmatpush.bf16.msra.mxu0 %v3401
        %3475 = vmatpush.bf16.msra.mxu0 %v3400
        %3476 = vmatpush.bf16.msra.mxu0 %v3399
        %3477 = vmatpush.bf16.msra.mxu0 %v3398
        %3478 = vmatmul.bf16.gmra.mxu0 %v3454
        %v3479 = vpop.f32.mrf.mxu0
        %v3480 = vadd.f32 0.0, %v3479
        %v3481 = vpop.f32.mrf.mxu0
        %v3482 = vadd.f32 0.0, %v3481
        %3483 = vmatmul.bf16.gmra.mxu0 %v3455
        %v3484 = vpop.f32.mrf.mxu0
        %v3485 = vadd.f32 0.0, %v3484
        %v3486 = vpop.f32.mrf.mxu0
        %v3487 = vadd.f32 0.0, %v3486
        %3488 = vmatmul.bf16.gmra.mxu0 %v3456
        %v3489 = vpop.f32.mrf.mxu0
        %v3490 = vadd.f32 0.0, %v3489
        %v3491 = vpop.f32.mrf.mxu0
        %v3492 = vadd.f32 0.0, %v3491
        %3493 = vmatmul.bf16.gmra.mxu0 %v3457
        %v3494 = vpop.f32.mrf.mxu0
        %v3495 = vadd.f32 0.0, %v3494
        %v3496 = vpop.f32.mrf.mxu0
        %v3497 = vadd.f32 0.0, %v3496
        %3498 = vmatmul.bf16.gmra.mxu0 %v3458
        %v3499 = vpop.f32.mrf.mxu0
        %v3500 = vadd.f32 0.0, %v3499
        %v3501 = vpop.f32.mrf.mxu0
        %v3502 = vadd.f32 0.0, %v3501
        %3503 = vmatmul.bf16.gmra.mxu0 %v3459
        %v3504 = vpop.f32.mrf.mxu0
        %v3505 = vadd.f32 0.0, %v3504
        %v3506 = vpop.f32.mrf.mxu0
        %v3507 = vadd.f32 0.0, %v3506
        %3508 = vmatmul.bf16.gmra.mxu0 %v3460
        %v3509 = vpop.f32.mrf.mxu0
        %v3510 = vadd.f32 0.0, %v3509
        %v3511 = vpop.f32.mrf.mxu0
        %v3512 = vadd.f32 0.0, %v3511
        %3513 = vmatmul.bf16.gmra.mxu0 %v3461
        %v3514 = vpop.f32.mrf.mxu0
        %v3515 = vadd.f32 0.0, %v3514
        %v3516 = vpop.f32.mrf.mxu0
        %v3517 = vadd.f32 0.0, %v3516
        %3518 = vdwg.mxu0
        %v3519 = vpack.c.bf16 %v3482, %v3480
        %v3520 = vpack.c.bf16 %v3487, %v3485
        %v3521 = vpack.c.bf16 %v3492, %v3490
        %v3522 = vpack.c.bf16 %v3497, %v3495
        %v3523 = vpack.c.bf16 %v3502, %v3500
        %v3524 = vpack.c.bf16 %v3507, %v3505
        %v3525 = vpack.c.bf16 %v3512, %v3510
        %v3526 = vpack.c.bf16 %v3517, %v3515
        %v3527 = vld [vmem:[%s6] sm:$0xf]
        %v3528 = vld [vmem:[%s6 + $0x4] sm:$0xf]
        %v3529 = vld [vmem:[%s6 + $0x8] sm:$0xf]
        %v3530 = vld [vmem:[%s6 + $0xc] sm:$0xf]
        %v3531 = vld [vmem:[%s6 + $0x10] sm:$0x1]
        %v3532 = vld [vmem:[%s7] sm:$0x1]
        %v3534 = vperm.slane %v3532, 0
        %v3541 = vunpack.c.l.b16 %v3527
        %v3542 = vunpack.c.l.b16 %v3528
        %v3543 = vunpack.c.l.b16 %v3529
        %v3544 = vunpack.c.l.b16 %v3530
        %v3545 = vunpack.c.l.b16 %v3531
        %v3546 = vpack.c.b16 %v3542, %v3541
        %v3547 = vpack.c.b16 %v3544, %v3543
        %v3548 = vpack.c.b16 %v3545, %v3545
        %v3552 = vsel %vm554, %v3519, 0
        %v3555 = vsel %vm554, %v3520, 0
        %v3558 = vsel %vm554, %v3521, 0
        %v3561 = vsel %vm554, %v3522, 0
        %v3564 = vsel %vm554, %v3523, 0
        %v3567 = vsel %vm554, %v3524, 0
        %v3570 = vsel %vm554, %v3525, 0
        %v3573 = vsel %vm554, %v3526, 0
        %v3576 = vand.u32 %v3548, %v581
        %3578 = vmatpush.bf16.msra.mxu0 0
        %3579 = vmatpush.bf16.msra.mxu0 0
        %3580 = vmatpush.bf16.msra.mxu0 0
        %3581 = vmatpush.bf16.msra.mxu0 0
        %3582 = vmatpush.bf16.msra.mxu0 0
        %3583 = vmatpush.bf16.msra.mxu0 %v3576
        %3584 = vmatpush.bf16.msra.mxu0 %v3547
        %3585 = vmatpush.bf16.msra.mxu0 %v3546
        %3586 = vmatmul.bf16.gmra.mxu0 %v3552
        %v3587 = vpop.f32.mrf.mxu0
        %v3588 = vadd.f32 %v3534, %v3587
        %v3589 = vpop.f32.mrf.mxu0
        %v3590 = vadd.f32 %v3534, %v3589
        %3591 = vmatmul.bf16.gmra.mxu0 %v3555
        %v3592 = vpop.f32.mrf.mxu0
        %v3593 = vadd.f32 %v3534, %v3592
        %v3594 = vpop.f32.mrf.mxu0
        %v3595 = vadd.f32 %v3534, %v3594
        %3596 = vmatmul.bf16.gmra.mxu0 %v3558
        %v3597 = vpop.f32.mrf.mxu0
        %v3598 = vadd.f32 %v3534, %v3597
        %v3599 = vpop.f32.mrf.mxu0
        %v3600 = vadd.f32 %v3534, %v3599
        %3601 = vmatmul.bf16.gmra.mxu0 %v3561
        %v3602 = vpop.f32.mrf.mxu0
        %v3603 = vadd.f32 %v3534, %v3602
        %v3604 = vpop.f32.mrf.mxu0
        %v3605 = vadd.f32 %v3534, %v3604
        %3606 = vmatmul.bf16.gmra.mxu0 %v3564
        %v3607 = vpop.f32.mrf.mxu0
        %v3608 = vadd.f32 %v3534, %v3607
        %v3609 = vpop.f32.mrf.mxu0
        %v3610 = vadd.f32 %v3534, %v3609
        %3611 = vmatmul.bf16.gmra.mxu0 %v3567
        %v3612 = vpop.f32.mrf.mxu0
        %v3613 = vadd.f32 %v3534, %v3612
        %v3614 = vpop.f32.mrf.mxu0
        %v3615 = vadd.f32 %v3534, %v3614
        %3616 = vmatmul.bf16.gmra.mxu0 %v3570
        %v3617 = vpop.f32.mrf.mxu0
        %v3618 = vadd.f32 %v3534, %v3617
        %v3619 = vpop.f32.mrf.mxu0
        %v3620 = vadd.f32 %v3534, %v3619
        %3621 = vmatmul.bf16.gmra.mxu0 %v3573
        %v3622 = vpop.f32.mrf.mxu0
        %v3623 = vadd.f32 %v3534, %v3622
        %v3624 = vpop.f32.mrf.mxu0
        %v3625 = vadd.f32 %v3534, %v3624
        %3626 = vdwg.mxu0
        %v3627 = vld [vmem:[%s8] sm:$0xf]
        %v3628 = vld [vmem:[%s8 + $0x4] sm:$0xf]
        %v3629 = vld [vmem:[%s8 + $0x8] sm:$0xf]
        %v3630 = vld [vmem:[%s8 + $0xc] sm:$0xf]
        %v3631 = vld [vmem:[%s8 + $0x10] sm:$0x1]
        %v3632 = vld [vmem:[%s9] sm:$0x1]
        %v3634 = vperm.slane %v3632, 0
        %v3641 = vunpack.c.l.b16 %v3627
        %v3642 = vunpack.c.l.b16 %v3628
        %v3643 = vunpack.c.l.b16 %v3629
        %v3644 = vunpack.c.l.b16 %v3630
        %v3645 = vunpack.c.l.b16 %v3631
        %v3646 = vpack.c.b16 %v3642, %v3641
        %v3647 = vpack.c.b16 %v3644, %v3643
        %v3648 = vpack.c.b16 %v3645, %v3645
        %v3652 = vsel %vm554, %v3398, 0
        %v3655 = vsel %vm554, %v3399, 0
        %v3658 = vsel %vm554, %v3400, 0
        %v3661 = vsel %vm554, %v3401, 0
        %v3664 = vsel %vm554, %v3402, 0
        %v3667 = vsel %vm554, %v3403, 0
        %v3670 = vsel %vm554, %v3404, 0
        %v3673 = vsel %vm554, %v3405, 0
        %v3676 = vand.u32 %v3648, %v581
        %3678 = vmatpush.bf16.msra.mxu0 0
        %3679 = vmatpush.bf16.msra.mxu0 0
        %3680 = vmatpush.bf16.msra.mxu0 0
        %3681 = vmatpush.bf16.msra.mxu0 0
        %3682 = vmatpush.bf16.msra.mxu0 0
        %3683 = vmatpush.bf16.msra.mxu0 %v3676
        %3684 = vmatpush.bf16.msra.mxu0 %v3647
        %3685 = vmatpush.bf16.msra.mxu0 %v3646
        %3686 = vmatmul.bf16.gmra.mxu0 %v3652
        %v3687 = vpop.f32.mrf.mxu0
        %v3688 = vadd.f32 %v3634, %v3687
        %v3689 = vpop.f32.mrf.mxu0
        %v3690 = vadd.f32 %v3634, %v3689
        %3691 = vmatmul.bf16.gmra.mxu0 %v3655
        %v3692 = vpop.f32.mrf.mxu0
        %v3693 = vadd.f32 %v3634, %v3692
        %v3694 = vpop.f32.mrf.mxu0
        %v3695 = vadd.f32 %v3634, %v3694
        %3696 = vmatmul.bf16.gmra.mxu0 %v3658
        %v3697 = vpop.f32.mrf.mxu0
        %v3698 = vadd.f32 %v3634, %v3697
        %v3699 = vpop.f32.mrf.mxu0
        %v3700 = vadd.f32 %v3634, %v3699
        %3701 = vmatmul.bf16.gmra.mxu0 %v3661
        %v3702 = vpop.f32.mrf.mxu0
        %v3703 = vadd.f32 %v3634, %v3702
        %v3704 = vpop.f32.mrf.mxu0
        %v3705 = vadd.f32 %v3634, %v3704
        %3706 = vmatmul.bf16.gmra.mxu0 %v3664
        %v3707 = vpop.f32.mrf.mxu0
        %v3708 = vadd.f32 %v3634, %v3707
        %v3709 = vpop.f32.mrf.mxu0
        %v3710 = vadd.f32 %v3634, %v3709
        %3711 = vmatmul.bf16.gmra.mxu0 %v3667
        %v3712 = vpop.f32.mrf.mxu0
        %v3713 = vadd.f32 %v3634, %v3712
        %v3714 = vpop.f32.mrf.mxu0
        %v3715 = vadd.f32 %v3634, %v3714
        %3716 = vmatmul.bf16.gmra.mxu0 %v3670
        %v3717 = vpop.f32.mrf.mxu0
        %v3718 = vadd.f32 %v3634, %v3717
        %v3719 = vpop.f32.mrf.mxu0
        %v3720 = vadd.f32 %v3634, %v3719
        %3721 = vmatmul.bf16.gmra.mxu0 %v3673
        %v3722 = vpop.f32.mrf.mxu0
        %v3723 = vadd.f32 %v3634, %v3722
        %v3724 = vpop.f32.mrf.mxu0
        %v3725 = vadd.f32 %v3634, %v3724
        %3726 = vdwg.mxu0
        %v3727 = vmax.f32 %v3588, 0.0
        %v3728 = vmax.f32 %v3590, 0.0
        %v3729 = vmax.f32 %v3593, 0.0
        %v3730 = vmax.f32 %v3595, 0.0
        %v3731 = vmax.f32 %v3598, 0.0
        %v3732 = vmax.f32 %v3600, 0.0
        %v3733 = vmax.f32 %v3603, 0.0
        %v3734 = vmax.f32 %v3605, 0.0
        %v3735 = vmax.f32 %v3608, 0.0
        %v3736 = vmax.f32 %v3610, 0.0
        %v3737 = vmax.f32 %v3613, 0.0
        %v3738 = vmax.f32 %v3615, 0.0
        %v3739 = vmax.f32 %v3618, 0.0
        %v3740 = vmax.f32 %v3620, 0.0
        %v3741 = vmax.f32 %v3623, 0.0
        %v3742 = vmax.f32 %v3625, 0.0
        %v3743 = vpack.c.bf16 %v3728, %v3727
        %v3744 = vpack.c.bf16 %v3730, %v3729
        %v3745 = vpack.c.bf16 %v3732, %v3731
        %v3746 = vpack.c.bf16 %v3734, %v3733
        %v3747 = vpack.c.bf16 %v3736, %v3735
        %v3748 = vpack.c.bf16 %v3738, %v3737
        %v3749 = vpack.c.bf16 %v3740, %v3739
        %v3750 = vpack.c.bf16 %v3742, %v3741
        %v3751 = vmax.f32 %v3688, 0.0
        %v3752 = vmax.f32 %v3690, 0.0
        %v3753 = vmax.f32 %v3693, 0.0
        %v3754 = vmax.f32 %v3695, 0.0
        %v3755 = vmax.f32 %v3698, 0.0
        %v3756 = vmax.f32 %v3700, 0.0
        %v3757 = vmax.f32 %v3703, 0.0
        %v3758 = vmax.f32 %v3705, 0.0
        %v3759 = vmax.f32 %v3708, 0.0
        %v3760 = vmax.f32 %v3710, 0.0
        %v3761 = vmax.f32 %v3713, 0.0
        %v3762 = vmax.f32 %v3715, 0.0
        %v3763 = vmax.f32 %v3718, 0.0
        %v3764 = vmax.f32 %v3720, 0.0
        %v3765 = vmax.f32 %v3723, 0.0
        %v3766 = vmax.f32 %v3725, 0.0
        %v3767 = vpack.c.bf16 %v3752, %v3751
        %v3768 = vpack.c.bf16 %v3754, %v3753
        %v3769 = vpack.c.bf16 %v3756, %v3755
        %v3770 = vpack.c.bf16 %v3758, %v3757
        %v3771 = vpack.c.bf16 %v3760, %v3759
        %v3772 = vpack.c.bf16 %v3762, %v3761
        %v3773 = vpack.c.bf16 %v3764, %v3763
        %v3774 = vpack.c.bf16 %v3766, %v3765
        %v3775 = vld [vmem:[%s10] sm:$0x1]
        %3777 = vst [vmem:[#allocation1] ss:$9 sm:$0xff] %v3775
        %v3778 = vld [vmem:[#allocation1] sm:$0xff]
        %v3779 = vshrl.u32 %v3778, 16
        %vm3781 = vcmask 261120
        %v3783 = vsel %vm3781, %v3779, 0
        %v3786 = vsel %vm3781, %v3767, 0
        %v3789 = vsel %vm3781, %v3768, 0
        %v3792 = vsel %vm3781, %v3769, 0
        %v3795 = vsel %vm3781, %v3770, 0
        %v3798 = vsel %vm3781, %v3771, 0
        %v3801 = vsel %vm3781, %v3772, 0
        %v3804 = vsel %vm3781, %v3773, 0
        %v3807 = vsel %vm3781, %v3774, 0
        %3809 = vmatpush.bf16.xpose.msra.mxu0 %v3807
        %3810 = vmatpush.bf16.xpose.msra.mxu0 %v3804
        %3811 = vmatpush.bf16.xpose.msra.mxu0 %v3801
        %3812 = vmatpush.bf16.xpose.msra.mxu0 %v3798
        %3813 = vmatpush.bf16.xpose.msra.mxu0 %v3795
        %3814 = vmatpush.bf16.xpose.msra.mxu0 %v3792
        %3815 = vmatpush.bf16.xpose.msra.mxu0 %v3789
        %3816 = vmatpush.bf16.xpose.msra.mxu0 %v3786
        %3817 = vmatmul.bf16.gmra.mxu0 %v3783
        %v3818 = vpop.f32.mrf.mxu0
        %v3819 = vadd.f32 0.0, %v3818
        %v3820 = vpop.f32.mrf.mxu0
        %3821 = vdwg.mxu0
        %v3822 = vsel %vm3781, %v3775, 0
        %v3825 = vsel %vm3781, %v3743, 0
        %v3828 = vsel %vm3781, %v3744, 0
        %v3831 = vsel %vm3781, %v3745, 0
        %v3834 = vsel %vm3781, %v3746, 0
        %v3837 = vsel %vm3781, %v3747, 0
        %v3840 = vsel %vm3781, %v3748, 0
        %v3843 = vsel %vm3781, %v3749, 0
        %v3846 = vsel %vm3781, %v3750, 0
        %3848 = vmatpush.bf16.xpose.msra.mxu0 %v3846
        %3849 = vmatpush.bf16.xpose.msra.mxu0 %v3843
        %3850 = vmatpush.bf16.xpose.msra.mxu0 %v3840
        %3851 = vmatpush.bf16.xpose.msra.mxu0 %v3837
        %3852 = vmatpush.bf16.xpose.msra.mxu0 %v3834
        %3853 = vmatpush.bf16.xpose.msra.mxu0 %v3831
        %3854 = vmatpush.bf16.xpose.msra.mxu0 %v3828
        %3855 = vmatpush.bf16.xpose.msra.mxu0 %v3825
        %3856 = vmatmul.bf16.gmra.mxu0 %v3822
        %v3857 = vpop.f32.mrf.mxu0
        %v3858 = vadd.f32 %v3819, %v3857
        %v3859 = vpop.f32.mrf.mxu0
        %3860 = vdwg.mxu0
        %v3861 = vld [vmem:[#allocation2] sm:$0x1]
        %3863 = vset.pattern.permute.xlu0 0
        %3864 = vperm.xlu0 %3863, %v3861
        %v3865 = vpop.permute.xlu0 %3864
        %v3867 = vperm.slane %v3865, 0
        %v3868 = vadd.f32 %v3858, %v3867
        %3869 = vst [vmem:[%s438] sm:$0x1] %v3868
        %s3870 = sand.u32 %s303, 1
        %s3871 = scalar_lea.sflag [#allocation4], %s3870
        %s3872 = sand.u32 %s303, 1
        %s3873 = scalar_lea.vmem [#allocation3], %s3872
        // Predicated region
        $region69: #{tpu_custom_call.1} parent=67 // pred_check
          %p3874 = pneg %p313
        $region70: #{tpu_custom_call.1} parent=67 // pred_check_branch
          %3876 = sbr.rel (%p3874) target = $region72
        $region71: #{tpu_custom_call.1} parent=67 // pred_region
          %3878 = vsyncadd %s3871, 0
          %s3879 = scalar_lea.hbm %s12, %s28
          %s3881 = sshll.u32 %s3873, 4
          %s3882 = int_to_ptr.vmem [resolvable:$true] %s3881
          %s3883 = sshll.u32 %s3879, 4
          %s3884 = int_to_ptr.hbm [resolvable:$true] %s3883
          %3886 = dma.vmem_to_hbm [thread:$0]  %s3882, 16, %s3884, %s3871
        $region72: #{tpu_custom_call.1} parent=67 // pred_fallthru
          _
      $region68: #{tpu_custom_call.1} parent=5 // pred_fallthru
        _
      %p3887 = scmp.le.s32.totalorder 2, %s23
      // Predicated region
      $region73: #{tpu_custom_call.1} parent=5 // pred_check
        %p3888 = pneg %p3887
      $region74: #{tpu_custom_call.1} parent=5 // pred_check_branch
        %3890 = sbr.rel (%p3888) target = $region76
      $region75: #{tpu_custom_call.1} parent=5 // pred_region
        %s3891 = ssub.s32 %s23, 2
        // Predicated region
        $region77: #{tpu_custom_call.1} parent=75 // pred_check
          %p3892 = pneg %p319
        $region78: #{tpu_custom_call.1} parent=75 // pred_check_branch
          %3894 = sbr.rel (%p3892) target = $region80
        $region79: #{tpu_custom_call.1} parent=75 // pred_region
          %s3895 = sand.u32 %s304, 1
          %s3896 = scalar_lea.sflag [#allocation4], %s3895
          %s3897 = sand.u32 %s304, 1
          %s3898 = scalar_lea.vmem [#allocation3], %s3897
          %3900 = dma.done %s3896, 16
        $region80: #{tpu_custom_call.1} parent=75 // pred_fallthru
          _
      $region76: #{tpu_custom_call.1} parent=5 // pred_fallthru
        _
    $region6: #{tpu_custom_call.1} parent=1 // loop_footer
      %s27 = sadd.s32 1, %s23
    $region7: #{tpu_custom_call.1} parent=1 // loop_footer_branch
      %22 = sbr.rel target = $region3
    $region8: #{tpu_custom_call.1} parent=1 // loop_exit
      _
    %3901 = vsyncpa [#allocation4], 1
    %s3902 = scalar_lea.sflag [#allocation4], 1
    %3903 = vsyncpa %s3902, 1

</llo_original>
